<compile_context>
chip_gen: v6e
topology: v6e:2x2x1
jax: 0.10.0
libtpu: 0.0.40
codegen_flags: <defaults>
</compile_context>

<pallas_src>
import functools

import jax
import jax.numpy as jnp
from jax import lax
from jax.experimental import pallas as pl
from jax.experimental.pallas import tpu as pltpu


def _round_up(x, m):
    return ((x + m - 1) // m) * m


def _tpu_vmem_bytes():
    try:
        return int(pltpu.get_tpu_info().vmem_capacity_bytes)
    except Exception:
        return 64 << 20          # conservative default: v7x per-TensorCore VMEM


def _num_tensorcores():
    try:
        info = pltpu.get_tpu_info()
        for name in ("num_cores", "num_tensorcores", "tensorcore_count",
                     "cores_per_chip", "num_cores_per_chip"):
            v = getattr(info, name, None)
            if isinstance(v, int) and v > 0:
                return max(1, min(2, v))
    except Exception:
        pass
    try:
        kind = jax.devices()[0].device_kind.lower()
    except Exception:
        return 1
    # 2 TensorCores per device: v3/v4/v5p megacore, v7x.  v5e / v6e are single-TC.
    if any(t in kind for t in ("v7", "7x", "v5p", "v5 p", "v4", "v3")):
        return 2
    return 1


def _focal_ls_kernel(*refs, gamma, ignore_index, label_smoothing, use_alpha,
                     chunk, num_chunks):
    if use_alpha:
        logits_ref, targets_ref, alpha_ref, loss_out_ref, mask_out_ref = refs
    else:
        logits_ref, targets_ref, loss_out_ref, mask_out_ref = refs
        alpha_ref = None

    i = pl.program_id(1)   # inner ("arbitrary") row-tile axis; axis 0 is the core axis

    # Output blocks are resident across the inner axis (same block index every step):
    # they are the accumulators.  Zero them on the first inner step of each core sweep.
    @pl.when(i == 0)
    def _():
        loss_out_ref[...] = jnp.zeros_like(loss_out_ref)
        mask_out_ref[...] = jnp.zeros_like(mask_out_ref)

    num_classes = logits_ref.shape[1]
    ls = float(label_smoothing)
    g_int = int(round(gamma))
    int_gamma = abs(gamma - g_int) < 1e-9 and 0 <= g_int <= 8

    if use_alpha:
        alpha_row = alpha_ref[...].astype(jnp.float32)        # (1, C), loop-invariant

    def chunk_body(s, carry):
        loss_acc, mask_acc = carry
        r0 = pl.multiple_of(s * chunk, chunk)

        x = logits_ref[pl.ds(r0, chunk), :].astype(jnp.float32)        # (chunk, C)

        # Lane-dense targets: contiguous (1, chunk) slab -> (chunk, 1) column via an XLU
        # relayout.  Compared in f32 (exact for class ids < 2^24 and for ignore_index).
        tgt_row = targets_ref[0, pl.ds(s, 1), :].astype(jnp.float32)   # (1, chunk)
        tgt_col = jnp.transpose(tgt_row, (1, 0))                       # (chunk, 1)

        class_ids = lax.broadcasted_iota(
            jnp.int32, (chunk, num_classes), 1).astype(jnp.float32)
        one_hot = class_ids == tgt_col                                 # (chunk, C)

        # log-softmax pieces: a single exp stream fused into its row-sum; the smoothed
        # contractions are closed-form, so no probs / log_probs tiles are materialized.
        m = jnp.max(x, axis=-1, keepdims=True)                         # (chunk, 1)
        sum_e = jnp.sum(jnp.exp(x - m), axis=-1, keepdims=True)
        log_z = jnp.log(sum_e)
        tgt_logit = jnp.sum(jnp.where(one_hot, x, 0.0), axis=-1, keepdims=True)
        tgt_logprob = tgt_logit - m - log_z                            # log p_t
        p_t = jnp.exp(tgt_logprob)

        if ls > 0.0:
            u = ls / num_classes
            # Smoothing applied unconditionally; ignored rows are zeroed by the mask
            # below, matching torch's where(mask, smoothed, one_hot) after loss * mask.
            sum_logits = jnp.sum(x, axis=-1, keepdims=True)
            sum_logprob = sum_logits - num_classes * (m + log_z)       # sum_c log p_c
            target_probs = (1.0 - ls) * p_t + u                        # sum(probs) == 1
            ce_loss = -(1.0 - ls) * tgt_logprob - u * sum_logprob
        else:
            target_probs = p_t
            ce_loss = -tgt_logprob

        w = jnp.maximum(1.0 - target_probs, 0.0)
        if int_gamma:
            fw = jnp.ones_like(w)                                      # integer power:
            for _ in range(g_int):                                     # VPU only, no
                fw = fw * w                                            # exp/log pair
        else:
            fw = jnp.power(w, gamma)
        fl = fw * ce_loss                                              # (chunk, 1)

        if use_alpha:
            # alpha[target] via the un-smoothed one-hot; ignored rows -> 0 (matches
            # torch's zeros_like + scatter-on-valid semantics).
            alpha_w = jnp.sum(jnp.where(one_hot, alpha_row, 0.0),
                              axis=-1, keepdims=True)
            fl = fl * alpha_w

        maskf = (tgt_col != float(ignore_index)).astype(jnp.float32)   # (chunk, 1)
        return (loss_acc + jnp.sum(fl * maskf), mask_acc + jnp.sum(maskf))

    loss_b, mask_b = lax.fori_loop(
        0, num_chunks, chunk_body,
        (jnp.zeros((), jnp.float32), jnp.zeros((), jnp.float32)))

    loss_out_ref[...] += loss_b
    mask_out_ref[...] += mask_b


def focal_loss_with_ls(logits, targets, alpha=None, *,
                       gamma=2.0, ignore_index=-100, label_smoothing=0.1,
                       row_tile=None, chunk_rows=None, logits_tile_bytes=None,
                       num_cores=None, core_parallel=False):
    """logits: [N, C] float (bf16 preferred — the kernel is HBM-bound and upcasts to f32
    per chunk); targets: [N] int; alpha: optional [C] float."""
    n, c = logits.shape
    in_itemsize = jnp.dtype(logits.dtype).itemsize
    lane_c = _round_up(c, 128)                 # VMEM lane padding of the logits block

    n_cores = max(1, min(2, int(num_cores))) if num_cores else _num_tensorcores()

    vmem_phys = _tpu_vmem_bytes()
    big_vmem = vmem_phys >= (96 << 20)          # 128-MiB chips (v5e/v6e) vs v7x (64 MiB)
    vmem_cap = (vmem_phys * 3) // 4             # ~96 MiB on big chips, ~48 MiB on v7x

    # ---- inner row chunk: bounds the per-chunk f32 intermediates (independent of the
    #      DMA block size); ~5 full-C streams + a handful of (chunk, 1) column vectors.
    if chunk_rows is None:
        chunk_budget = (6 << 20) if big_vmem else (4 << 20)
        chunk = chunk_budget // (5 * lane_c * 4 + 8 * 128 * 4)
        chunk = max(16, min(512, (chunk // 16) * 16))
    else:
        chunk = max(16, (int(chunk_rows) // 16) * 16)
    if row_tile is not None:
        chunk = min(chunk, max(16, (int(row_tile) // 16) * 16))
    chunk_live = 5 * chunk * lane_c * 4 + 8 * chunk * 128 * 4

    # ---- DMA block (row tile): as large as the VMEM budget allows, to amortize the
    #      ~0.35 us/grid-step overhead; budgeted on the lane-padded VMEM footprint.
    row_bytes = lane_c * in_itemsize
    if logits_tile_bytes is None:
        logits_tile_bytes = (12 << 20) if big_vmem else (5 << 20)
    per_buf = min(int(logits_tile_bytes),
                  max(chunk * row_bytes, (vmem_cap - chunk_live - (12 << 20)) // 2))
    if row_tile is None:
        row_tile = max(chunk, (per_buf // row_bytes // chunk) * chunk)
    else:
        row_tile = max(chunk, (int(row_tile) // chunk) * chunk)
    rows_per_core = -(-n // n_cores)
    row_tile = min(row_tile, _round_up(max(rows_per_core, 1), chunk))
    num_chunks = row_tile // chunk
    tiles_per_core = -(-rows_per_core // row_tile)
    n_tiles = n_cores * tiles_per_core
    n_pad = n_tiles * row_tile

    # ---- pad to whole tiles; padded rows use ignore_index (contribute 0 to both sums).
    targets = targets.astype(jnp.int32)
    if n_pad > n:
        logits = jnp.pad(logits, ((0, n_pad - n), (0, 0)))
        targets = jnp.pad(targets, (0, n_pad - n), constant_values=ignore_index)
    # Lane-dense targets layout: one contiguous DMA burst per block, ~row_tile*4 B VMEM.
    targets3d = targets.reshape(n_tiles, num_chunks, chunk)

    use_alpha = alpha is not None
    args = [logits, targets3d]
    in_specs = [
        pl.BlockSpec((row_tile, c), lambda co, i: (co * tiles_per_core + i, 0)),
        pl.BlockSpec((1, num_chunks, chunk),
                     lambda co, i: (co * tiles_per_core + i, 0, 0)),
    ]
    if use_alpha:
        args.append(jnp.asarray(alpha, jnp.float32).reshape(1, c))
        in_specs.append(pl.BlockSpec((1, c), lambda co, i: (0, 0)))

    # ---- VMEM limit: estimate + headroom, clamped to ~3/4 of physical VMEM.
    est_vmem = (2 * row_tile * lane_c * in_itemsize     # double-buffered logits blocks
                + 2 * 8 * row_tile * 4                  # targets blocks (sublane-padded)
                + (2 * 8 * lane_c * 4 if use_alpha else 0)
                + chunk_live                            # per-chunk f32 intermediates
                + (2 << 20))
    vmem_limit = int(min(vmem_cap, max(32 << 20, est_vmem + (4 << 20))))

    kernel = functools.partial(
        _focal_ls_kernel,
        gamma=float(gamma), ignore_index=int(ignore_index),
        label_smoothing=float(label_smoothing), use_alpha=use_alpha,
        chunk=chunk, num_chunks=num_chunks)

    # Default "parallel" is known-good everywhere; core_parallel=True forces the explicit
    # per-TensorCore split (verify on v7x that the 2-TC sharding actually engages).
    sem0 = pltpu.CORE_PARALLEL if (core_parallel and n_cores > 1) else "parallel"

    loss_part, mask_part = pl.pallas_call(
        kernel,
        out_shape=(jax.ShapeDtypeStruct((n_cores, 1, 1), jnp.float32),
                   jax.ShapeDtypeStruct((n_cores, 1, 1), jnp.float32)),
        grid_spec=pltpu.PrefetchScalarGridSpec(
            num_scalar_prefetch=0,
            grid=(n_cores, tiles_per_core),
            in_specs=in_specs,
            out_specs=[pl.BlockSpec((1, 1, 1), lambda co, i: (co, 0, 0)),
                       pl.BlockSpec((1, 1, 1), lambda co, i: (co, 0, 0))],
        ),
        compiler_params=pltpu.CompilerParams(
            dimension_semantics=(sem0, "arbitrary"),
            vmem_limit_bytes=vmem_limit),
    )(*args)

    loss_sum = jnp.sum(loss_part)
    mask_sum = jnp.sum(mask_part)
    return (loss_sum / jnp.maximum(mask_sum, 1e-6)).astype(jnp.float32)


def _reference(logits, targets, alpha=None, *,
               gamma=2.0, ignore_index=-100, label_smoothing=0.1):
    """Pure-JAX reference mirroring the PyTorch forward."""
    n, c = logits.shape
    logits = logits.astype(jnp.float32)
    one_hot = jax.nn.one_hot(jnp.where(targets == ignore_index, -1, targets), c,
                             dtype=jnp.float32)
    valid = (targets != ignore_index)[:, None]
    if label_smoothing > 0:
        one_hot_s = jnp.where(valid, one_hot * (1 - label_smoothing) + label_smoothing / c,
                              one_hot)
    else:
        one_hot_s = one_hot
    log_probs = jax.nn.log_softmax(logits, axis=-1)
    probs = jnp.exp(log_probs)
    tp = jnp.sum(one_hot_s * probs, axis=-1)
    fw = (1.0 - tp) ** gamma
    ce = -jnp.sum(one_hot_s * log_probs, axis=-1)
    fl = fw * ce
    if alpha is not None:
        aw = jnp.sum(one_hot * jnp.asarray(alpha, jnp.float32)[None, :], axis=-1)
        fl = fl * aw
    maskf = valid[:, 0].astype(jnp.float32)
    return jnp.sum(fl * maskf) / jnp.maximum(jnp.sum(maskf), 1e-6)


if __name__ == "__main__":
    key = jax.random.PRNGKey(0)
    k1, k2 = jax.random.split(key)

    # Small shapes; N deliberately not a multiple of any tile to exercise padding.
    N, C = 70, 32
    logits = jax.random.normal(k1, (N, C), jnp.float32)
    targets = jax.random.randint(k2, (N,), 0, C, jnp.int32)
    targets = targets.at[3].set(-100).at[17].set(-100).at[69].set(-100)

    # Deterministic per-class weights (module's optional `alpha`, shape [C]).
    alpha = 0.5 + 0.05 * jnp.arange(C, dtype=jnp.float32)

    # Case 1: alpha + label smoothing (gamma=2 integer-power fast path), auto tiling.
    loss = focal_loss_with_ls(logits, targets, alpha,
                              gamma=2.0, ignore_index=-100, label_smoothing=0.1)
    loss = jax.block_until_ready(loss)
    ref = _reference(logits, targets, alpha,
                     gamma=2.0, ignore_index=-100, label_smoothing=0.1)
    assert jnp.allclose(loss, ref, atol=5e-5, rtol=5e-5), (loss, ref)

    # Case 2: no alpha, no label smoothing, bf16 logits (halved HBM traffic path).
    logits_bf16 = logits.astype(jnp.bfloat16)
    loss2 = focal_loss_with_ls(logits_bf16, targets, None,
                               gamma=2.0, ignore_index=-100, label_smoothing=0.0)
    loss2 = jax.block_until_ready(loss2)
    ref2 = _reference(logits_bf16.astype(jnp.float32), targets, None,
                      gamma=2.0, ignore_index=-100, label_smoothing=0.0)
    assert jnp.allclose(loss2, ref2, atol=5e-5, rtol=5e-5), (loss2, ref2)

    # Case 3: forced small tiles to exercise the multi-tile / multi-chunk accumulation
    # path, the padding path, and the non-integer-gamma power path.
    loss3 = focal_loss_with_ls(logits, targets, alpha,
                               gamma=1.5, ignore_index=-100, label_smoothing=0.05,
                               row_tile=32, chunk_rows=16)
    loss3 = jax.block_until_ready(loss3)
    ref3 = _reference(logits, targets, alpha,
                      gamma=1.5, ignore_index=-100, label_smoothing=0.05)
    assert jnp.allclose(loss3, ref3, atol=1e-4, rtol=1e-4), (loss3, ref3)

    print("KERNEL_OK")
</pallas_src>

<mosaic_0001>
module attributes {stable_mosaic.version = 11 : i64} {
  func.func @_focal_ls_kernel(%arg0: i32, %arg1: i32, %arg2: memref<512x32xf32, #tpu.memory_space<vmem>>, %arg3: memref<1x1x512xi32, #tpu.memory_space<vmem>>, %arg4: memref<1x32xf32, #tpu.memory_space<vmem>>, %arg5: memref<1x1x1xf32, #tpu.memory_space<vmem>>, %arg6: memref<1x1x1xf32, #tpu.memory_space<vmem>>) attributes {dimension_semantics = [#tpu.dimension_semantics<parallel>, #tpu.dimension_semantics<arbitrary>], iteration_bounds = array<i64: 1, 1>, scalar_prefetch = 0 : i64, scratch_operands = 0 : i64, tpu.core_type = #tpu.core_type<tc>, window_params = [{transform_indices = @transform_0, window_bounds = array<i64: 512, 32>}, {transform_indices = @transform_1, window_bounds = array<i64: 1, 1, 512>}, {pipeline_mode = #tpu.pipeline_mode<synchronous>, transform_indices = @transform_2, window_bounds = array<i64: 1, 32>}, {transform_indices = @transform_3, window_bounds = array<i64: 1, 1, 1>}, {transform_indices = @transform_4, window_bounds = array<i64: 1, 1, 1>}]} {
    %c0_i32 = arith.constant 0 : i32
    %0 = arith.cmpi eq, %arg1, %c0_i32 : i32
    %1 = arith.extui %0 : i1 to i32
    %c0_i32_0 = arith.constant 0 : i32
    %2 = arith.cmpi ne, %1, %c0_i32_0 : i32
    scf.if %2 {
      %cst_37 = arith.constant 0.000000e+00 : f32
      %85 = vector.broadcast %cst_37 : f32 to vector<1x1x1xf32>
      %c0_38 = arith.constant 0 : index
      %c0_39 = arith.constant 0 : index
      %c0_40 = arith.constant 0 : index
      %86 = vector.load %arg5[%c0_38, %c0_39, %c0_40] : memref<1x1x1xf32, #tpu.memory_space<vmem>>, vector<1x1x1xf32>
      tpu.vector_store %arg5[%c0_38, %c0_39, %c0_40], %85 {strides = array<i32>} : memref<1x1x1xf32, #tpu.memory_space<vmem>>, vector<1x1x1xf32>,
      %cst_41 = arith.constant 0.000000e+00 : f32
      %87 = vector.broadcast %cst_41 : f32 to vector<1x1x1xf32>
      %c0_42 = arith.constant 0 : index
      %c0_43 = arith.constant 0 : index
      %c0_44 = arith.constant 0 : index
      %88 = vector.load %arg6[%c0_42, %c0_43, %c0_44] : memref<1x1x1xf32, #tpu.memory_space<vmem>>, vector<1x1x1xf32>
      tpu.vector_store %arg6[%c0_42, %c0_43, %c0_44], %87 {strides = array<i32>} : memref<1x1x1xf32, #tpu.memory_space<vmem>>, vector<1x1x1xf32>,
    } else {
    }
    %c0 = arith.constant 0 : index
    %c0_1 = arith.constant 0 : index
    %3 = vector.load %arg4[%c0, %c0_1] : memref<1x32xf32, #tpu.memory_space<vmem>>, vector<1x32xf32>
    %cst = arith.constant 0.000000e+00 : f32
    %cst_2 = arith.constant 0.000000e+00 : f32
    %c0_i32_3 = arith.constant 0 : i32
    %c512_i32 = arith.constant 512 : i32
    %4 = arith.muli %c0_i32_3, %c512_i32 : i32
    %5 = tpu.assume_multiple %4, 512 : i32
    %6 = arith.index_cast %5 : i32 to index
    %c0_4 = arith.constant 0 : index
    %7 = vector.load %arg2[%6, %c0_4] : memref<512x32xf32, #tpu.memory_space<vmem>>, vector<512x32xf32>
    %c0_5 = arith.constant 0 : index
    %8 = arith.index_cast %c0_i32_3 : i32 to index
    %c0_6 = arith.constant 0 : index
    %9 = vector.load %arg3[%c0_5, %8, %c0_6] : memref<1x1x512xi32, #tpu.memory_space<vmem>>, vector<1x1x512xi32>
    %10 = vector.shape_cast %9 : vector<1x1x512xi32> to vector<1x512xi32>
    %11 = arith.sitofp %10 : vector<1x512xi32> to vector<1x512xf32>
    %12 = tpu.transpose %11, [1, 0] : vector<1x512xf32> -> vector<512x1xf32>
    %13 = tpu.iota {dimensions = array<i32: 1>} : vector<512x32xi32>
    %14 = arith.sitofp %13 : vector<512x32xi32> to vector<512x32xf32>
    %15 = vector.broadcast %12 : vector<512x1xf32> to vector<512x32xf32>
    %16 = arith.cmpf oeq, %14, %15 : vector<512x32xf32>
    %cst_7 = arith.constant dense<0xFF800000> : vector<512xf32>
    %17 = vector.multi_reduction <maximumf>, %7, %cst_7 [1] : vector<512x32xf32> to vector<512xf32>
    %18 = vector.shape_cast %17 : vector<512xf32> to vector<512x1xf32>
    %19 = vector.broadcast %18 : vector<512x1xf32> to vector<512x32xf32>
    %20 = arith.subf %7, %19 : vector<512x32xf32>
    %21 = math.exp %20 : vector<512x32xf32>
    %cst_8 = arith.constant dense<0.000000e+00> : vector<512xf32>
    %22 = vector.multi_reduction <add>, %21, %cst_8 [1] : vector<512x32xf32> to vector<512xf32>
    %23 = vector.shape_cast %22 : vector<512xf32> to vector<512x1xf32>
    %24 = math.log %23 : vector<512x1xf32>
    %cst_9 = arith.constant 0.000000e+00 : f32
    %25 = vector.broadcast %cst_9 : f32 to vector<512x32xf32>
    %26 = arith.select %16, %7, %25 : vector<512x32xi1>, vector<512x32xf32>
    %cst_10 = arith.constant dense<0.000000e+00> : vector<512xf32>
    %27 = vector.multi_reduction <add>, %26, %cst_10 [1] : vector<512x32xf32> to vector<512xf32>
    %28 = vector.shape_cast %27 : vector<512xf32> to vector<512x1xf32>
    %29 = arith.subf %28, %18 : vector<512x1xf32>
    %30 = arith.subf %29, %24 : vector<512x1xf32>
    %31 = math.exp %30 : vector<512x1xf32>
    %cst_11 = arith.constant dense<0.000000e+00> : vector<512xf32>
    %32 = vector.multi_reduction <add>, %7, %cst_11 [1] : vector<512x32xf32> to vector<512xf32>
    %33 = vector.shape_cast %32 : vector<512xf32> to vector<512x1xf32>
    %34 = arith.addf %18, %24 : vector<512x1xf32>
    %cst_12 = arith.constant 3.200000e+01 : f32
    %35 = vector.broadcast %cst_12 : f32 to vector<512x1xf32>
    %36 = arith.mulf %35, %34 : vector<512x1xf32>
    %37 = arith.subf %33, %36 : vector<512x1xf32>
    %cst_13 = arith.constant 0.899999976 : f32
    %38 = vector.broadcast %cst_13 : f32 to vector<512x1xf32>
    %39 = arith.mulf %38, %31 : vector<512x1xf32>
    %cst_14 = arith.constant 3.125000e-03 : f32
    %40 = vector.broadcast %cst_14 : f32 to vector<512x1xf32>
    %41 = arith.addf %39, %40 : vector<512x1xf32>
    %cst_15 = arith.constant -0.899999976 : f32
    %42 = vector.broadcast %cst_15 : f32 to vector<512x1xf32>
    %43 = arith.mulf %42, %30 : vector<512x1xf32>
    %cst_16 = arith.constant 3.125000e-03 : f32
    %44 = vector.broadcast %cst_16 : f32 to vector<512x1xf32>
    %45 = arith.mulf %44, %37 : vector<512x1xf32>
    %46 = arith.subf %43, %45 : vector<512x1xf32>
    %cst_17 = arith.constant 1.000000e+00 : f32
    %47 = vector.broadcast %cst_17 : f32 to vector<512x1xf32>
    %48 = arith.subf %47, %41 : vector<512x1xf32>
    %cst_18 = arith.constant 0.000000e+00 : f32
    %49 = vector.broadcast %cst_18 : f32 to vector<512x1xf32>
    %50 = arith.maximumf %48, %49 : vector<512x1xf32>
    %cst_19 = arith.constant 1.000000e+00 : f32
    %51 = vector.broadcast %cst_19 : f32 to vector<512x1xf32>
    %52 = arith.mulf %51, %50 : vector<512x1xf32>
    %53 = arith.mulf %52, %50 : vector<512x1xf32>
    %54 = arith.mulf %53, %46 : vector<512x1xf32>
    %cst_20 = arith.constant 0.000000e+00 : f32
    %55 = vector.shape_cast %3 : vector<1x32xf32> to vector<1x32xf32>
    %56 = vector.broadcast %55 : vector<1x32xf32> to vector<512x32xf32>
    %57 = vector.broadcast %cst_20 : f32 to vector<512x32xf32>
    %58 = arith.select %16, %56, %57 : vector<512x32xi1>, vector<512x32xf32>
    %cst_21 = arith.constant dense<0.000000e+00> : vector<512xf32>
    %59 = vector.multi_reduction <add>, %58, %cst_21 [1] : vector<512x32xf32> to vector<512xf32>
    %60 = vector.shape_cast %59 : vector<512xf32> to vector<512x1xf32>
    %61 = arith.mulf %54, %60 : vector<512x1xf32>
    %cst_22 = arith.constant -1.000000e+02 : f32
    %62 = vector.broadcast %cst_22 : f32 to vector<512x1xf32>
    %63 = arith.cmpf one, %12, %62 : vector<512x1xf32>
    %64 = arith.extui %63 : vector<512x1xi1> to vector<512x1xi32>
    %65 = arith.sitofp %64 : vector<512x1xi32> to vector<512x1xf32>
    %66 = arith.mulf %61, %65 : vector<512x1xf32>
    %67 = vector.shape_cast %66 : vector<512x1xf32> to vector<1x512x1xf32>
    %cst_23 = arith.constant dense<0.000000e+00> : vector<1xf32>
    %68 = vector.multi_reduction <add>, %67, %cst_23 [1, 2] : vector<1x512x1xf32> to vector<1xf32>
    %69 = vector.shape_cast %68 : vector<1xf32> to vector<1x1x1xf32>
    %70 = vector.extract %69[0, 0, 0] : f32 from vector<1x1x1xf32>
    %71 = arith.addf %cst, %70 : f32
    %72 = vector.shape_cast %65 : vector<512x1xf32> to vector<1x512x1xf32>
    %cst_24 = arith.constant dense<0.000000e+00> : vector<1xf32>
    %73 = vector.multi_reduction <add>, %72, %cst_24 [1, 2] : vector<1x512x1xf32> to vector<1xf32>
    %74 = vector.shape_cast %73 : vector<1xf32> to vector<1x1x1xf32>
    %75 = vector.extract %74[0, 0, 0] : f32 from vector<1x1x1xf32>
    %76 = arith.addf %cst_2, %75 : f32
    %c1_i32 = arith.constant 1 : i32
    %c0_25 = arith.constant 0 : index
    %c0_26 = arith.constant 0 : index
    %c0_27 = arith.constant 0 : index
    %77 = vector.load %arg5[%c0_25, %c0_26, %c0_27] : memref<1x1x1xf32, #tpu.memory_space<vmem>>, vector<1x1x1xf32>
    %78 = vector.broadcast %71 : f32 to vector<1x1x1xf32>
    %79 = arith.addf %77, %78 : vector<1x1x1xf32>
    %c0_28 = arith.constant 0 : index
    %c0_29 = arith.constant 0 : index
    %c0_30 = arith.constant 0 : index
    %80 = vector.load %arg5[%c0_28, %c0_29, %c0_30] : memref<1x1x1xf32, #tpu.memory_space<vmem>>, vector<1x1x1xf32>
    tpu.vector_store %arg5[%c0_28, %c0_29, %c0_30], %79 {strides = array<i32>} : memref<1x1x1xf32, #tpu.memory_space<vmem>>, vector<1x1x1xf32>,
    %c0_31 = arith.constant 0 : index
    %c0_32 = arith.constant 0 : index
    %c0_33 = arith.constant 0 : index
    %81 = vector.load %arg6[%c0_31, %c0_32, %c0_33] : memref<1x1x1xf32, #tpu.memory_space<vmem>>, vector<1x1x1xf32>
    %82 = vector.broadcast %76 : f32 to vector<1x1x1xf32>
    %83 = arith.addf %81, %82 : vector<1x1x1xf32>
    %c0_34 = arith.constant 0 : index
    %c0_35 = arith.constant 0 : index
    %c0_36 = arith.constant 0 : index
    %84 = vector.load %arg6[%c0_34, %c0_35, %c0_36] : memref<1x1x1xf32, #tpu.memory_space<vmem>>, vector<1x1x1xf32>
    tpu.vector_store %arg6[%c0_34, %c0_35, %c0_36], %83 {strides = array<i32>} : memref<1x1x1xf32, #tpu.memory_space<vmem>>, vector<1x1x1xf32>,
    return
  }
  func.func @transform_0(%arg0: i32, %arg1: i32) -> (i32, i32) {
    %c1_i32 = arith.constant 1 : i32
    %0 = arith.muli %arg0, %c1_i32 : i32
    %1 = arith.addi %0, %arg1 : i32
    %c0_i32 = arith.constant 0 : i32
    %c0_i32_0 = arith.constant 0 : i32
    return %1, %c0_i32 : i32, i32
  }
  func.func @transform_1(%arg0: i32, %arg1: i32) -> (i32, i32, i32) {
    %c1_i32 = arith.constant 1 : i32
    %0 = arith.muli %arg0, %c1_i32 : i32
    %1 = arith.addi %0, %arg1 : i32
    %c0_i32 = arith.constant 0 : i32
    %c0_i32_0 = arith.constant 0 : i32
    %c0_i32_1 = arith.constant 0 : i32
    return %1, %c0_i32, %c0_i32_0 : i32, i32, i32
  }
  func.func @transform_2(%arg0: i32, %arg1: i32) -> (i32, i32) {
    %c0_i32 = arith.constant 0 : i32
    %c0_i32_0 = arith.constant 0 : i32
    %c0_i32_1 = arith.constant 0 : i32
    return %c0_i32, %c0_i32_0 : i32, i32
  }
  func.func @transform_3(%arg0: i32, %arg1: i32) -> (i32, i32, i32) {
    %c0_i32 = arith.constant 0 : i32
    %c0_i32_0 = arith.constant 0 : i32
    %c0_i32_1 = arith.constant 0 : i32
    return %arg0, %c0_i32, %c0_i32_0 : i32, i32, i32
  }
  func.func @transform_4(%arg0: i32, %arg1: i32) -> (i32, i32, i32) {
    %c0_i32 = arith.constant 0 : i32
    %c0_i32_0 = arith.constant 0 : i32
    %c0_i32_1 = arith.constant 0 : i32
    return %arg0, %c0_i32, %c0_i32_0 : i32, i32, i32
  }
}

</mosaic_0001>

<llo_original>
// kernel: tpu_custom_call.1
$region0: #{tpu_custom_call.1}
  #allocation0 [shape = 'u32[]', space=smem, size = 0x4, offset = 0x4, fixed_abs, tag = 'smem constant byte address 0x4 - core index']
  #allocation1 [shape = 'u32[144,128]{1,0:T(1,128)}', space=vmem, size = 0x12000, scoped, tag = 'internal scratch']
  %s0 = inlined_call_operand.vmem [shape: f32[512,32], index: 0, kind: input, shape index: {}]
  %s1 = inlined_call_operand.vmem [shape: s32[1,1,512], index: 1, kind: input, shape index: {}]
  %s2 = inlined_call_operand.vmem [shape: f32[1,32], index: 2, kind: input, shape index: {}]
  %s3 = inlined_call_operand.hbm [shape: f32[1,1,1], index: 3, kind: output, shape index: {0}]
  %s4 = inlined_call_operand.hbm [shape: f32[1,1,1], index: 4, kind: output, shape index: {1}]
  %5 = xla_tuple %s3, %s4
  %s6 = sld [smem:[#allocation0]]
  $region34: #{tpu_custom_call.1} parent=0
    _
  %s8 = ssub.s32 1, %s6
  %s9 = scalar_select 0, %s8, %s6
  $region1: #{tpu_custom_call.1} parent=0
    #allocation2 [shape = 'u8[512]{0}', space=vmem, size = 0x400, scoped, tag = 'output window, operand 0, single buffered']
    #allocation3 [shape = 's32[1]{0}', space=sflag, size = 0x4, scoped, tag = 'scoped memory for tpu_custom_call.1']
    #allocation4 [shape = 'u8[512]{0}', space=vmem, size = 0x400, scoped, tag = 'output window, operand 1, single buffered']
    #allocation5 [shape = 's32[1]{0}', space=sflag, size = 0x4, scoped, tag = 'scoped memory for tpu_custom_call.1']
    %10 = vsyncpa [#allocation3], 0
    %11 = vsyncpa [#allocation5], 0
    // Predicated region
    $region2: #{tpu_custom_call.1} parent=1 // pred_check
      _
    $region3: #{tpu_custom_call.1} parent=1 // pred_check_branch
      %13 = sbr.rel (0) target = $region5
    $region4: #{tpu_custom_call.1} parent=1 // pred_region
      %s14 = sadd.s32 0, 0
      %s15 = smul.u32 64, %s14
      %p16 = scmp.lt.s32.totalorder %s15, 63
      %s17 = scalar_select %p16, %s15, 63
      %s18 = smul.addr %s17, 8
      %s19 = scalar_lea.vmem %s0, %s18
      %s20 = sadd.s32 0, 0
      %s21 = smul.u32 64, %s20
    $region5: #{tpu_custom_call.1} parent=1 // pred_fallthru
      _
    // Predicated region
    $region6: #{tpu_custom_call.1} parent=1 // pred_check
      _
    $region7: #{tpu_custom_call.1} parent=1 // pred_check_branch
      %23 = sbr.rel (0) target = $region9
    $region8: #{tpu_custom_call.1} parent=1 // pred_region
      %s24 = sadd.s32 0, 0
      %p25 = scmp.lt.s32.totalorder %s24, 0
      %s26 = scalar_select %p25, %s24, 0
      %s27 = smul.addr %s26, 4
      %s28 = scalar_lea.vmem %s1, %s27
      %s29 = sadd.s32 0, 0
    $region9: #{tpu_custom_call.1} parent=1 // pred_fallthru
      _
    // Predicated region
    $region10: #{tpu_custom_call.1} parent=1 // pred_check
      _
    $region11: #{tpu_custom_call.1} parent=1 // pred_check_branch
      %31 = sbr.rel (0) target = $region13
    $region12: #{tpu_custom_call.1} parent=1 // pred_region
      _
    $region13: #{tpu_custom_call.1} parent=1 // pred_fallthru
      _
    %s32 = sadd.s32 0, 0
    %s33 = smul.u32 64, %s32
    %p34 = scmp.lt.s32.totalorder %s33, 63
    %s35 = scalar_select %p34, %s33, 63
    %s36 = smul.addr %s35, 8
    %s37 = scalar_lea.vmem %s0, %s36
    %s38 = sadd.s32 0, 0
    %p39 = scmp.lt.s32.totalorder %s38, 0
    %s40 = scalar_select %p39, %s38, 0
    %s41 = smul.addr %s40, 4
    %s42 = scalar_lea.vmem %s1, %s41
    %s43 = sadd.s32 0, 0
    %s44 = smul.u32 64, %s43
    %p45 = scmp.lt.s32.totalorder %s44, 63
    %s46 = scalar_select %p45, %s44, 63
    %s47 = smul.addr %s46, 8
    %s48 = scalar_lea.vmem %s0, %s47
    %s49 = sadd.s32 0, 0
    %s50 = smul.u32 64, %s49
    %s51 = sadd.s32 0, 0
    %p52 = scmp.lt.s32.totalorder %s51, 0
    %s53 = scalar_select %p52, %s51, 0
    %s54 = smul.addr %s53, 4
    %s55 = scalar_lea.vmem %s1, %s54
    %s56 = sadd.s32 0, 0
    %p57 = scmp.eq.s32.totalorder 0, 0
    // Predicated region
    $region14: #{tpu_custom_call.1} parent=1 // pred_check
      %p58 = pneg %p57
    $region15: #{tpu_custom_call.1} parent=1 // pred_check_branch
      %60 = sbr.rel (%p58) target = $region17
    $region16: #{tpu_custom_call.1} parent=1 // pred_region
      %vm61 = vcmask 0
      %62 = vst.msk [vmem:[#allocation2] sm:$0x1] %vm61, 0.0
      %63 = vst.msk [vmem:[#allocation4] sm:$0x1] %vm61, 0.0
    $region17: #{tpu_custom_call.1} parent=1 // pred_fallthru
      _
    %v64 = vld [vmem:[%s2] sm:$0x1]
    %v65 = vld [vmem:[%s48] sm:$0xff]
    %v66 = vld [vmem:[%s48 + $0x8] sm:$0xff]
    %v67 = vld [vmem:[%s48 + $0x10] sm:$0xff]
    %v68 = vld [vmem:[%s48 + $0x18] sm:$0xff]
    %v69 = vld [vmem:[%s48 + $0x20] sm:$0xff]
    %v70 = vld [vmem:[%s48 + $0x28] sm:$0xff]
    %v71 = vld [vmem:[%s48 + $0x30] sm:$0xff]
    %v72 = vld [vmem:[%s48 + $0x38] sm:$0xff]
    %v73 = vld [vmem:[%s48 + $0x40] sm:$0xff]
    %v74 = vld [vmem:[%s48 + $0x48] sm:$0xff]
    %v75 = vld [vmem:[%s48 + $0x50] sm:$0xff]
    %v76 = vld [vmem:[%s48 + $0x58] sm:$0xff]
    %v77 = vld [vmem:[%s48 + $0x60] sm:$0xff]
    %v78 = vld [vmem:[%s48 + $0x68] sm:$0xff]
    %v79 = vld [vmem:[%s48 + $0x70] sm:$0xff]
    %v80 = vld [vmem:[%s48 + $0x78] sm:$0xff]
    %v81 = vld [vmem:[%s48 + $0x80] sm:$0xff]
    %v82 = vld [vmem:[%s48 + $0x88] sm:$0xff]
    %v83 = vld [vmem:[%s48 + $0x90] sm:$0xff]
    %v84 = vld [vmem:[%s48 + $0x98] sm:$0xff]
    %v85 = vld [vmem:[%s48 + $0xa0] sm:$0xff]
    %v86 = vld [vmem:[%s48 + $0xa8] sm:$0xff]
    %v87 = vld [vmem:[%s48 + $0xb0] sm:$0xff]
    %v88 = vld [vmem:[%s48 + $0xb8] sm:$0xff]
    %v89 = vld [vmem:[%s48 + $0xc0] sm:$0xff]
    %v90 = vld [vmem:[%s48 + $0xc8] sm:$0xff]
    %v91 = vld [vmem:[%s48 + $0xd0] sm:$0xff]
    %v92 = vld [vmem:[%s48 + $0xd8] sm:$0xff]
    %v93 = vld [vmem:[%s48 + $0xe0] sm:$0xff]
    %v94 = vld [vmem:[%s48 + $0xe8] sm:$0xff]
    %v95 = vld [vmem:[%s48 + $0xf0] sm:$0xff]
    %v96 = vld [vmem:[%s48 + $0xf8] sm:$0xff]
    %v97 = vld [vmem:[%s48 + $0x100] sm:$0xff]
    %v98 = vld [vmem:[%s48 + $0x108] sm:$0xff]
    %v99 = vld [vmem:[%s48 + $0x110] sm:$0xff]
    %v100 = vld [vmem:[%s48 + $0x118] sm:$0xff]
    %v101 = vld [vmem:[%s48 + $0x120] sm:$0xff]
    %v102 = vld [vmem:[%s48 + $0x128] sm:$0xff]
    %v103 = vld [vmem:[%s48 + $0x130] sm:$0xff]
    %v104 = vld [vmem:[%s48 + $0x138] sm:$0xff]
    %v105 = vld [vmem:[%s48 + $0x140] sm:$0xff]
    %v106 = vld [vmem:[%s48 + $0x148] sm:$0xff]
    %v107 = vld [vmem:[%s48 + $0x150] sm:$0xff]
    %v108 = vld [vmem:[%s48 + $0x158] sm:$0xff]
    %v109 = vld [vmem:[%s48 + $0x160] sm:$0xff]
    %v110 = vld [vmem:[%s48 + $0x168] sm:$0xff]
    %v111 = vld [vmem:[%s48 + $0x170] sm:$0xff]
    %v112 = vld [vmem:[%s48 + $0x178] sm:$0xff]
    %v113 = vld [vmem:[%s48 + $0x180] sm:$0xff]
    %v114 = vld [vmem:[%s48 + $0x188] sm:$0xff]
    %v115 = vld [vmem:[%s48 + $0x190] sm:$0xff]
    %v116 = vld [vmem:[%s48 + $0x198] sm:$0xff]
    %v117 = vld [vmem:[%s48 + $0x1a0] sm:$0xff]
    %v118 = vld [vmem:[%s48 + $0x1a8] sm:$0xff]
    %v119 = vld [vmem:[%s48 + $0x1b0] sm:$0xff]
    %v120 = vld [vmem:[%s48 + $0x1b8] sm:$0xff]
    %v121 = vld [vmem:[%s48 + $0x1c0] sm:$0xff]
    %v122 = vld [vmem:[%s48 + $0x1c8] sm:$0xff]
    %v123 = vld [vmem:[%s48 + $0x1d0] sm:$0xff]
    %v124 = vld [vmem:[%s48 + $0x1d8] sm:$0xff]
    %v125 = vld [vmem:[%s48 + $0x1e0] sm:$0xff]
    %v126 = vld [vmem:[%s48 + $0x1e8] sm:$0xff]
    %v127 = vld [vmem:[%s48 + $0x1f0] sm:$0xff]
    %v128 = vld [vmem:[%s48 + $0x1f8] sm:$0xff]
    %v129 = vld [vmem:[%s55] sm:$0xf]
    %v130 = vcvt.s32.f32 %v129
    %v132 = vlaneseq
    %v133 = vshrl.u32 %v132, 7
    %v134 = vsub.s32 0, %v133
    %v135 = vrot.slane %v130, %v134
    %v136 = vlaneseq
    %v137 = vshrl.u32 %v136, 7
    %v138 = vsub.s32 1, %v137
    %v139 = vrot.slane %v130, %v138
    %v140 = vlaneseq
    %v141 = vshrl.u32 %v140, 7
    %v142 = vsub.s32 2, %v141
    %v143 = vrot.slane %v130, %v142
    %v144 = vlaneseq
    %v145 = vshrl.u32 %v144, 7
    %v146 = vsub.s32 3, %v145
    %v147 = vrot.slane %v130, %v146
    %152 = vxpose.xlu0.b32.start [1/16] %v135, 128
    %153 = vxpose.xlu0.b32.cont [2/16] 0.0, 128
    %154 = vxpose.xlu0.b32.cont [3/16] 0.0, 128
    %155 = vxpose.xlu0.b32.cont [4/16] 0.0, 128
    %156 = vxpose.xlu0.b32.cont [5/16] 0.0, 128
    %157 = vxpose.xlu0.b32.cont [6/16] 0.0, 128
    %158 = vxpose.xlu0.b32.cont [7/16] 0.0, 128
    %159 = vxpose.xlu0.b32.cont [8/16] 0.0, 128
    %160 = vxpose.xlu0.b32.cont [9/16] 0.0, 128
    %161 = vxpose.xlu0.b32.cont [10/16] 0.0, 128
    %162 = vxpose.xlu0.b32.cont [11/16] 0.0, 128
    %163 = vxpose.xlu0.b32.cont [12/16] 0.0, 128
    %164 = vxpose.xlu0.b32.cont [13/16] 0.0, 128
    %165 = vxpose.xlu0.b32.cont [14/16] 0.0, 128
    %166 = vxpose.xlu0.b32.cont [15/16] 0.0, 128
    %167 = vxpose.xlu0.b32.end [16/16] 0.0, 128
    %v168 = vpop.trf.xlu0
    %v169 = vpop.trf.xlu0
    %v170 = vpop.trf.xlu0
    %v171 = vpop.trf.xlu0
    %v172 = vpop.trf.xlu0
    %v173 = vpop.trf.xlu0
    %v174 = vpop.trf.xlu0
    %v175 = vpop.trf.xlu0
    %v176 = vpop.trf.xlu0
    %v177 = vpop.trf.xlu0
    %v178 = vpop.trf.xlu0
    %v179 = vpop.trf.xlu0
    %v180 = vpop.trf.xlu0
    %v181 = vpop.trf.xlu0
    %v182 = vpop.trf.xlu0
    %v183 = vpop.trf.xlu0
    %184 = vxpose.xlu0.b32.start [1/16] %v139, 128
    %185 = vxpose.xlu0.b32.cont [2/16] 0.0, 128
    %186 = vxpose.xlu0.b32.cont [3/16] 0.0, 128
    %187 = vxpose.xlu0.b32.cont [4/16] 0.0, 128
    %188 = vxpose.xlu0.b32.cont [5/16] 0.0, 128
    %189 = vxpose.xlu0.b32.cont [6/16] 0.0, 128
    %190 = vxpose.xlu0.b32.cont [7/16] 0.0, 128
    %191 = vxpose.xlu0.b32.cont [8/16] 0.0, 128
    %192 = vxpose.xlu0.b32.cont [9/16] 0.0, 128
    %193 = vxpose.xlu0.b32.cont [10/16] 0.0, 128
    %194 = vxpose.xlu0.b32.cont [11/16] 0.0, 128
    %195 = vxpose.xlu0.b32.cont [12/16] 0.0, 128
    %196 = vxpose.xlu0.b32.cont [13/16] 0.0, 128
    %197 = vxpose.xlu0.b32.cont [14/16] 0.0, 128
    %198 = vxpose.xlu0.b32.cont [15/16] 0.0, 128
    %199 = vxpose.xlu0.b32.end [16/16] 0.0, 128
    %v200 = vpop.trf.xlu0
    %v201 = vpop.trf.xlu0
    %v202 = vpop.trf.xlu0
    %v203 = vpop.trf.xlu0
    %v204 = vpop.trf.xlu0
    %v205 = vpop.trf.xlu0
    %v206 = vpop.trf.xlu0
    %v207 = vpop.trf.xlu0
    %v208 = vpop.trf.xlu0
    %v209 = vpop.trf.xlu0
    %v210 = vpop.trf.xlu0
    %v211 = vpop.trf.xlu0
    %v212 = vpop.trf.xlu0
    %v213 = vpop.trf.xlu0
    %v214 = vpop.trf.xlu0
    %v215 = vpop.trf.xlu0
    %216 = vxpose.xlu0.b32.start [1/16] %v143, 128
    %217 = vxpose.xlu0.b32.cont [2/16] 0.0, 128
    %218 = vxpose.xlu0.b32.cont [3/16] 0.0, 128
    %219 = vxpose.xlu0.b32.cont [4/16] 0.0, 128
    %220 = vxpose.xlu0.b32.cont [5/16] 0.0, 128
    %221 = vxpose.xlu0.b32.cont [6/16] 0.0, 128
    %222 = vxpose.xlu0.b32.cont [7/16] 0.0, 128
    %223 = vxpose.xlu0.b32.cont [8/16] 0.0, 128
    %224 = vxpose.xlu0.b32.cont [9/16] 0.0, 128
    %225 = vxpose.xlu0.b32.cont [10/16] 0.0, 128
    %226 = vxpose.xlu0.b32.cont [11/16] 0.0, 128
    %227 = vxpose.xlu0.b32.cont [12/16] 0.0, 128
    %228 = vxpose.xlu0.b32.cont [13/16] 0.0, 128
    %229 = vxpose.xlu0.b32.cont [14/16] 0.0, 128
    %230 = vxpose.xlu0.b32.cont [15/16] 0.0, 128
    %231 = vxpose.xlu0.b32.end [16/16] 0.0, 128
    %v232 = vpop.trf.xlu0
    %v233 = vpop.trf.xlu0
    %v234 = vpop.trf.xlu0
    %v235 = vpop.trf.xlu0
    %v236 = vpop.trf.xlu0
    %v237 = vpop.trf.xlu0
    %v238 = vpop.trf.xlu0
    %v239 = vpop.trf.xlu0
    %v240 = vpop.trf.xlu0
    %v241 = vpop.trf.xlu0
    %v242 = vpop.trf.xlu0
    %v243 = vpop.trf.xlu0
    %v244 = vpop.trf.xlu0
    %v245 = vpop.trf.xlu0
    %v246 = vpop.trf.xlu0
    %v247 = vpop.trf.xlu0
    %248 = vxpose.xlu0.b32.start [1/16] %v147, 128
    %249 = vxpose.xlu0.b32.cont [2/16] 0.0, 128
    %250 = vxpose.xlu0.b32.cont [3/16] 0.0, 128
    %251 = vxpose.xlu0.b32.cont [4/16] 0.0, 128
    %252 = vxpose.xlu0.b32.cont [5/16] 0.0, 128
    %253 = vxpose.xlu0.b32.cont [6/16] 0.0, 128
    %254 = vxpose.xlu0.b32.cont [7/16] 0.0, 128
    %255 = vxpose.xlu0.b32.cont [8/16] 0.0, 128
    %256 = vxpose.xlu0.b32.cont [9/16] 0.0, 128
    %257 = vxpose.xlu0.b32.cont [10/16] 0.0, 128
    %258 = vxpose.xlu0.b32.cont [11/16] 0.0, 128
    %259 = vxpose.xlu0.b32.cont [12/16] 0.0, 128
    %260 = vxpose.xlu0.b32.cont [13/16] 0.0, 128
    %261 = vxpose.xlu0.b32.cont [14/16] 0.0, 128
    %262 = vxpose.xlu0.b32.cont [15/16] 0.0, 128
    %263 = vxpose.xlu0.b32.end [16/16] 0.0, 128
    %v264 = vpop.trf.xlu0
    %v265 = vpop.trf.xlu0
    %v266 = vpop.trf.xlu0
    %v267 = vpop.trf.xlu0
    %v268 = vpop.trf.xlu0
    %v269 = vpop.trf.xlu0
    %v270 = vpop.trf.xlu0
    %v271 = vpop.trf.xlu0
    %v272 = vpop.trf.xlu0
    %v273 = vpop.trf.xlu0
    %v274 = vpop.trf.xlu0
    %v275 = vpop.trf.xlu0
    %v276 = vpop.trf.xlu0
    %v277 = vpop.trf.xlu0
    %v278 = vpop.trf.xlu0
    %v279 = vpop.trf.xlu0
    %v280 = vlaneseq
    %v281 = vand.u32 %v280, 127
    %v282 = vcvt.s32.f32 %v281
    %284 = vset.pattern.permute.xlu0 0
    %285 = vperm.xlu0 %284, %v168
    %v286 = vpop.permute.xlu0 %285
    %289 = vset.pattern.permute.xlu0 0
    %290 = vperm.xlu0 %289, %v169
    %v291 = vpop.permute.xlu0 %290
    %294 = vset.pattern.permute.xlu0 0
    %295 = vperm.xlu0 %294, %v170
    %v296 = vpop.permute.xlu0 %295
    %299 = vset.pattern.permute.xlu0 0
    %300 = vperm.xlu0 %299, %v171
    %v301 = vpop.permute.xlu0 %300
    %304 = vset.pattern.permute.xlu0 0
    %305 = vperm.xlu0 %304, %v172
    %v306 = vpop.permute.xlu0 %305
    %309 = vset.pattern.permute.xlu0 0
    %310 = vperm.xlu0 %309, %v173
    %v311 = vpop.permute.xlu0 %310
    %314 = vset.pattern.permute.xlu0 0
    %315 = vperm.xlu0 %314, %v174
    %v316 = vpop.permute.xlu0 %315
    %319 = vset.pattern.permute.xlu0 0
    %320 = vperm.xlu0 %319, %v175
    %v321 = vpop.permute.xlu0 %320
    %324 = vset.pattern.permute.xlu0 0
    %325 = vperm.xlu0 %324, %v176
    %v326 = vpop.permute.xlu0 %325
    %329 = vset.pattern.permute.xlu0 0
    %330 = vperm.xlu0 %329, %v177
    %v331 = vpop.permute.xlu0 %330
    %334 = vset.pattern.permute.xlu0 0
    %335 = vperm.xlu0 %334, %v178
    %v336 = vpop.permute.xlu0 %335
    %339 = vset.pattern.permute.xlu0 0
    %340 = vperm.xlu0 %339, %v179
    %v341 = vpop.permute.xlu0 %340
    %344 = vset.pattern.permute.xlu0 0
    %345 = vperm.xlu0 %344, %v180
    %v346 = vpop.permute.xlu0 %345
    %349 = vset.pattern.permute.xlu0 0
    %350 = vperm.xlu0 %349, %v181
    %v351 = vpop.permute.xlu0 %350
    %354 = vset.pattern.permute.xlu0 0
    %355 = vperm.xlu0 %354, %v182
    %v356 = vpop.permute.xlu0 %355
    %359 = vset.pattern.permute.xlu0 0
    %360 = vperm.xlu0 %359, %v183
    %v361 = vpop.permute.xlu0 %360
    %364 = vset.pattern.permute.xlu0 0
    %365 = vperm.xlu0 %364, %v200
    %v366 = vpop.permute.xlu0 %365
    %369 = vset.pattern.permute.xlu0 0
    %370 = vperm.xlu0 %369, %v201
    %v371 = vpop.permute.xlu0 %370
    %374 = vset.pattern.permute.xlu0 0
    %375 = vperm.xlu0 %374, %v202
    %v376 = vpop.permute.xlu0 %375
    %379 = vset.pattern.permute.xlu0 0
    %380 = vperm.xlu0 %379, %v203
    %v381 = vpop.permute.xlu0 %380
    %384 = vset.pattern.permute.xlu0 0
    %385 = vperm.xlu0 %384, %v204
    %v386 = vpop.permute.xlu0 %385
    %389 = vset.pattern.permute.xlu0 0
    %390 = vperm.xlu0 %389, %v205
    %v391 = vpop.permute.xlu0 %390
    %394 = vset.pattern.permute.xlu0 0
    %395 = vperm.xlu0 %394, %v206
    %v396 = vpop.permute.xlu0 %395
    %399 = vset.pattern.permute.xlu0 0
    %400 = vperm.xlu0 %399, %v207
    %v401 = vpop.permute.xlu0 %400
    %404 = vset.pattern.permute.xlu0 0
    %405 = vperm.xlu0 %404, %v208
    %v406 = vpop.permute.xlu0 %405
    %409 = vset.pattern.permute.xlu0 0
    %410 = vperm.xlu0 %409, %v209
    %v411 = vpop.permute.xlu0 %410
    %414 = vset.pattern.permute.xlu0 0
    %415 = vperm.xlu0 %414, %v210
    %v416 = vpop.permute.xlu0 %415
    %419 = vset.pattern.permute.xlu0 0
    %420 = vperm.xlu0 %419, %v211
    %v421 = vpop.permute.xlu0 %420
    %424 = vset.pattern.permute.xlu0 0
    %425 = vperm.xlu0 %424, %v212
    %v426 = vpop.permute.xlu0 %425
    %429 = vset.pattern.permute.xlu0 0
    %430 = vperm.xlu0 %429, %v213
    %v431 = vpop.permute.xlu0 %430
    %434 = vset.pattern.permute.xlu0 0
    %435 = vperm.xlu0 %434, %v214
    %v436 = vpop.permute.xlu0 %435
    %439 = vset.pattern.permute.xlu0 0
    %440 = vperm.xlu0 %439, %v215
    %v441 = vpop.permute.xlu0 %440
    %444 = vset.pattern.permute.xlu0 0
    %445 = vperm.xlu0 %444, %v232
    %v446 = vpop.permute.xlu0 %445
    %449 = vset.pattern.permute.xlu0 0
    %450 = vperm.xlu0 %449, %v233
    %v451 = vpop.permute.xlu0 %450
    %454 = vset.pattern.permute.xlu0 0
    %455 = vperm.xlu0 %454, %v234
    %v456 = vpop.permute.xlu0 %455
    %459 = vset.pattern.permute.xlu0 0
    %460 = vperm.xlu0 %459, %v235
    %v461 = vpop.permute.xlu0 %460
    %464 = vset.pattern.permute.xlu0 0
    %465 = vperm.xlu0 %464, %v236
    %v466 = vpop.permute.xlu0 %465
    %469 = vset.pattern.permute.xlu0 0
    %470 = vperm.xlu0 %469, %v237
    %v471 = vpop.permute.xlu0 %470
    %474 = vset.pattern.permute.xlu0 0
    %475 = vperm.xlu0 %474, %v238
    %v476 = vpop.permute.xlu0 %475
    %479 = vset.pattern.permute.xlu0 0
    %480 = vperm.xlu0 %479, %v239
    %v481 = vpop.permute.xlu0 %480
    %484 = vset.pattern.permute.xlu0 0
    %485 = vperm.xlu0 %484, %v240
    %v486 = vpop.permute.xlu0 %485
    %489 = vset.pattern.permute.xlu0 0
    %490 = vperm.xlu0 %489, %v241
    %v491 = vpop.permute.xlu0 %490
    %494 = vset.pattern.permute.xlu0 0
    %495 = vperm.xlu0 %494, %v242
    %v496 = vpop.permute.xlu0 %495
    %499 = vset.pattern.permute.xlu0 0
    %500 = vperm.xlu0 %499, %v243
    %v501 = vpop.permute.xlu0 %500
    %504 = vset.pattern.permute.xlu0 0
    %505 = vperm.xlu0 %504, %v244
    %v506 = vpop.permute.xlu0 %505
    %509 = vset.pattern.permute.xlu0 0
    %510 = vperm.xlu0 %509, %v245
    %v511 = vpop.permute.xlu0 %510
    %514 = vset.pattern.permute.xlu0 0
    %515 = vperm.xlu0 %514, %v246
    %v516 = vpop.permute.xlu0 %515
    %519 = vset.pattern.permute.xlu0 0
    %520 = vperm.xlu0 %519, %v247
    %v521 = vpop.permute.xlu0 %520
    %524 = vset.pattern.permute.xlu0 0
    %525 = vperm.xlu0 %524, %v264
    %v526 = vpop.permute.xlu0 %525
    %529 = vset.pattern.permute.xlu0 0
    %530 = vperm.xlu0 %529, %v265
    %v531 = vpop.permute.xlu0 %530
    %534 = vset.pattern.permute.xlu0 0
    %535 = vperm.xlu0 %534, %v266
    %v536 = vpop.permute.xlu0 %535
    %539 = vset.pattern.permute.xlu0 0
    %540 = vperm.xlu0 %539, %v267
    %v541 = vpop.permute.xlu0 %540
    %544 = vset.pattern.permute.xlu0 0
    %545 = vperm.xlu0 %544, %v268
    %v546 = vpop.permute.xlu0 %545
    %549 = vset.pattern.permute.xlu0 0
    %550 = vperm.xlu0 %549, %v269
    %v551 = vpop.permute.xlu0 %550
    %554 = vset.pattern.permute.xlu0 0
    %555 = vperm.xlu0 %554, %v270
    %v556 = vpop.permute.xlu0 %555
    %559 = vset.pattern.permute.xlu0 0
    %560 = vperm.xlu0 %559, %v271
    %v561 = vpop.permute.xlu0 %560
    %564 = vset.pattern.permute.xlu0 0
    %565 = vperm.xlu0 %564, %v272
    %v566 = vpop.permute.xlu0 %565
    %569 = vset.pattern.permute.xlu0 0
    %570 = vperm.xlu0 %569, %v273
    %v571 = vpop.permute.xlu0 %570
    %574 = vset.pattern.permute.xlu0 0
    %575 = vperm.xlu0 %574, %v274
    %v576 = vpop.permute.xlu0 %575
    %579 = vset.pattern.permute.xlu0 0
    %580 = vperm.xlu0 %579, %v275
    %v581 = vpop.permute.xlu0 %580
    %584 = vset.pattern.permute.xlu0 0
    %585 = vperm.xlu0 %584, %v276
    %v586 = vpop.permute.xlu0 %585
    %589 = vset.pattern.permute.xlu0 0
    %590 = vperm.xlu0 %589, %v277
    %v591 = vpop.permute.xlu0 %590
    %594 = vset.pattern.permute.xlu0 0
    %595 = vperm.xlu0 %594, %v278
    %v596 = vpop.permute.xlu0 %595
    %599 = vset.pattern.permute.xlu0 0
    %600 = vperm.xlu0 %599, %v279
    %v601 = vpop.permute.xlu0 %600
    %vm603 = vcmp.eq.f32.partialorder %v282, %v286
    %vm604 = vcmp.eq.f32.partialorder %v282, %v291
    %vm605 = vcmp.eq.f32.partialorder %v282, %v296
    %vm606 = vcmp.eq.f32.partialorder %v282, %v301
    %vm607 = vcmp.eq.f32.partialorder %v282, %v306
    %vm608 = vcmp.eq.f32.partialorder %v282, %v311
    %vm609 = vcmp.eq.f32.partialorder %v282, %v316
    %vm610 = vcmp.eq.f32.partialorder %v282, %v321
    %vm611 = vcmp.eq.f32.partialorder %v282, %v326
    %vm612 = vcmp.eq.f32.partialorder %v282, %v331
    %vm613 = vcmp.eq.f32.partialorder %v282, %v336
    %vm614 = vcmp.eq.f32.partialorder %v282, %v341
    %vm615 = vcmp.eq.f32.partialorder %v282, %v346
    %vm616 = vcmp.eq.f32.partialorder %v282, %v351
    %vm617 = vcmp.eq.f32.partialorder %v282, %v356
    %vm618 = vcmp.eq.f32.partialorder %v282, %v361
    %vm619 = vcmp.eq.f32.partialorder %v282, %v366
    %vm620 = vcmp.eq.f32.partialorder %v282, %v371
    %vm621 = vcmp.eq.f32.partialorder %v282, %v376
    %vm622 = vcmp.eq.f32.partialorder %v282, %v381
    %vm623 = vcmp.eq.f32.partialorder %v282, %v386
    %vm624 = vcmp.eq.f32.partialorder %v282, %v391
    %vm625 = vcmp.eq.f32.partialorder %v282, %v396
    %vm626 = vcmp.eq.f32.partialorder %v282, %v401
    %vm627 = vcmp.eq.f32.partialorder %v282, %v406
    %vm628 = vcmp.eq.f32.partialorder %v282, %v411
    %vm629 = vcmp.eq.f32.partialorder %v282, %v416
    %vm630 = vcmp.eq.f32.partialorder %v282, %v421
    %vm631 = vcmp.eq.f32.partialorder %v282, %v426
    %vm632 = vcmp.eq.f32.partialorder %v282, %v431
    %vm633 = vcmp.eq.f32.partialorder %v282, %v436
    %vm634 = vcmp.eq.f32.partialorder %v282, %v441
    %vm635 = vcmp.eq.f32.partialorder %v282, %v446
    %vm636 = vcmp.eq.f32.partialorder %v282, %v451
    %vm637 = vcmp.eq.f32.partialorder %v282, %v456
    %vm638 = vcmp.eq.f32.partialorder %v282, %v461
    %vm639 = vcmp.eq.f32.partialorder %v282, %v466
    %vm640 = vcmp.eq.f32.partialorder %v282, %v471
    %vm641 = vcmp.eq.f32.partialorder %v282, %v476
    %vm642 = vcmp.eq.f32.partialorder %v282, %v481
    %vm643 = vcmp.eq.f32.partialorder %v282, %v486
    %vm644 = vcmp.eq.f32.partialorder %v282, %v491
    %vm645 = vcmp.eq.f32.partialorder %v282, %v496
    %vm646 = vcmp.eq.f32.partialorder %v282, %v501
    %vm647 = vcmp.eq.f32.partialorder %v282, %v506
    %vm648 = vcmp.eq.f32.partialorder %v282, %v511
    %vm649 = vcmp.eq.f32.partialorder %v282, %v516
    %vm650 = vcmp.eq.f32.partialorder %v282, %v521
    %vm651 = vcmp.eq.f32.partialorder %v282, %v526
    %vm652 = vcmp.eq.f32.partialorder %v282, %v531
    %vm653 = vcmp.eq.f32.partialorder %v282, %v536
    %vm654 = vcmp.eq.f32.partialorder %v282, %v541
    %vm655 = vcmp.eq.f32.partialorder %v282, %v546
    %vm656 = vcmp.eq.f32.partialorder %v282, %v551
    %vm657 = vcmp.eq.f32.partialorder %v282, %v556
    %vm658 = vcmp.eq.f32.partialorder %v282, %v561
    %vm659 = vcmp.eq.f32.partialorder %v282, %v566
    %vm660 = vcmp.eq.f32.partialorder %v282, %v571
    %vm661 = vcmp.eq.f32.partialorder %v282, %v576
    %vm662 = vcmp.eq.f32.partialorder %v282, %v581
    %vm663 = vcmp.eq.f32.partialorder %v282, %v586
    %vm664 = vcmp.eq.f32.partialorder %v282, %v591
    %vm665 = vcmp.eq.f32.partialorder %v282, %v596
    %vm666 = vcmp.eq.f32.partialorder %v282, %v601
    %vm667 = vcmask 261120
    %v668 = vsel %vm667, %v65, -inf
    %669 = vmax.xlane.f32.xlu0 %v668
    %v670 = vpop.xlane.xlu0 %669
    %v671 = vsel %vm667, %v66, -inf
    %672 = vmax.xlane.f32.xlu0 %v671
    %v673 = vpop.xlane.xlu0 %672
    %v674 = vsel %vm667, %v67, -inf
    %675 = vmax.xlane.f32.xlu0 %v674
    %v676 = vpop.xlane.xlu0 %675
    %v677 = vsel %vm667, %v68, -inf
    %678 = vmax.xlane.f32.xlu0 %v677
    %v679 = vpop.xlane.xlu0 %678
    %v680 = vsel %vm667, %v69, -inf
    %681 = vmax.xlane.f32.xlu0 %v680
    %v682 = vpop.xlane.xlu0 %681
    %v683 = vsel %vm667, %v70, -inf
    %684 = vmax.xlane.f32.xlu0 %v683
    %v685 = vpop.xlane.xlu0 %684
    %v686 = vsel %vm667, %v71, -inf
    %687 = vmax.xlane.f32.xlu0 %v686
    %v688 = vpop.xlane.xlu0 %687
    %v689 = vsel %vm667, %v72, -inf
    %690 = vmax.xlane.f32.xlu0 %v689
    %v691 = vpop.xlane.xlu0 %690
    %v692 = vsel %vm667, %v73, -inf
    %693 = vmax.xlane.f32.xlu0 %v692
    %v694 = vpop.xlane.xlu0 %693
    %v695 = vsel %vm667, %v74, -inf
    %696 = vmax.xlane.f32.xlu0 %v695
    %v697 = vpop.xlane.xlu0 %696
    %v698 = vsel %vm667, %v75, -inf
    %699 = vmax.xlane.f32.xlu0 %v698
    %v700 = vpop.xlane.xlu0 %699
    %v701 = vsel %vm667, %v76, -inf
    %702 = vmax.xlane.f32.xlu0 %v701
    %v703 = vpop.xlane.xlu0 %702
    %v704 = vsel %vm667, %v77, -inf
    %705 = vmax.xlane.f32.xlu0 %v704
    %v706 = vpop.xlane.xlu0 %705
    %v707 = vsel %vm667, %v78, -inf
    %708 = vmax.xlane.f32.xlu0 %v707
    %v709 = vpop.xlane.xlu0 %708
    %v710 = vsel %vm667, %v79, -inf
    %711 = vmax.xlane.f32.xlu0 %v710
    %v712 = vpop.xlane.xlu0 %711
    %v713 = vsel %vm667, %v80, -inf
    %714 = vmax.xlane.f32.xlu0 %v713
    %v715 = vpop.xlane.xlu0 %714
    %v716 = vsel %vm667, %v81, -inf
    %717 = vmax.xlane.f32.xlu0 %v716
    %v718 = vpop.xlane.xlu0 %717
    %v719 = vsel %vm667, %v82, -inf
    %720 = vmax.xlane.f32.xlu0 %v719
    %v721 = vpop.xlane.xlu0 %720
    %v722 = vsel %vm667, %v83, -inf
    %723 = vmax.xlane.f32.xlu0 %v722
    %v724 = vpop.xlane.xlu0 %723
    %v725 = vsel %vm667, %v84, -inf
    %726 = vmax.xlane.f32.xlu0 %v725
    %v727 = vpop.xlane.xlu0 %726
    %v728 = vsel %vm667, %v85, -inf
    %729 = vmax.xlane.f32.xlu0 %v728
    %v730 = vpop.xlane.xlu0 %729
    %v731 = vsel %vm667, %v86, -inf
    %732 = vmax.xlane.f32.xlu0 %v731
    %v733 = vpop.xlane.xlu0 %732
    %v734 = vsel %vm667, %v87, -inf
    %735 = vmax.xlane.f32.xlu0 %v734
    %v736 = vpop.xlane.xlu0 %735
    %v737 = vsel %vm667, %v88, -inf
    %738 = vmax.xlane.f32.xlu0 %v737
    %v739 = vpop.xlane.xlu0 %738
    %v740 = vsel %vm667, %v89, -inf
    %741 = vmax.xlane.f32.xlu0 %v740
    %v742 = vpop.xlane.xlu0 %741
    %v743 = vsel %vm667, %v90, -inf
    %744 = vmax.xlane.f32.xlu0 %v743
    %v745 = vpop.xlane.xlu0 %744
    %v746 = vsel %vm667, %v91, -inf
    %747 = vmax.xlane.f32.xlu0 %v746
    %v748 = vpop.xlane.xlu0 %747
    %v749 = vsel %vm667, %v92, -inf
    %750 = vmax.xlane.f32.xlu0 %v749
    %v751 = vpop.xlane.xlu0 %750
    %v752 = vsel %vm667, %v93, -inf
    %753 = vmax.xlane.f32.xlu0 %v752
    %v754 = vpop.xlane.xlu0 %753
    %v755 = vsel %vm667, %v94, -inf
    %756 = vmax.xlane.f32.xlu0 %v755
    %v757 = vpop.xlane.xlu0 %756
    %v758 = vsel %vm667, %v95, -inf
    %759 = vmax.xlane.f32.xlu0 %v758
    %v760 = vpop.xlane.xlu0 %759
    %v761 = vsel %vm667, %v96, -inf
    %762 = vmax.xlane.f32.xlu0 %v761
    %v763 = vpop.xlane.xlu0 %762
    %v764 = vsel %vm667, %v97, -inf
    %765 = vmax.xlane.f32.xlu0 %v764
    %v766 = vpop.xlane.xlu0 %765
    %v767 = vsel %vm667, %v98, -inf
    %768 = vmax.xlane.f32.xlu0 %v767
    %v769 = vpop.xlane.xlu0 %768
    %v770 = vsel %vm667, %v99, -inf
    %771 = vmax.xlane.f32.xlu0 %v770
    %v772 = vpop.xlane.xlu0 %771
    %v773 = vsel %vm667, %v100, -inf
    %774 = vmax.xlane.f32.xlu0 %v773
    %v775 = vpop.xlane.xlu0 %774
    %v776 = vsel %vm667, %v101, -inf
    %777 = vmax.xlane.f32.xlu0 %v776
    %v778 = vpop.xlane.xlu0 %777
    %v779 = vsel %vm667, %v102, -inf
    %780 = vmax.xlane.f32.xlu0 %v779
    %v781 = vpop.xlane.xlu0 %780
    %v782 = vsel %vm667, %v103, -inf
    %783 = vmax.xlane.f32.xlu0 %v782
    %v784 = vpop.xlane.xlu0 %783
    %v785 = vsel %vm667, %v104, -inf
    %786 = vmax.xlane.f32.xlu0 %v785
    %v787 = vpop.xlane.xlu0 %786
    %v788 = vsel %vm667, %v105, -inf
    %789 = vmax.xlane.f32.xlu0 %v788
    %v790 = vpop.xlane.xlu0 %789
    %v791 = vsel %vm667, %v106, -inf
    %792 = vmax.xlane.f32.xlu0 %v791
    %v793 = vpop.xlane.xlu0 %792
    %v794 = vsel %vm667, %v107, -inf
    %795 = vmax.xlane.f32.xlu0 %v794
    %v796 = vpop.xlane.xlu0 %795
    %v797 = vsel %vm667, %v108, -inf
    %798 = vmax.xlane.f32.xlu0 %v797
    %v799 = vpop.xlane.xlu0 %798
    %v800 = vsel %vm667, %v109, -inf
    %801 = vmax.xlane.f32.xlu0 %v800
    %v802 = vpop.xlane.xlu0 %801
    %v803 = vsel %vm667, %v110, -inf
    %804 = vmax.xlane.f32.xlu0 %v803
    %v805 = vpop.xlane.xlu0 %804
    %v806 = vsel %vm667, %v111, -inf
    %807 = vmax.xlane.f32.xlu0 %v806
    %v808 = vpop.xlane.xlu0 %807
    %v809 = vsel %vm667, %v112, -inf
    %810 = vmax.xlane.f32.xlu0 %v809
    %v811 = vpop.xlane.xlu0 %810
    %v812 = vsel %vm667, %v113, -inf
    %813 = vmax.xlane.f32.xlu0 %v812
    %v814 = vpop.xlane.xlu0 %813
    %v815 = vsel %vm667, %v114, -inf
    %816 = vmax.xlane.f32.xlu0 %v815
    %v817 = vpop.xlane.xlu0 %816
    %v818 = vsel %vm667, %v115, -inf
    %819 = vmax.xlane.f32.xlu0 %v818
    %v820 = vpop.xlane.xlu0 %819
    %v821 = vsel %vm667, %v116, -inf
    %822 = vmax.xlane.f32.xlu0 %v821
    %v823 = vpop.xlane.xlu0 %822
    %v824 = vsel %vm667, %v117, -inf
    %825 = vmax.xlane.f32.xlu0 %v824
    %v826 = vpop.xlane.xlu0 %825
    %v827 = vsel %vm667, %v118, -inf
    %828 = vmax.xlane.f32.xlu0 %v827
    %v829 = vpop.xlane.xlu0 %828
    %v830 = vsel %vm667, %v119, -inf
    %831 = vmax.xlane.f32.xlu0 %v830
    %v832 = vpop.xlane.xlu0 %831
    %v833 = vsel %vm667, %v120, -inf
    %834 = vmax.xlane.f32.xlu0 %v833
    %v835 = vpop.xlane.xlu0 %834
    %v836 = vsel %vm667, %v121, -inf
    %837 = vmax.xlane.f32.xlu0 %v836
    %v838 = vpop.xlane.xlu0 %837
    %v839 = vsel %vm667, %v122, -inf
    %840 = vmax.xlane.f32.xlu0 %v839
    %v841 = vpop.xlane.xlu0 %840
    %v842 = vsel %vm667, %v123, -inf
    %843 = vmax.xlane.f32.xlu0 %v842
    %v844 = vpop.xlane.xlu0 %843
    %v845 = vsel %vm667, %v124, -inf
    %846 = vmax.xlane.f32.xlu0 %v845
    %v847 = vpop.xlane.xlu0 %846
    %v848 = vsel %vm667, %v125, -inf
    %849 = vmax.xlane.f32.xlu0 %v848
    %v850 = vpop.xlane.xlu0 %849
    %v851 = vsel %vm667, %v126, -inf
    %852 = vmax.xlane.f32.xlu0 %v851
    %v853 = vpop.xlane.xlu0 %852
    %v854 = vsel %vm667, %v127, -inf
    %855 = vmax.xlane.f32.xlu0 %v854
    %v856 = vpop.xlane.xlu0 %855
    %v857 = vsel %vm667, %v128, -inf
    %858 = vmax.xlane.f32.xlu0 %v857
    %v859 = vpop.xlane.xlu0 %858
    %v860 = vsub.f32 %v65, %v670
    %v861 = vsub.f32 %v66, %v673
    %v862 = vsub.f32 %v67, %v676
    %v863 = vsub.f32 %v68, %v679
    %v864 = vsub.f32 %v69, %v682
    %v865 = vsub.f32 %v70, %v685
    %v866 = vsub.f32 %v71, %v688
    %v867 = vsub.f32 %v72, %v691
    %v868 = vsub.f32 %v73, %v694
    %v869 = vsub.f32 %v74, %v697
    %v870 = vsub.f32 %v75, %v700
    %v871 = vsub.f32 %v76, %v703
    %v872 = vsub.f32 %v77, %v706
    %v873 = vsub.f32 %v78, %v709
    %v874 = vsub.f32 %v79, %v712
    %v875 = vsub.f32 %v80, %v715
    %v876 = vsub.f32 %v81, %v718
    %v877 = vsub.f32 %v82, %v721
    %v878 = vsub.f32 %v83, %v724
    %v879 = vsub.f32 %v84, %v727
    %v880 = vsub.f32 %v85, %v730
    %v881 = vsub.f32 %v86, %v733
    %v882 = vsub.f32 %v87, %v736
    %v883 = vsub.f32 %v88, %v739
    %v884 = vsub.f32 %v89, %v742
    %v885 = vsub.f32 %v90, %v745
    %v886 = vsub.f32 %v91, %v748
    %v887 = vsub.f32 %v92, %v751
    %v888 = vsub.f32 %v93, %v754
    %v889 = vsub.f32 %v94, %v757
    %v890 = vsub.f32 %v95, %v760
    %v891 = vsub.f32 %v96, %v763
    %v892 = vsub.f32 %v97, %v766
    %v893 = vsub.f32 %v98, %v769
    %v894 = vsub.f32 %v99, %v772
    %v895 = vsub.f32 %v100, %v775
    %v896 = vsub.f32 %v101, %v778
    %v897 = vsub.f32 %v102, %v781
    %v898 = vsub.f32 %v103, %v784
    %v899 = vsub.f32 %v104, %v787
    %v900 = vsub.f32 %v105, %v790
    %v901 = vsub.f32 %v106, %v793
    %v902 = vsub.f32 %v107, %v796
    %v903 = vsub.f32 %v108, %v799
    %v904 = vsub.f32 %v109, %v802
    %v905 = vsub.f32 %v110, %v805
    %v906 = vsub.f32 %v111, %v808
    %v907 = vsub.f32 %v112, %v811
    %v908 = vsub.f32 %v113, %v814
    %v909 = vsub.f32 %v114, %v817
    %v910 = vsub.f32 %v115, %v820
    %v911 = vsub.f32 %v116, %v823
    %v912 = vsub.f32 %v117, %v826
    %v913 = vsub.f32 %v118, %v829
    %v914 = vsub.f32 %v119, %v832
    %v915 = vsub.f32 %v120, %v835
    %v916 = vsub.f32 %v121, %v838
    %v917 = vsub.f32 %v122, %v841
    %v918 = vsub.f32 %v123, %v844
    %v919 = vsub.f32 %v124, %v847
    %v920 = vsub.f32 %v125, %v850
    %v921 = vsub.f32 %v126, %v853
    %v922 = vsub.f32 %v127, %v856
    %v923 = vsub.f32 %v128, %v859
    %v924 = vmul.f32 %v860, 1.442695
    %v925 = vpow.pop %v924
    %v926 = vmul.f32 %v861, 1.442695
    %v927 = vpow.pop %v926
    %v928 = vmul.f32 %v862, 1.442695
    %v929 = vpow.pop %v928
    %v930 = vmul.f32 %v863, 1.442695
    %v931 = vpow.pop %v930
    %v932 = vmul.f32 %v864, 1.442695
    %v933 = vpow.pop %v932
    %v934 = vmul.f32 %v865, 1.442695
    %v935 = vpow.pop %v934
    %v936 = vmul.f32 %v866, 1.442695
    %v937 = vpow.pop %v936
    %v938 = vmul.f32 %v867, 1.442695
    %v939 = vpow.pop %v938
    %v940 = vmul.f32 %v868, 1.442695
    %v941 = vpow.pop %v940
    %v942 = vmul.f32 %v869, 1.442695
    %v943 = vpow.pop %v942
    %v944 = vmul.f32 %v870, 1.442695
    %v945 = vpow.pop %v944
    %v946 = vmul.f32 %v871, 1.442695
    %v947 = vpow.pop %v946
    %v948 = vmul.f32 %v872, 1.442695
    %v949 = vpow.pop %v948
    %v950 = vmul.f32 %v873, 1.442695
    %v951 = vpow.pop %v950
    %v952 = vmul.f32 %v874, 1.442695
    %v953 = vpow.pop %v952
    %v954 = vmul.f32 %v875, 1.442695
    %v955 = vpow.pop %v954
    %v956 = vmul.f32 %v876, 1.442695
    %v957 = vpow.pop %v956
    %v958 = vmul.f32 %v877, 1.442695
    %v959 = vpow.pop %v958
    %v960 = vmul.f32 %v878, 1.442695
    %v961 = vpow.pop %v960
    %v962 = vmul.f32 %v879, 1.442695
    %v963 = vpow.pop %v962
    %v964 = vmul.f32 %v880, 1.442695
    %v965 = vpow.pop %v964
    %v966 = vmul.f32 %v881, 1.442695
    %v967 = vpow.pop %v966
    %v968 = vmul.f32 %v882, 1.442695
    %v969 = vpow.pop %v968
    %v970 = vmul.f32 %v883, 1.442695
    %v971 = vpow.pop %v970
    %v972 = vmul.f32 %v884, 1.442695
    %v973 = vpow.pop %v972
    %v974 = vmul.f32 %v885, 1.442695
    %v975 = vpow.pop %v974
    %v976 = vmul.f32 %v886, 1.442695
    %v977 = vpow.pop %v976
    %v978 = vmul.f32 %v887, 1.442695
    %v979 = vpow.pop %v978
    %v980 = vmul.f32 %v888, 1.442695
    %v981 = vpow.pop %v980
    %v982 = vmul.f32 %v889, 1.442695
    %v983 = vpow.pop %v982
    %v984 = vmul.f32 %v890, 1.442695
    %v985 = vpow.pop %v984
    %v986 = vmul.f32 %v891, 1.442695
    %v987 = vpow.pop %v986
    %v988 = vmul.f32 %v892, 1.442695
    %v989 = vpow.pop %v988
    %v990 = vmul.f32 %v893, 1.442695
    %v991 = vpow.pop %v990
    %v992 = vmul.f32 %v894, 1.442695
    %v993 = vpow.pop %v992
    %v994 = vmul.f32 %v895, 1.442695
    %v995 = vpow.pop %v994
    %v996 = vmul.f32 %v896, 1.442695
    %v997 = vpow.pop %v996
    %v998 = vmul.f32 %v897, 1.442695
    %v999 = vpow.pop %v998
    %v1000 = vmul.f32 %v898, 1.442695
    %v1001 = vpow.pop %v1000
    %v1002 = vmul.f32 %v899, 1.442695
    %v1003 = vpow.pop %v1002
    %v1004 = vmul.f32 %v900, 1.442695
    %v1005 = vpow.pop %v1004
    %v1006 = vmul.f32 %v901, 1.442695
    %v1007 = vpow.pop %v1006
    %v1008 = vmul.f32 %v902, 1.442695
    %v1009 = vpow.pop %v1008
    %v1010 = vmul.f32 %v903, 1.442695
    %v1011 = vpow.pop %v1010
    %v1012 = vmul.f32 %v904, 1.442695
    %v1013 = vpow.pop %v1012
    %v1014 = vmul.f32 %v905, 1.442695
    %v1015 = vpow.pop %v1014
    %v1016 = vmul.f32 %v906, 1.442695
    %v1017 = vpow.pop %v1016
    %v1018 = vmul.f32 %v907, 1.442695
    %v1019 = vpow.pop %v1018
    %v1020 = vmul.f32 %v908, 1.442695
    %v1021 = vpow.pop %v1020
    %v1022 = vmul.f32 %v909, 1.442695
    %v1023 = vpow.pop %v1022
    %v1024 = vmul.f32 %v910, 1.442695
    %v1025 = vpow.pop %v1024
    %v1026 = vmul.f32 %v911, 1.442695
    %v1027 = vpow.pop %v1026
    %v1028 = vmul.f32 %v912, 1.442695
    %v1029 = vpow.pop %v1028
    %v1030 = vmul.f32 %v913, 1.442695
    %v1031 = vpow.pop %v1030
    %v1032 = vmul.f32 %v914, 1.442695
    %v1033 = vpow.pop %v1032
    %v1034 = vmul.f32 %v915, 1.442695
    %v1035 = vpow.pop %v1034
    %v1036 = vmul.f32 %v916, 1.442695
    %v1037 = vpow.pop %v1036
    %v1038 = vmul.f32 %v917, 1.442695
    %v1039 = vpow.pop %v1038
    %v1040 = vmul.f32 %v918, 1.442695
    %v1041 = vpow.pop %v1040
    %v1042 = vmul.f32 %v919, 1.442695
    %v1043 = vpow.pop %v1042
    %v1044 = vmul.f32 %v920, 1.442695
    %v1045 = vpow.pop %v1044
    %v1046 = vmul.f32 %v921, 1.442695
    %v1047 = vpow.pop %v1046
    %v1048 = vmul.f32 %v922, 1.442695
    %v1049 = vpow.pop %v1048
    %v1050 = vmul.f32 %v923, 1.442695
    %v1051 = vpow.pop %v1050
    %v1052 = vsel %vm667, %v925, 0.0
    %1053 = vadd.xlane.f32.xlu0 %v1052
    %v1054 = vpop.xlane.xlu0 %1053
    %v1055 = vsel %vm667, %v927, 0.0
    %1056 = vadd.xlane.f32.xlu0 %v1055
    %v1057 = vpop.xlane.xlu0 %1056
    %v1058 = vsel %vm667, %v929, 0.0
    %1059 = vadd.xlane.f32.xlu0 %v1058
    %v1060 = vpop.xlane.xlu0 %1059
    %v1061 = vsel %vm667, %v931, 0.0
    %1062 = vadd.xlane.f32.xlu0 %v1061
    %v1063 = vpop.xlane.xlu0 %1062
    %v1064 = vsel %vm667, %v933, 0.0
    %1065 = vadd.xlane.f32.xlu0 %v1064
    %v1066 = vpop.xlane.xlu0 %1065
    %v1067 = vsel %vm667, %v935, 0.0
    %1068 = vadd.xlane.f32.xlu0 %v1067
    %v1069 = vpop.xlane.xlu0 %1068
    %v1070 = vsel %vm667, %v937, 0.0
    %1071 = vadd.xlane.f32.xlu0 %v1070
    %v1072 = vpop.xlane.xlu0 %1071
    %v1073 = vsel %vm667, %v939, 0.0
    %1074 = vadd.xlane.f32.xlu0 %v1073
    %v1075 = vpop.xlane.xlu0 %1074
    %v1076 = vsel %vm667, %v941, 0.0
    %1077 = vadd.xlane.f32.xlu0 %v1076
    %v1078 = vpop.xlane.xlu0 %1077
    %v1079 = vsel %vm667, %v943, 0.0
    %1080 = vadd.xlane.f32.xlu0 %v1079
    %v1081 = vpop.xlane.xlu0 %1080
    %v1082 = vsel %vm667, %v945, 0.0
    %1083 = vadd.xlane.f32.xlu0 %v1082
    %v1084 = vpop.xlane.xlu0 %1083
    %v1085 = vsel %vm667, %v947, 0.0
    %1086 = vadd.xlane.f32.xlu0 %v1085
    %v1087 = vpop.xlane.xlu0 %1086
    %v1088 = vsel %vm667, %v949, 0.0
    %1089 = vadd.xlane.f32.xlu0 %v1088
    %v1090 = vpop.xlane.xlu0 %1089
    %v1091 = vsel %vm667, %v951, 0.0
    %1092 = vadd.xlane.f32.xlu0 %v1091
    %v1093 = vpop.xlane.xlu0 %1092
    %v1094 = vsel %vm667, %v953, 0.0
    %1095 = vadd.xlane.f32.xlu0 %v1094
    %v1096 = vpop.xlane.xlu0 %1095
    %v1097 = vsel %vm667, %v955, 0.0
    %1098 = vadd.xlane.f32.xlu0 %v1097
    %v1099 = vpop.xlane.xlu0 %1098
    %v1100 = vsel %vm667, %v957, 0.0
    %1101 = vadd.xlane.f32.xlu0 %v1100
    %v1102 = vpop.xlane.xlu0 %1101
    %v1103 = vsel %vm667, %v959, 0.0
    %1104 = vadd.xlane.f32.xlu0 %v1103
    %v1105 = vpop.xlane.xlu0 %1104
    %v1106 = vsel %vm667, %v961, 0.0
    %1107 = vadd.xlane.f32.xlu0 %v1106
    %v1108 = vpop.xlane.xlu0 %1107
    %v1109 = vsel %vm667, %v963, 0.0
    %1110 = vadd.xlane.f32.xlu0 %v1109
    %v1111 = vpop.xlane.xlu0 %1110
    %v1112 = vsel %vm667, %v965, 0.0
    %1113 = vadd.xlane.f32.xlu0 %v1112
    %v1114 = vpop.xlane.xlu0 %1113
    %v1115 = vsel %vm667, %v967, 0.0
    %1116 = vadd.xlane.f32.xlu0 %v1115
    %v1117 = vpop.xlane.xlu0 %1116
    %v1118 = vsel %vm667, %v969, 0.0
    %1119 = vadd.xlane.f32.xlu0 %v1118
    %v1120 = vpop.xlane.xlu0 %1119
    %v1121 = vsel %vm667, %v971, 0.0
    %1122 = vadd.xlane.f32.xlu0 %v1121
    %v1123 = vpop.xlane.xlu0 %1122
    %v1124 = vsel %vm667, %v973, 0.0
    %1125 = vadd.xlane.f32.xlu0 %v1124
    %v1126 = vpop.xlane.xlu0 %1125
    %v1127 = vsel %vm667, %v975, 0.0
    %1128 = vadd.xlane.f32.xlu0 %v1127
    %v1129 = vpop.xlane.xlu0 %1128
    %v1130 = vsel %vm667, %v977, 0.0
    %1131 = vadd.xlane.f32.xlu0 %v1130
    %v1132 = vpop.xlane.xlu0 %1131
    %v1133 = vsel %vm667, %v979, 0.0
    %1134 = vadd.xlane.f32.xlu0 %v1133
    %v1135 = vpop.xlane.xlu0 %1134
    %v1136 = vsel %vm667, %v981, 0.0
    %1137 = vadd.xlane.f32.xlu0 %v1136
    %v1138 = vpop.xlane.xlu0 %1137
    %v1139 = vsel %vm667, %v983, 0.0
    %1140 = vadd.xlane.f32.xlu0 %v1139
    %v1141 = vpop.xlane.xlu0 %1140
    %v1142 = vsel %vm667, %v985, 0.0
    %1143 = vadd.xlane.f32.xlu0 %v1142
    %v1144 = vpop.xlane.xlu0 %1143
    %v1145 = vsel %vm667, %v987, 0.0
    %1146 = vadd.xlane.f32.xlu0 %v1145
    %v1147 = vpop.xlane.xlu0 %1146
    %v1148 = vsel %vm667, %v989, 0.0
    %1149 = vadd.xlane.f32.xlu0 %v1148
    %v1150 = vpop.xlane.xlu0 %1149
    %v1151 = vsel %vm667, %v991, 0.0
    %1152 = vadd.xlane.f32.xlu0 %v1151
    %v1153 = vpop.xlane.xlu0 %1152
    %v1154 = vsel %vm667, %v993, 0.0
    %1155 = vadd.xlane.f32.xlu0 %v1154
    %v1156 = vpop.xlane.xlu0 %1155
    %v1157 = vsel %vm667, %v995, 0.0
    %1158 = vadd.xlane.f32.xlu0 %v1157
    %v1159 = vpop.xlane.xlu0 %1158
    %v1160 = vsel %vm667, %v997, 0.0
    %1161 = vadd.xlane.f32.xlu0 %v1160
    %v1162 = vpop.xlane.xlu0 %1161
    %v1163 = vsel %vm667, %v999, 0.0
    %1164 = vadd.xlane.f32.xlu0 %v1163
    %v1165 = vpop.xlane.xlu0 %1164
    %v1166 = vsel %vm667, %v1001, 0.0
    %1167 = vadd.xlane.f32.xlu0 %v1166
    %v1168 = vpop.xlane.xlu0 %1167
    %v1169 = vsel %vm667, %v1003, 0.0
    %1170 = vadd.xlane.f32.xlu0 %v1169
    %v1171 = vpop.xlane.xlu0 %1170
    %v1172 = vsel %vm667, %v1005, 0.0
    %1173 = vadd.xlane.f32.xlu0 %v1172
    %v1174 = vpop.xlane.xlu0 %1173
    %v1175 = vsel %vm667, %v1007, 0.0
    %1176 = vadd.xlane.f32.xlu0 %v1175
    %v1177 = vpop.xlane.xlu0 %1176
    %v1178 = vsel %vm667, %v1009, 0.0
    %1179 = vadd.xlane.f32.xlu0 %v1178
    %v1180 = vpop.xlane.xlu0 %1179
    %v1181 = vsel %vm667, %v1011, 0.0
    %1182 = vadd.xlane.f32.xlu0 %v1181
    %v1183 = vpop.xlane.xlu0 %1182
    %v1184 = vsel %vm667, %v1013, 0.0
    %1185 = vadd.xlane.f32.xlu0 %v1184
    %v1186 = vpop.xlane.xlu0 %1185
    %v1187 = vsel %vm667, %v1015, 0.0
    %1188 = vadd.xlane.f32.xlu0 %v1187
    %v1189 = vpop.xlane.xlu0 %1188
    %v1190 = vsel %vm667, %v1017, 0.0
    %1191 = vadd.xlane.f32.xlu0 %v1190
    %v1192 = vpop.xlane.xlu0 %1191
    %v1193 = vsel %vm667, %v1019, 0.0
    %1194 = vadd.xlane.f32.xlu0 %v1193
    %v1195 = vpop.xlane.xlu0 %1194
    %v1196 = vsel %vm667, %v1021, 0.0
    %1197 = vadd.xlane.f32.xlu0 %v1196
    %v1198 = vpop.xlane.xlu0 %1197
    %v1199 = vsel %vm667, %v1023, 0.0
    %1200 = vadd.xlane.f32.xlu0 %v1199
    %v1201 = vpop.xlane.xlu0 %1200
    %v1202 = vsel %vm667, %v1025, 0.0
    %1203 = vadd.xlane.f32.xlu0 %v1202
    %v1204 = vpop.xlane.xlu0 %1203
    %v1205 = vsel %vm667, %v1027, 0.0
    %1206 = vadd.xlane.f32.xlu0 %v1205
    %v1207 = vpop.xlane.xlu0 %1206
    %v1208 = vsel %vm667, %v1029, 0.0
    %1209 = vadd.xlane.f32.xlu0 %v1208
    %v1210 = vpop.xlane.xlu0 %1209
    %v1211 = vsel %vm667, %v1031, 0.0
    %1212 = vadd.xlane.f32.xlu0 %v1211
    %v1213 = vpop.xlane.xlu0 %1212
    %v1214 = vsel %vm667, %v1033, 0.0
    %1215 = vadd.xlane.f32.xlu0 %v1214
    %v1216 = vpop.xlane.xlu0 %1215
    %v1217 = vsel %vm667, %v1035, 0.0
    %1218 = vadd.xlane.f32.xlu0 %v1217
    %v1219 = vpop.xlane.xlu0 %1218
    %v1220 = vsel %vm667, %v1037, 0.0
    %1221 = vadd.xlane.f32.xlu0 %v1220
    %v1222 = vpop.xlane.xlu0 %1221
    %v1223 = vsel %vm667, %v1039, 0.0
    %1224 = vadd.xlane.f32.xlu0 %v1223
    %v1225 = vpop.xlane.xlu0 %1224
    %v1226 = vsel %vm667, %v1041, 0.0
    %1227 = vadd.xlane.f32.xlu0 %v1226
    %v1228 = vpop.xlane.xlu0 %1227
    %v1229 = vsel %vm667, %v1043, 0.0
    %1230 = vadd.xlane.f32.xlu0 %v1229
    %v1231 = vpop.xlane.xlu0 %1230
    %v1232 = vsel %vm667, %v1045, 0.0
    %1233 = vadd.xlane.f32.xlu0 %v1232
    %v1234 = vpop.xlane.xlu0 %1233
    %v1235 = vsel %vm667, %v1047, 0.0
    %1236 = vadd.xlane.f32.xlu0 %v1235
    %v1237 = vpop.xlane.xlu0 %1236
    %v1238 = vsel %vm667, %v1049, 0.0
    %1239 = vadd.xlane.f32.xlu0 %v1238
    %v1240 = vpop.xlane.xlu0 %1239
    %v1241 = vsel %vm667, %v1051, 0.0
    %1242 = vadd.xlane.f32.xlu0 %v1241
    %v1243 = vpop.xlane.xlu0 %1242
    %v1244 = vlog2.pop %v1054
    %v1245 = vmul.f32 %v1244, 0.6931472
    %v1246 = vlog2.pop %v1057
    %v1247 = vmul.f32 %v1246, 0.6931472
    %v1248 = vlog2.pop %v1060
    %v1249 = vmul.f32 %v1248, 0.6931472
    %v1250 = vlog2.pop %v1063
    %v1251 = vmul.f32 %v1250, 0.6931472
    %v1252 = vlog2.pop %v1066
    %v1253 = vmul.f32 %v1252, 0.6931472
    %v1254 = vlog2.pop %v1069
    %v1255 = vmul.f32 %v1254, 0.6931472
    %v1256 = vlog2.pop %v1072
    %v1257 = vmul.f32 %v1256, 0.6931472
    %v1258 = vlog2.pop %v1075
    %v1259 = vmul.f32 %v1258, 0.6931472
    %v1260 = vlog2.pop %v1078
    %v1261 = vmul.f32 %v1260, 0.6931472
    %v1262 = vlog2.pop %v1081
    %v1263 = vmul.f32 %v1262, 0.6931472
    %v1264 = vlog2.pop %v1084
    %v1265 = vmul.f32 %v1264, 0.6931472
    %v1266 = vlog2.pop %v1087
    %v1267 = vmul.f32 %v1266, 0.6931472
    %v1268 = vlog2.pop %v1090
    %v1269 = vmul.f32 %v1268, 0.6931472
    %v1270 = vlog2.pop %v1093
    %v1271 = vmul.f32 %v1270, 0.6931472
    %v1272 = vlog2.pop %v1096
    %v1273 = vmul.f32 %v1272, 0.6931472
    %v1274 = vlog2.pop %v1099
    %v1275 = vmul.f32 %v1274, 0.6931472
    %v1276 = vlog2.pop %v1102
    %v1277 = vmul.f32 %v1276, 0.6931472
    %v1278 = vlog2.pop %v1105
    %v1279 = vmul.f32 %v1278, 0.6931472
    %v1280 = vlog2.pop %v1108
    %v1281 = vmul.f32 %v1280, 0.6931472
    %v1282 = vlog2.pop %v1111
    %v1283 = vmul.f32 %v1282, 0.6931472
    %v1284 = vlog2.pop %v1114
    %v1285 = vmul.f32 %v1284, 0.6931472
    %v1286 = vlog2.pop %v1117
    %v1287 = vmul.f32 %v1286, 0.6931472
    %v1288 = vlog2.pop %v1120
    %v1289 = vmul.f32 %v1288, 0.6931472
    %v1290 = vlog2.pop %v1123
    %v1291 = vmul.f32 %v1290, 0.6931472
    %v1292 = vlog2.pop %v1126
    %v1293 = vmul.f32 %v1292, 0.6931472
    %v1294 = vlog2.pop %v1129
    %v1295 = vmul.f32 %v1294, 0.6931472
    %v1296 = vlog2.pop %v1132
    %v1297 = vmul.f32 %v1296, 0.6931472
    %v1298 = vlog2.pop %v1135
    %v1299 = vmul.f32 %v1298, 0.6931472
    %v1300 = vlog2.pop %v1138
    %v1301 = vmul.f32 %v1300, 0.6931472
    %v1302 = vlog2.pop %v1141
    %v1303 = vmul.f32 %v1302, 0.6931472
    %v1304 = vlog2.pop %v1144
    %v1305 = vmul.f32 %v1304, 0.6931472
    %v1306 = vlog2.pop %v1147
    %v1307 = vmul.f32 %v1306, 0.6931472
    %v1308 = vlog2.pop %v1150
    %v1309 = vmul.f32 %v1308, 0.6931472
    %v1310 = vlog2.pop %v1153
    %v1311 = vmul.f32 %v1310, 0.6931472
    %v1312 = vlog2.pop %v1156
    %v1313 = vmul.f32 %v1312, 0.6931472
    %v1314 = vlog2.pop %v1159
    %v1315 = vmul.f32 %v1314, 0.6931472
    %v1316 = vlog2.pop %v1162
    %v1317 = vmul.f32 %v1316, 0.6931472
    %v1318 = vlog2.pop %v1165
    %v1319 = vmul.f32 %v1318, 0.6931472
    %v1320 = vlog2.pop %v1168
    %v1321 = vmul.f32 %v1320, 0.6931472
    %v1322 = vlog2.pop %v1171
    %v1323 = vmul.f32 %v1322, 0.6931472
    %v1324 = vlog2.pop %v1174
    %v1325 = vmul.f32 %v1324, 0.6931472
    %v1326 = vlog2.pop %v1177
    %v1327 = vmul.f32 %v1326, 0.6931472
    %v1328 = vlog2.pop %v1180
    %v1329 = vmul.f32 %v1328, 0.6931472
    %v1330 = vlog2.pop %v1183
    %v1331 = vmul.f32 %v1330, 0.6931472
    %v1332 = vlog2.pop %v1186
    %v1333 = vmul.f32 %v1332, 0.6931472
    %v1334 = vlog2.pop %v1189
    %v1335 = vmul.f32 %v1334, 0.6931472
    %v1336 = vlog2.pop %v1192
    %v1337 = vmul.f32 %v1336, 0.6931472
    %v1338 = vlog2.pop %v1195
    %v1339 = vmul.f32 %v1338, 0.6931472
    %v1340 = vlog2.pop %v1198
    %v1341 = vmul.f32 %v1340, 0.6931472
    %v1342 = vlog2.pop %v1201
    %v1343 = vmul.f32 %v1342, 0.6931472
    %v1344 = vlog2.pop %v1204
    %v1345 = vmul.f32 %v1344, 0.6931472
    %v1346 = vlog2.pop %v1207
    %v1347 = vmul.f32 %v1346, 0.6931472
    %v1348 = vlog2.pop %v1210
    %v1349 = vmul.f32 %v1348, 0.6931472
    %v1350 = vlog2.pop %v1213
    %v1351 = vmul.f32 %v1350, 0.6931472
    %v1352 = vlog2.pop %v1216
    %v1353 = vmul.f32 %v1352, 0.6931472
    %v1354 = vlog2.pop %v1219
    %v1355 = vmul.f32 %v1354, 0.6931472
    %v1356 = vlog2.pop %v1222
    %v1357 = vmul.f32 %v1356, 0.6931472
    %v1358 = vlog2.pop %v1225
    %v1359 = vmul.f32 %v1358, 0.6931472
    %v1360 = vlog2.pop %v1228
    %v1361 = vmul.f32 %v1360, 0.6931472
    %v1362 = vlog2.pop %v1231
    %v1363 = vmul.f32 %v1362, 0.6931472
    %v1364 = vlog2.pop %v1234
    %v1365 = vmul.f32 %v1364, 0.6931472
    %v1366 = vlog2.pop %v1237
    %v1367 = vmul.f32 %v1366, 0.6931472
    %v1368 = vlog2.pop %v1240
    %v1369 = vmul.f32 %v1368, 0.6931472
    %v1370 = vlog2.pop %v1243
    %v1371 = vmul.f32 %v1370, 0.6931472
    %v1372 = vsel %vm603, %v65, 0.0
    %v1373 = vsel %vm604, %v66, 0.0
    %v1374 = vsel %vm605, %v67, 0.0
    %v1375 = vsel %vm606, %v68, 0.0
    %v1376 = vsel %vm607, %v69, 0.0
    %v1377 = vsel %vm608, %v70, 0.0
    %v1378 = vsel %vm609, %v71, 0.0
    %v1379 = vsel %vm610, %v72, 0.0
    %v1380 = vsel %vm611, %v73, 0.0
    %v1381 = vsel %vm612, %v74, 0.0
    %v1382 = vsel %vm613, %v75, 0.0
    %v1383 = vsel %vm614, %v76, 0.0
    %v1384 = vsel %vm615, %v77, 0.0
    %v1385 = vsel %vm616, %v78, 0.0
    %v1386 = vsel %vm617, %v79, 0.0
    %v1387 = vsel %vm618, %v80, 0.0
    %v1388 = vsel %vm619, %v81, 0.0
    %v1389 = vsel %vm620, %v82, 0.0
    %v1390 = vsel %vm621, %v83, 0.0
    %v1391 = vsel %vm622, %v84, 0.0
    %v1392 = vsel %vm623, %v85, 0.0
    %v1393 = vsel %vm624, %v86, 0.0
    %v1394 = vsel %vm625, %v87, 0.0
    %v1395 = vsel %vm626, %v88, 0.0
    %v1396 = vsel %vm627, %v89, 0.0
    %v1397 = vsel %vm628, %v90, 0.0
    %v1398 = vsel %vm629, %v91, 0.0
    %v1399 = vsel %vm630, %v92, 0.0
    %v1400 = vsel %vm631, %v93, 0.0
    %v1401 = vsel %vm632, %v94, 0.0
    %v1402 = vsel %vm633, %v95, 0.0
    %v1403 = vsel %vm634, %v96, 0.0
    %v1404 = vsel %vm635, %v97, 0.0
    %v1405 = vsel %vm636, %v98, 0.0
    %v1406 = vsel %vm637, %v99, 0.0
    %v1407 = vsel %vm638, %v100, 0.0
    %v1408 = vsel %vm639, %v101, 0.0
    %v1409 = vsel %vm640, %v102, 0.0
    %v1410 = vsel %vm641, %v103, 0.0
    %v1411 = vsel %vm642, %v104, 0.0
    %v1412 = vsel %vm643, %v105, 0.0
    %v1413 = vsel %vm644, %v106, 0.0
    %v1414 = vsel %vm645, %v107, 0.0
    %v1415 = vsel %vm646, %v108, 0.0
    %v1416 = vsel %vm647, %v109, 0.0
    %v1417 = vsel %vm648, %v110, 0.0
    %v1418 = vsel %vm649, %v111, 0.0
    %v1419 = vsel %vm650, %v112, 0.0
    %v1420 = vsel %vm651, %v113, 0.0
    %v1421 = vsel %vm652, %v114, 0.0
    %v1422 = vsel %vm653, %v115, 0.0
    %v1423 = vsel %vm654, %v116, 0.0
    %v1424 = vsel %vm655, %v117, 0.0
    %v1425 = vsel %vm656, %v118, 0.0
    %v1426 = vsel %vm657, %v119, 0.0
    %v1427 = vsel %vm658, %v120, 0.0
    %v1428 = vsel %vm659, %v121, 0.0
    %v1429 = vsel %vm660, %v122, 0.0
    %v1430 = vsel %vm661, %v123, 0.0
    %v1431 = vsel %vm662, %v124, 0.0
    %v1432 = vsel %vm663, %v125, 0.0
    %v1433 = vsel %vm664, %v126, 0.0
    %v1434 = vsel %vm665, %v127, 0.0
    %v1435 = vsel %vm666, %v128, 0.0
    %v1436 = vsel %vm667, %v1372, 0.0
    %1437 = vadd.xlane.f32.xlu0 %v1436
    %v1438 = vpop.xlane.xlu0 %1437
    %v1439 = vsel %vm667, %v1373, 0.0
    %1440 = vadd.xlane.f32.xlu0 %v1439
    %v1441 = vpop.xlane.xlu0 %1440
    %v1442 = vsel %vm667, %v1374, 0.0
    %1443 = vadd.xlane.f32.xlu0 %v1442
    %v1444 = vpop.xlane.xlu0 %1443
    %v1445 = vsel %vm667, %v1375, 0.0
    %1446 = vadd.xlane.f32.xlu0 %v1445
    %v1447 = vpop.xlane.xlu0 %1446
    %v1448 = vsel %vm667, %v1376, 0.0
    %1449 = vadd.xlane.f32.xlu0 %v1448
    %v1450 = vpop.xlane.xlu0 %1449
    %v1451 = vsel %vm667, %v1377, 0.0
    %1452 = vadd.xlane.f32.xlu0 %v1451
    %v1453 = vpop.xlane.xlu0 %1452
    %v1454 = vsel %vm667, %v1378, 0.0
    %1455 = vadd.xlane.f32.xlu0 %v1454
    %v1456 = vpop.xlane.xlu0 %1455
    %v1457 = vsel %vm667, %v1379, 0.0
    %1458 = vadd.xlane.f32.xlu0 %v1457
    %v1459 = vpop.xlane.xlu0 %1458
    %v1460 = vsel %vm667, %v1380, 0.0
    %1461 = vadd.xlane.f32.xlu0 %v1460
    %v1462 = vpop.xlane.xlu0 %1461
    %v1463 = vsel %vm667, %v1381, 0.0
    %1464 = vadd.xlane.f32.xlu0 %v1463
    %v1465 = vpop.xlane.xlu0 %1464
    %v1466 = vsel %vm667, %v1382, 0.0
    %1467 = vadd.xlane.f32.xlu0 %v1466
    %v1468 = vpop.xlane.xlu0 %1467
    %v1469 = vsel %vm667, %v1383, 0.0
    %1470 = vadd.xlane.f32.xlu0 %v1469
    %v1471 = vpop.xlane.xlu0 %1470
    %v1472 = vsel %vm667, %v1384, 0.0
    %1473 = vadd.xlane.f32.xlu0 %v1472
    %v1474 = vpop.xlane.xlu0 %1473
    %v1475 = vsel %vm667, %v1385, 0.0
    %1476 = vadd.xlane.f32.xlu0 %v1475
    %v1477 = vpop.xlane.xlu0 %1476
    %v1478 = vsel %vm667, %v1386, 0.0
    %1479 = vadd.xlane.f32.xlu0 %v1478
    %v1480 = vpop.xlane.xlu0 %1479
    %v1481 = vsel %vm667, %v1387, 0.0
    %1482 = vadd.xlane.f32.xlu0 %v1481
    %v1483 = vpop.xlane.xlu0 %1482
    %v1484 = vsel %vm667, %v1388, 0.0
    %1485 = vadd.xlane.f32.xlu0 %v1484
    %v1486 = vpop.xlane.xlu0 %1485
    %v1487 = vsel %vm667, %v1389, 0.0
    %1488 = vadd.xlane.f32.xlu0 %v1487
    %v1489 = vpop.xlane.xlu0 %1488
    %v1490 = vsel %vm667, %v1390, 0.0
    %1491 = vadd.xlane.f32.xlu0 %v1490
    %v1492 = vpop.xlane.xlu0 %1491
    %v1493 = vsel %vm667, %v1391, 0.0
    %1494 = vadd.xlane.f32.xlu0 %v1493
    %v1495 = vpop.xlane.xlu0 %1494
    %v1496 = vsel %vm667, %v1392, 0.0
    %1497 = vadd.xlane.f32.xlu0 %v1496
    %v1498 = vpop.xlane.xlu0 %1497
    %v1499 = vsel %vm667, %v1393, 0.0
    %1500 = vadd.xlane.f32.xlu0 %v1499
    %v1501 = vpop.xlane.xlu0 %1500
    %v1502 = vsel %vm667, %v1394, 0.0
    %1503 = vadd.xlane.f32.xlu0 %v1502
    %v1504 = vpop.xlane.xlu0 %1503
    %v1505 = vsel %vm667, %v1395, 0.0
    %1506 = vadd.xlane.f32.xlu0 %v1505
    %v1507 = vpop.xlane.xlu0 %1506
    %v1508 = vsel %vm667, %v1396, 0.0
    %1509 = vadd.xlane.f32.xlu0 %v1508
    %v1510 = vpop.xlane.xlu0 %1509
    %v1511 = vsel %vm667, %v1397, 0.0
    %1512 = vadd.xlane.f32.xlu0 %v1511
    %v1513 = vpop.xlane.xlu0 %1512
    %v1514 = vsel %vm667, %v1398, 0.0
    %1515 = vadd.xlane.f32.xlu0 %v1514
    %v1516 = vpop.xlane.xlu0 %1515
    %v1517 = vsel %vm667, %v1399, 0.0
    %1518 = vadd.xlane.f32.xlu0 %v1517
    %v1519 = vpop.xlane.xlu0 %1518
    %v1520 = vsel %vm667, %v1400, 0.0
    %1521 = vadd.xlane.f32.xlu0 %v1520
    %v1522 = vpop.xlane.xlu0 %1521
    %v1523 = vsel %vm667, %v1401, 0.0
    %1524 = vadd.xlane.f32.xlu0 %v1523
    %v1525 = vpop.xlane.xlu0 %1524
    %v1526 = vsel %vm667, %v1402, 0.0
    %1527 = vadd.xlane.f32.xlu0 %v1526
    %v1528 = vpop.xlane.xlu0 %1527
    %v1529 = vsel %vm667, %v1403, 0.0
    %1530 = vadd.xlane.f32.xlu0 %v1529
    %v1531 = vpop.xlane.xlu0 %1530
    %v1532 = vsel %vm667, %v1404, 0.0
    %1533 = vadd.xlane.f32.xlu0 %v1532
    %v1534 = vpop.xlane.xlu0 %1533
    %v1535 = vsel %vm667, %v1405, 0.0
    %1536 = vadd.xlane.f32.xlu0 %v1535
    %v1537 = vpop.xlane.xlu0 %1536
    %v1538 = vsel %vm667, %v1406, 0.0
    %1539 = vadd.xlane.f32.xlu0 %v1538
    %v1540 = vpop.xlane.xlu0 %1539
    %v1541 = vsel %vm667, %v1407, 0.0
    %1542 = vadd.xlane.f32.xlu0 %v1541
    %v1543 = vpop.xlane.xlu0 %1542
    %v1544 = vsel %vm667, %v1408, 0.0
    %1545 = vadd.xlane.f32.xlu0 %v1544
    %v1546 = vpop.xlane.xlu0 %1545
    %v1547 = vsel %vm667, %v1409, 0.0
    %1548 = vadd.xlane.f32.xlu0 %v1547
    %v1549 = vpop.xlane.xlu0 %1548
    %v1550 = vsel %vm667, %v1410, 0.0
    %1551 = vadd.xlane.f32.xlu0 %v1550
    %v1552 = vpop.xlane.xlu0 %1551
    %v1553 = vsel %vm667, %v1411, 0.0
    %1554 = vadd.xlane.f32.xlu0 %v1553
    %v1555 = vpop.xlane.xlu0 %1554
    %v1556 = vsel %vm667, %v1412, 0.0
    %1557 = vadd.xlane.f32.xlu0 %v1556
    %v1558 = vpop.xlane.xlu0 %1557
    %v1559 = vsel %vm667, %v1413, 0.0
    %1560 = vadd.xlane.f32.xlu0 %v1559
    %v1561 = vpop.xlane.xlu0 %1560
    %v1562 = vsel %vm667, %v1414, 0.0
    %1563 = vadd.xlane.f32.xlu0 %v1562
    %v1564 = vpop.xlane.xlu0 %1563
    %v1565 = vsel %vm667, %v1415, 0.0
    %1566 = vadd.xlane.f32.xlu0 %v1565
    %v1567 = vpop.xlane.xlu0 %1566
    %v1568 = vsel %vm667, %v1416, 0.0
    %1569 = vadd.xlane.f32.xlu0 %v1568
    %v1570 = vpop.xlane.xlu0 %1569
    %v1571 = vsel %vm667, %v1417, 0.0
    %1572 = vadd.xlane.f32.xlu0 %v1571
    %v1573 = vpop.xlane.xlu0 %1572
    %v1574 = vsel %vm667, %v1418, 0.0
    %1575 = vadd.xlane.f32.xlu0 %v1574
    %v1576 = vpop.xlane.xlu0 %1575
    %v1577 = vsel %vm667, %v1419, 0.0
    %1578 = vadd.xlane.f32.xlu0 %v1577
    %v1579 = vpop.xlane.xlu0 %1578
    %v1580 = vsel %vm667, %v1420, 0.0
    %1581 = vadd.xlane.f32.xlu0 %v1580
    %v1582 = vpop.xlane.xlu0 %1581
    %v1583 = vsel %vm667, %v1421, 0.0
    %1584 = vadd.xlane.f32.xlu0 %v1583
    %v1585 = vpop.xlane.xlu0 %1584
    %v1586 = vsel %vm667, %v1422, 0.0
    %1587 = vadd.xlane.f32.xlu0 %v1586
    %v1588 = vpop.xlane.xlu0 %1587
    %v1589 = vsel %vm667, %v1423, 0.0
    %1590 = vadd.xlane.f32.xlu0 %v1589
    %v1591 = vpop.xlane.xlu0 %1590
    %v1592 = vsel %vm667, %v1424, 0.0
    %1593 = vadd.xlane.f32.xlu0 %v1592
    %v1594 = vpop.xlane.xlu0 %1593
    %v1595 = vsel %vm667, %v1425, 0.0
    %1596 = vadd.xlane.f32.xlu0 %v1595
    %v1597 = vpop.xlane.xlu0 %1596
    %v1598 = vsel %vm667, %v1426, 0.0
    %1599 = vadd.xlane.f32.xlu0 %v1598
    %v1600 = vpop.xlane.xlu0 %1599
    %v1601 = vsel %vm667, %v1427, 0.0
    %1602 = vadd.xlane.f32.xlu0 %v1601
    %v1603 = vpop.xlane.xlu0 %1602
    %v1604 = vsel %vm667, %v1428, 0.0
    %1605 = vadd.xlane.f32.xlu0 %v1604
    %v1606 = vpop.xlane.xlu0 %1605
    %v1607 = vsel %vm667, %v1429, 0.0
    %1608 = vadd.xlane.f32.xlu0 %v1607
    %v1609 = vpop.xlane.xlu0 %1608
    %v1610 = vsel %vm667, %v1430, 0.0
    %1611 = vadd.xlane.f32.xlu0 %v1610
    %v1612 = vpop.xlane.xlu0 %1611
    %v1613 = vsel %vm667, %v1431, 0.0
    %1614 = vadd.xlane.f32.xlu0 %v1613
    %v1615 = vpop.xlane.xlu0 %1614
    %v1616 = vsel %vm667, %v1432, 0.0
    %1617 = vadd.xlane.f32.xlu0 %v1616
    %v1618 = vpop.xlane.xlu0 %1617
    %v1619 = vsel %vm667, %v1433, 0.0
    %1620 = vadd.xlane.f32.xlu0 %v1619
    %v1621 = vpop.xlane.xlu0 %1620
    %v1622 = vsel %vm667, %v1434, 0.0
    %1623 = vadd.xlane.f32.xlu0 %v1622
    %v1624 = vpop.xlane.xlu0 %1623
    %v1625 = vsel %vm667, %v1435, 0.0
    %1626 = vadd.xlane.f32.xlu0 %v1625
    %v1627 = vpop.xlane.xlu0 %1626
    %v1628 = vsub.f32 %v1438, %v670
    %v1629 = vsub.f32 %v1441, %v673
    %v1630 = vsub.f32 %v1444, %v676
    %v1631 = vsub.f32 %v1447, %v679
    %v1632 = vsub.f32 %v1450, %v682
    %v1633 = vsub.f32 %v1453, %v685
    %v1634 = vsub.f32 %v1456, %v688
    %v1635 = vsub.f32 %v1459, %v691
    %v1636 = vsub.f32 %v1462, %v694
    %v1637 = vsub.f32 %v1465, %v697
    %v1638 = vsub.f32 %v1468, %v700
    %v1639 = vsub.f32 %v1471, %v703
    %v1640 = vsub.f32 %v1474, %v706
    %v1641 = vsub.f32 %v1477, %v709
    %v1642 = vsub.f32 %v1480, %v712
    %v1643 = vsub.f32 %v1483, %v715
    %v1644 = vsub.f32 %v1486, %v718
    %v1645 = vsub.f32 %v1489, %v721
    %v1646 = vsub.f32 %v1492, %v724
    %v1647 = vsub.f32 %v1495, %v727
    %v1648 = vsub.f32 %v1498, %v730
    %v1649 = vsub.f32 %v1501, %v733
    %v1650 = vsub.f32 %v1504, %v736
    %v1651 = vsub.f32 %v1507, %v739
    %v1652 = vsub.f32 %v1510, %v742
    %v1653 = vsub.f32 %v1513, %v745
    %v1654 = vsub.f32 %v1516, %v748
    %v1655 = vsub.f32 %v1519, %v751
    %v1656 = vsub.f32 %v1522, %v754
    %v1657 = vsub.f32 %v1525, %v757
    %v1658 = vsub.f32 %v1528, %v760
    %v1659 = vsub.f32 %v1531, %v763
    %v1660 = vsub.f32 %v1534, %v766
    %v1661 = vsub.f32 %v1537, %v769
    %v1662 = vsub.f32 %v1540, %v772
    %v1663 = vsub.f32 %v1543, %v775
    %v1664 = vsub.f32 %v1546, %v778
    %v1665 = vsub.f32 %v1549, %v781
    %v1666 = vsub.f32 %v1552, %v784
    %v1667 = vsub.f32 %v1555, %v787
    %v1668 = vsub.f32 %v1558, %v790
    %v1669 = vsub.f32 %v1561, %v793
    %v1670 = vsub.f32 %v1564, %v796
    %v1671 = vsub.f32 %v1567, %v799
    %v1672 = vsub.f32 %v1570, %v802
    %v1673 = vsub.f32 %v1573, %v805
    %v1674 = vsub.f32 %v1576, %v808
    %v1675 = vsub.f32 %v1579, %v811
    %v1676 = vsub.f32 %v1582, %v814
    %v1677 = vsub.f32 %v1585, %v817
    %v1678 = vsub.f32 %v1588, %v820
    %v1679 = vsub.f32 %v1591, %v823
    %v1680 = vsub.f32 %v1594, %v826
    %v1681 = vsub.f32 %v1597, %v829
    %v1682 = vsub.f32 %v1600, %v832
    %v1683 = vsub.f32 %v1603, %v835
    %v1684 = vsub.f32 %v1606, %v838
    %v1685 = vsub.f32 %v1609, %v841
    %v1686 = vsub.f32 %v1612, %v844
    %v1687 = vsub.f32 %v1615, %v847
    %v1688 = vsub.f32 %v1618, %v850
    %v1689 = vsub.f32 %v1621, %v853
    %v1690 = vsub.f32 %v1624, %v856
    %v1691 = vsub.f32 %v1627, %v859
    %v1692 = vsub.f32 %v1628, %v1245
    %v1693 = vsub.f32 %v1629, %v1247
    %v1694 = vsub.f32 %v1630, %v1249
    %v1695 = vsub.f32 %v1631, %v1251
    %v1696 = vsub.f32 %v1632, %v1253
    %v1697 = vsub.f32 %v1633, %v1255
    %v1698 = vsub.f32 %v1634, %v1257
    %v1699 = vsub.f32 %v1635, %v1259
    %v1700 = vsub.f32 %v1636, %v1261
    %v1701 = vsub.f32 %v1637, %v1263
    %v1702 = vsub.f32 %v1638, %v1265
    %v1703 = vsub.f32 %v1639, %v1267
    %v1704 = vsub.f32 %v1640, %v1269
    %v1705 = vsub.f32 %v1641, %v1271
    %v1706 = vsub.f32 %v1642, %v1273
    %v1707 = vsub.f32 %v1643, %v1275
    %v1708 = vsub.f32 %v1644, %v1277
    %v1709 = vsub.f32 %v1645, %v1279
    %v1710 = vsub.f32 %v1646, %v1281
    %v1711 = vsub.f32 %v1647, %v1283
    %v1712 = vsub.f32 %v1648, %v1285
    %v1713 = vsub.f32 %v1649, %v1287
    %v1714 = vsub.f32 %v1650, %v1289
    %v1715 = vsub.f32 %v1651, %v1291
    %v1716 = vsub.f32 %v1652, %v1293
    %v1717 = vsub.f32 %v1653, %v1295
    %v1718 = vsub.f32 %v1654, %v1297
    %v1719 = vsub.f32 %v1655, %v1299
    %v1720 = vsub.f32 %v1656, %v1301
    %v1721 = vsub.f32 %v1657, %v1303
    %v1722 = vsub.f32 %v1658, %v1305
    %v1723 = vsub.f32 %v1659, %v1307
    %v1724 = vsub.f32 %v1660, %v1309
    %v1725 = vsub.f32 %v1661, %v1311
    %v1726 = vsub.f32 %v1662, %v1313
    %v1727 = vsub.f32 %v1663, %v1315
    %v1728 = vsub.f32 %v1664, %v1317
    %v1729 = vsub.f32 %v1665, %v1319
    %v1730 = vsub.f32 %v1666, %v1321
    %v1731 = vsub.f32 %v1667, %v1323
    %v1732 = vsub.f32 %v1668, %v1325
    %v1733 = vsub.f32 %v1669, %v1327
    %v1734 = vsub.f32 %v1670, %v1329
    %v1735 = vsub.f32 %v1671, %v1331
    %v1736 = vsub.f32 %v1672, %v1333
    %v1737 = vsub.f32 %v1673, %v1335
    %v1738 = vsub.f32 %v1674, %v1337
    %v1739 = vsub.f32 %v1675, %v1339
    %v1740 = vsub.f32 %v1676, %v1341
    %v1741 = vsub.f32 %v1677, %v1343
    %v1742 = vsub.f32 %v1678, %v1345
    %v1743 = vsub.f32 %v1679, %v1347
    %v1744 = vsub.f32 %v1680, %v1349
    %v1745 = vsub.f32 %v1681, %v1351
    %v1746 = vsub.f32 %v1682, %v1353
    %v1747 = vsub.f32 %v1683, %v1355
    %v1748 = vsub.f32 %v1684, %v1357
    %v1749 = vsub.f32 %v1685, %v1359
    %v1750 = vsub.f32 %v1686, %v1361
    %v1751 = vsub.f32 %v1687, %v1363
    %v1752 = vsub.f32 %v1688, %v1365
    %v1753 = vsub.f32 %v1689, %v1367
    %v1754 = vsub.f32 %v1690, %v1369
    %v1755 = vsub.f32 %v1691, %v1371
    %v1756 = vmul.f32 %v1692, 1.442695
    %v1757 = vpow.pop %v1756
    %v1758 = vmul.f32 %v1693, 1.442695
    %v1759 = vpow.pop %v1758
    %v1760 = vmul.f32 %v1694, 1.442695
    %v1761 = vpow.pop %v1760
    %v1762 = vmul.f32 %v1695, 1.442695
    %v1763 = vpow.pop %v1762
    %v1764 = vmul.f32 %v1696, 1.442695
    %v1765 = vpow.pop %v1764
    %v1766 = vmul.f32 %v1697, 1.442695
    %v1767 = vpow.pop %v1766
    %v1768 = vmul.f32 %v1698, 1.442695
    %v1769 = vpow.pop %v1768
    %v1770 = vmul.f32 %v1699, 1.442695
    %v1771 = vpow.pop %v1770
    %v1772 = vmul.f32 %v1700, 1.442695
    %v1773 = vpow.pop %v1772
    %v1774 = vmul.f32 %v1701, 1.442695
    %v1775 = vpow.pop %v1774
    %v1776 = vmul.f32 %v1702, 1.442695
    %v1777 = vpow.pop %v1776
    %v1778 = vmul.f32 %v1703, 1.442695
    %v1779 = vpow.pop %v1778
    %v1780 = vmul.f32 %v1704, 1.442695
    %v1781 = vpow.pop %v1780
    %v1782 = vmul.f32 %v1705, 1.442695
    %v1783 = vpow.pop %v1782
    %v1784 = vmul.f32 %v1706, 1.442695
    %v1785 = vpow.pop %v1784
    %v1786 = vmul.f32 %v1707, 1.442695
    %v1787 = vpow.pop %v1786
    %v1788 = vmul.f32 %v1708, 1.442695
    %v1789 = vpow.pop %v1788
    %v1790 = vmul.f32 %v1709, 1.442695
    %v1791 = vpow.pop %v1790
    %v1792 = vmul.f32 %v1710, 1.442695
    %v1793 = vpow.pop %v1792
    %v1794 = vmul.f32 %v1711, 1.442695
    %v1795 = vpow.pop %v1794
    %v1796 = vmul.f32 %v1712, 1.442695
    %v1797 = vpow.pop %v1796
    %v1798 = vmul.f32 %v1713, 1.442695
    %v1799 = vpow.pop %v1798
    %v1800 = vmul.f32 %v1714, 1.442695
    %v1801 = vpow.pop %v1800
    %v1802 = vmul.f32 %v1715, 1.442695
    %v1803 = vpow.pop %v1802
    %v1804 = vmul.f32 %v1716, 1.442695
    %v1805 = vpow.pop %v1804
    %v1806 = vmul.f32 %v1717, 1.442695
    %v1807 = vpow.pop %v1806
    %v1808 = vmul.f32 %v1718, 1.442695
    %v1809 = vpow.pop %v1808
    %v1810 = vmul.f32 %v1719, 1.442695
    %v1811 = vpow.pop %v1810
    %v1812 = vmul.f32 %v1720, 1.442695
    %v1813 = vpow.pop %v1812
    %v1814 = vmul.f32 %v1721, 1.442695
    %v1815 = vpow.pop %v1814
    %v1816 = vmul.f32 %v1722, 1.442695
    %v1817 = vpow.pop %v1816
    %v1818 = vmul.f32 %v1723, 1.442695
    %v1819 = vpow.pop %v1818
    %v1820 = vmul.f32 %v1724, 1.442695
    %v1821 = vpow.pop %v1820
    %v1822 = vmul.f32 %v1725, 1.442695
    %v1823 = vpow.pop %v1822
    %v1824 = vmul.f32 %v1726, 1.442695
    %v1825 = vpow.pop %v1824
    %v1826 = vmul.f32 %v1727, 1.442695
    %v1827 = vpow.pop %v1826
    %v1828 = vmul.f32 %v1728, 1.442695
    %v1829 = vpow.pop %v1828
    %v1830 = vmul.f32 %v1729, 1.442695
    %v1831 = vpow.pop %v1830
    %v1832 = vmul.f32 %v1730, 1.442695
    %v1833 = vpow.pop %v1832
    %v1834 = vmul.f32 %v1731, 1.442695
    %v1835 = vpow.pop %v1834
    %v1836 = vmul.f32 %v1732, 1.442695
    %v1837 = vpow.pop %v1836
    %v1838 = vmul.f32 %v1733, 1.442695
    %v1839 = vpow.pop %v1838
    %v1840 = vmul.f32 %v1734, 1.442695
    %v1841 = vpow.pop %v1840
    %v1842 = vmul.f32 %v1735, 1.442695
    %v1843 = vpow.pop %v1842
    %v1844 = vmul.f32 %v1736, 1.442695
    %v1845 = vpow.pop %v1844
    %v1846 = vmul.f32 %v1737, 1.442695
    %v1847 = vpow.pop %v1846
    %v1848 = vmul.f32 %v1738, 1.442695
    %v1849 = vpow.pop %v1848
    %v1850 = vmul.f32 %v1739, 1.442695
    %v1851 = vpow.pop %v1850
    %v1852 = vmul.f32 %v1740, 1.442695
    %v1853 = vpow.pop %v1852
    %v1854 = vmul.f32 %v1741, 1.442695
    %v1855 = vpow.pop %v1854
    %v1856 = vmul.f32 %v1742, 1.442695
    %v1857 = vpow.pop %v1856
    %v1858 = vmul.f32 %v1743, 1.442695
    %v1859 = vpow.pop %v1858
    %v1860 = vmul.f32 %v1744, 1.442695
    %v1861 = vpow.pop %v1860
    %v1862 = vmul.f32 %v1745, 1.442695
    %v1863 = vpow.pop %v1862
    %v1864 = vmul.f32 %v1746, 1.442695
    %v1865 = vpow.pop %v1864
    %v1866 = vmul.f32 %v1747, 1.442695
    %v1867 = vpow.pop %v1866
    %v1868 = vmul.f32 %v1748, 1.442695
    %v1869 = vpow.pop %v1868
    %v1870 = vmul.f32 %v1749, 1.442695
    %v1871 = vpow.pop %v1870
    %v1872 = vmul.f32 %v1750, 1.442695
    %v1873 = vpow.pop %v1872
    %v1874 = vmul.f32 %v1751, 1.442695
    %v1875 = vpow.pop %v1874
    %v1876 = vmul.f32 %v1752, 1.442695
    %v1877 = vpow.pop %v1876
    %v1878 = vmul.f32 %v1753, 1.442695
    %v1879 = vpow.pop %v1878
    %v1880 = vmul.f32 %v1754, 1.442695
    %v1881 = vpow.pop %v1880
    %v1882 = vmul.f32 %v1755, 1.442695
    %v1883 = vpow.pop %v1882
    %v1884 = vsel %vm667, %v65, 0.0
    %1885 = vadd.xlane.f32.xlu0 %v1884
    %v1886 = vpop.xlane.xlu0 %1885
    %v1887 = vsel %vm667, %v66, 0.0
    %1888 = vadd.xlane.f32.xlu0 %v1887
    %v1889 = vpop.xlane.xlu0 %1888
    %v1890 = vsel %vm667, %v67, 0.0
    %1891 = vadd.xlane.f32.xlu0 %v1890
    %v1892 = vpop.xlane.xlu0 %1891
    %v1893 = vsel %vm667, %v68, 0.0
    %1894 = vadd.xlane.f32.xlu0 %v1893
    %v1895 = vpop.xlane.xlu0 %1894
    %v1896 = vsel %vm667, %v69, 0.0
    %1897 = vadd.xlane.f32.xlu0 %v1896
    %v1898 = vpop.xlane.xlu0 %1897
    %v1899 = vsel %vm667, %v70, 0.0
    %1900 = vadd.xlane.f32.xlu0 %v1899
    %v1901 = vpop.xlane.xlu0 %1900
    %v1902 = vsel %vm667, %v71, 0.0
    %1903 = vadd.xlane.f32.xlu0 %v1902
    %v1904 = vpop.xlane.xlu0 %1903
    %v1905 = vsel %vm667, %v72, 0.0
    %1906 = vadd.xlane.f32.xlu0 %v1905
    %v1907 = vpop.xlane.xlu0 %1906
    %v1908 = vsel %vm667, %v73, 0.0
    %1909 = vadd.xlane.f32.xlu0 %v1908
    %v1910 = vpop.xlane.xlu0 %1909
    %v1911 = vsel %vm667, %v74, 0.0
    %1912 = vadd.xlane.f32.xlu0 %v1911
    %v1913 = vpop.xlane.xlu0 %1912
    %v1914 = vsel %vm667, %v75, 0.0
    %1915 = vadd.xlane.f32.xlu0 %v1914
    %v1916 = vpop.xlane.xlu0 %1915
    %v1917 = vsel %vm667, %v76, 0.0
    %1918 = vadd.xlane.f32.xlu0 %v1917
    %v1919 = vpop.xlane.xlu0 %1918
    %v1920 = vsel %vm667, %v77, 0.0
    %1921 = vadd.xlane.f32.xlu0 %v1920
    %v1922 = vpop.xlane.xlu0 %1921
    %v1923 = vsel %vm667, %v78, 0.0
    %1924 = vadd.xlane.f32.xlu0 %v1923
    %v1925 = vpop.xlane.xlu0 %1924
    %v1926 = vsel %vm667, %v79, 0.0
    %1927 = vadd.xlane.f32.xlu0 %v1926
    %v1928 = vpop.xlane.xlu0 %1927
    %v1929 = vsel %vm667, %v80, 0.0
    %1930 = vadd.xlane.f32.xlu0 %v1929
    %v1931 = vpop.xlane.xlu0 %1930
    %v1932 = vsel %vm667, %v81, 0.0
    %1933 = vadd.xlane.f32.xlu0 %v1932
    %v1934 = vpop.xlane.xlu0 %1933
    %v1935 = vsel %vm667, %v82, 0.0
    %1936 = vadd.xlane.f32.xlu0 %v1935
    %v1937 = vpop.xlane.xlu0 %1936
    %v1938 = vsel %vm667, %v83, 0.0
    %1939 = vadd.xlane.f32.xlu0 %v1938
    %v1940 = vpop.xlane.xlu0 %1939
    %v1941 = vsel %vm667, %v84, 0.0
    %1942 = vadd.xlane.f32.xlu0 %v1941
    %v1943 = vpop.xlane.xlu0 %1942
    %v1944 = vsel %vm667, %v85, 0.0
    %1945 = vadd.xlane.f32.xlu0 %v1944
    %v1946 = vpop.xlane.xlu0 %1945
    %v1947 = vsel %vm667, %v86, 0.0
    %1948 = vadd.xlane.f32.xlu0 %v1947
    %v1949 = vpop.xlane.xlu0 %1948
    %v1950 = vsel %vm667, %v87, 0.0
    %1951 = vadd.xlane.f32.xlu0 %v1950
    %v1952 = vpop.xlane.xlu0 %1951
    %v1953 = vsel %vm667, %v88, 0.0
    %1954 = vadd.xlane.f32.xlu0 %v1953
    %v1955 = vpop.xlane.xlu0 %1954
    %v1956 = vsel %vm667, %v89, 0.0
    %1957 = vadd.xlane.f32.xlu0 %v1956
    %v1958 = vpop.xlane.xlu0 %1957
    %v1959 = vsel %vm667, %v90, 0.0
    %1960 = vadd.xlane.f32.xlu0 %v1959
    %v1961 = vpop.xlane.xlu0 %1960
    %v1962 = vsel %vm667, %v91, 0.0
    %1963 = vadd.xlane.f32.xlu0 %v1962
    %v1964 = vpop.xlane.xlu0 %1963
    %v1965 = vsel %vm667, %v92, 0.0
    %1966 = vadd.xlane.f32.xlu0 %v1965
    %v1967 = vpop.xlane.xlu0 %1966
    %v1968 = vsel %vm667, %v93, 0.0
    %1969 = vadd.xlane.f32.xlu0 %v1968
    %v1970 = vpop.xlane.xlu0 %1969
    %v1971 = vsel %vm667, %v94, 0.0
    %1972 = vadd.xlane.f32.xlu0 %v1971
    %v1973 = vpop.xlane.xlu0 %1972
    %v1974 = vsel %vm667, %v95, 0.0
    %1975 = vadd.xlane.f32.xlu0 %v1974
    %v1976 = vpop.xlane.xlu0 %1975
    %v1977 = vsel %vm667, %v96, 0.0
    %1978 = vadd.xlane.f32.xlu0 %v1977
    %v1979 = vpop.xlane.xlu0 %1978
    %v1980 = vsel %vm667, %v97, 0.0
    %1981 = vadd.xlane.f32.xlu0 %v1980
    %v1982 = vpop.xlane.xlu0 %1981
    %v1983 = vsel %vm667, %v98, 0.0
    %1984 = vadd.xlane.f32.xlu0 %v1983
    %v1985 = vpop.xlane.xlu0 %1984
    %v1986 = vsel %vm667, %v99, 0.0
    %1987 = vadd.xlane.f32.xlu0 %v1986
    %v1988 = vpop.xlane.xlu0 %1987
    %v1989 = vsel %vm667, %v100, 0.0
    %1990 = vadd.xlane.f32.xlu0 %v1989
    %v1991 = vpop.xlane.xlu0 %1990
    %v1992 = vsel %vm667, %v101, 0.0
    %1993 = vadd.xlane.f32.xlu0 %v1992
    %v1994 = vpop.xlane.xlu0 %1993
    %v1995 = vsel %vm667, %v102, 0.0
    %1996 = vadd.xlane.f32.xlu0 %v1995
    %v1997 = vpop.xlane.xlu0 %1996
    %v1998 = vsel %vm667, %v103, 0.0
    %1999 = vadd.xlane.f32.xlu0 %v1998
    %v2000 = vpop.xlane.xlu0 %1999
    %v2001 = vsel %vm667, %v104, 0.0
    %2002 = vadd.xlane.f32.xlu0 %v2001
    %v2003 = vpop.xlane.xlu0 %2002
    %v2004 = vsel %vm667, %v105, 0.0
    %2005 = vadd.xlane.f32.xlu0 %v2004
    %v2006 = vpop.xlane.xlu0 %2005
    %v2007 = vsel %vm667, %v106, 0.0
    %2008 = vadd.xlane.f32.xlu0 %v2007
    %v2009 = vpop.xlane.xlu0 %2008
    %v2010 = vsel %vm667, %v107, 0.0
    %2011 = vadd.xlane.f32.xlu0 %v2010
    %v2012 = vpop.xlane.xlu0 %2011
    %v2013 = vsel %vm667, %v108, 0.0
    %2014 = vadd.xlane.f32.xlu0 %v2013
    %v2015 = vpop.xlane.xlu0 %2014
    %v2016 = vsel %vm667, %v109, 0.0
    %2017 = vadd.xlane.f32.xlu0 %v2016
    %v2018 = vpop.xlane.xlu0 %2017
    %v2019 = vsel %vm667, %v110, 0.0
    %2020 = vadd.xlane.f32.xlu0 %v2019
    %v2021 = vpop.xlane.xlu0 %2020
    %v2022 = vsel %vm667, %v111, 0.0
    %2023 = vadd.xlane.f32.xlu0 %v2022
    %v2024 = vpop.xlane.xlu0 %2023
    %v2025 = vsel %vm667, %v112, 0.0
    %2026 = vadd.xlane.f32.xlu0 %v2025
    %v2027 = vpop.xlane.xlu0 %2026
    %v2028 = vsel %vm667, %v113, 0.0
    %2029 = vadd.xlane.f32.xlu0 %v2028
    %v2030 = vpop.xlane.xlu0 %2029
    %v2031 = vsel %vm667, %v114, 0.0
    %2032 = vadd.xlane.f32.xlu0 %v2031
    %v2033 = vpop.xlane.xlu0 %2032
    %v2034 = vsel %vm667, %v115, 0.0
    %2035 = vadd.xlane.f32.xlu0 %v2034
    %v2036 = vpop.xlane.xlu0 %2035
    %v2037 = vsel %vm667, %v116, 0.0
    %2038 = vadd.xlane.f32.xlu0 %v2037
    %v2039 = vpop.xlane.xlu0 %2038
    %v2040 = vsel %vm667, %v117, 0.0
    %2041 = vadd.xlane.f32.xlu0 %v2040
    %v2042 = vpop.xlane.xlu0 %2041
    %v2043 = vsel %vm667, %v118, 0.0
    %2044 = vadd.xlane.f32.xlu0 %v2043
    %v2045 = vpop.xlane.xlu0 %2044
    %v2046 = vsel %vm667, %v119, 0.0
    %2047 = vadd.xlane.f32.xlu0 %v2046
    %v2048 = vpop.xlane.xlu0 %2047
    %v2049 = vsel %vm667, %v120, 0.0
    %2050 = vadd.xlane.f32.xlu0 %v2049
    %v2051 = vpop.xlane.xlu0 %2050
    %v2052 = vsel %vm667, %v121, 0.0
    %2053 = vadd.xlane.f32.xlu0 %v2052
    %v2054 = vpop.xlane.xlu0 %2053
    %v2055 = vsel %vm667, %v122, 0.0
    %2056 = vadd.xlane.f32.xlu0 %v2055
    %v2057 = vpop.xlane.xlu0 %2056
    %v2058 = vsel %vm667, %v123, 0.0
    %2059 = vadd.xlane.f32.xlu0 %v2058
    %v2060 = vpop.xlane.xlu0 %2059
    %v2061 = vsel %vm667, %v124, 0.0
    %2062 = vadd.xlane.f32.xlu0 %v2061
    %v2063 = vpop.xlane.xlu0 %2062
    %v2064 = vsel %vm667, %v125, 0.0
    %2065 = vadd.xlane.f32.xlu0 %v2064
    %v2066 = vpop.xlane.xlu0 %2065
    %v2067 = vsel %vm667, %v126, 0.0
    %2068 = vadd.xlane.f32.xlu0 %v2067
    %v2069 = vpop.xlane.xlu0 %2068
    %v2070 = vsel %vm667, %v127, 0.0
    %2071 = vadd.xlane.f32.xlu0 %v2070
    %v2072 = vpop.xlane.xlu0 %2071
    %v2073 = vsel %vm667, %v128, 0.0
    %2074 = vadd.xlane.f32.xlu0 %v2073
    %v2075 = vpop.xlane.xlu0 %2074
    %v2076 = vadd.f32 %v670, %v1245
    %v2077 = vadd.f32 %v673, %v1247
    %v2078 = vadd.f32 %v676, %v1249
    %v2079 = vadd.f32 %v679, %v1251
    %v2080 = vadd.f32 %v682, %v1253
    %v2081 = vadd.f32 %v685, %v1255
    %v2082 = vadd.f32 %v688, %v1257
    %v2083 = vadd.f32 %v691, %v1259
    %v2084 = vadd.f32 %v694, %v1261
    %v2085 = vadd.f32 %v697, %v1263
    %v2086 = vadd.f32 %v700, %v1265
    %v2087 = vadd.f32 %v703, %v1267
    %v2088 = vadd.f32 %v706, %v1269
    %v2089 = vadd.f32 %v709, %v1271
    %v2090 = vadd.f32 %v712, %v1273
    %v2091 = vadd.f32 %v715, %v1275
    %v2092 = vadd.f32 %v718, %v1277
    %v2093 = vadd.f32 %v721, %v1279
    %v2094 = vadd.f32 %v724, %v1281
    %v2095 = vadd.f32 %v727, %v1283
    %v2096 = vadd.f32 %v730, %v1285
    %v2097 = vadd.f32 %v733, %v1287
    %v2098 = vadd.f32 %v736, %v1289
    %v2099 = vadd.f32 %v739, %v1291
    %v2100 = vadd.f32 %v742, %v1293
    %v2101 = vadd.f32 %v745, %v1295
    %v2102 = vadd.f32 %v748, %v1297
    %v2103 = vadd.f32 %v751, %v1299
    %v2104 = vadd.f32 %v754, %v1301
    %v2105 = vadd.f32 %v757, %v1303
    %v2106 = vadd.f32 %v760, %v1305
    %v2107 = vadd.f32 %v763, %v1307
    %v2108 = vadd.f32 %v766, %v1309
    %v2109 = vadd.f32 %v769, %v1311
    %v2110 = vadd.f32 %v772, %v1313
    %v2111 = vadd.f32 %v775, %v1315
    %v2112 = vadd.f32 %v778, %v1317
    %v2113 = vadd.f32 %v781, %v1319
    %v2114 = vadd.f32 %v784, %v1321
    %v2115 = vadd.f32 %v787, %v1323
    %v2116 = vadd.f32 %v790, %v1325
    %v2117 = vadd.f32 %v793, %v1327
    %v2118 = vadd.f32 %v796, %v1329
    %v2119 = vadd.f32 %v799, %v1331
    %v2120 = vadd.f32 %v802, %v1333
    %v2121 = vadd.f32 %v805, %v1335
    %v2122 = vadd.f32 %v808, %v1337
    %v2123 = vadd.f32 %v811, %v1339
    %v2124 = vadd.f32 %v814, %v1341
    %v2125 = vadd.f32 %v817, %v1343
    %v2126 = vadd.f32 %v820, %v1345
    %v2127 = vadd.f32 %v823, %v1347
    %v2128 = vadd.f32 %v826, %v1349
    %v2129 = vadd.f32 %v829, %v1351
    %v2130 = vadd.f32 %v832, %v1353
    %v2131 = vadd.f32 %v835, %v1355
    %v2132 = vadd.f32 %v838, %v1357
    %v2133 = vadd.f32 %v841, %v1359
    %v2134 = vadd.f32 %v844, %v1361
    %v2135 = vadd.f32 %v847, %v1363
    %v2136 = vadd.f32 %v850, %v1365
    %v2137 = vadd.f32 %v853, %v1367
    %v2138 = vadd.f32 %v856, %v1369
    %v2139 = vadd.f32 %v859, %v1371
    %v2140 = vmul.f32 %v2076, 32.0
    %v2141 = vmul.f32 %v2077, 32.0
    %v2142 = vmul.f32 %v2078, 32.0
    %v2143 = vmul.f32 %v2079, 32.0
    %v2144 = vmul.f32 %v2080, 32.0
    %v2145 = vmul.f32 %v2081, 32.0
    %v2146 = vmul.f32 %v2082, 32.0
    %v2147 = vmul.f32 %v2083, 32.0
    %v2148 = vmul.f32 %v2084, 32.0
    %v2149 = vmul.f32 %v2085, 32.0
    %v2150 = vmul.f32 %v2086, 32.0
    %v2151 = vmul.f32 %v2087, 32.0
    %v2152 = vmul.f32 %v2088, 32.0
    %v2153 = vmul.f32 %v2089, 32.0
    %v2154 = vmul.f32 %v2090, 32.0
    %v2155 = vmul.f32 %v2091, 32.0
    %v2156 = vmul.f32 %v2092, 32.0
    %v2157 = vmul.f32 %v2093, 32.0
    %v2158 = vmul.f32 %v2094, 32.0
    %v2159 = vmul.f32 %v2095, 32.0
    %v2160 = vmul.f32 %v2096, 32.0
    %v2161 = vmul.f32 %v2097, 32.0
    %v2162 = vmul.f32 %v2098, 32.0
    %v2163 = vmul.f32 %v2099, 32.0
    %v2164 = vmul.f32 %v2100, 32.0
    %v2165 = vmul.f32 %v2101, 32.0
    %v2166 = vmul.f32 %v2102, 32.0
    %v2167 = vmul.f32 %v2103, 32.0
    %v2168 = vmul.f32 %v2104, 32.0
    %v2169 = vmul.f32 %v2105, 32.0
    %v2170 = vmul.f32 %v2106, 32.0
    %v2171 = vmul.f32 %v2107, 32.0
    %v2172 = vmul.f32 %v2108, 32.0
    %v2173 = vmul.f32 %v2109, 32.0
    %v2174 = vmul.f32 %v2110, 32.0
    %v2175 = vmul.f32 %v2111, 32.0
    %v2176 = vmul.f32 %v2112, 32.0
    %v2177 = vmul.f32 %v2113, 32.0
    %v2178 = vmul.f32 %v2114, 32.0
    %v2179 = vmul.f32 %v2115, 32.0
    %v2180 = vmul.f32 %v2116, 32.0
    %v2181 = vmul.f32 %v2117, 32.0
    %v2182 = vmul.f32 %v2118, 32.0
    %v2183 = vmul.f32 %v2119, 32.0
    %v2184 = vmul.f32 %v2120, 32.0
    %v2185 = vmul.f32 %v2121, 32.0
    %v2186 = vmul.f32 %v2122, 32.0
    %v2187 = vmul.f32 %v2123, 32.0
    %v2188 = vmul.f32 %v2124, 32.0
    %v2189 = vmul.f32 %v2125, 32.0
    %v2190 = vmul.f32 %v2126, 32.0
    %v2191 = vmul.f32 %v2127, 32.0
    %v2192 = vmul.f32 %v2128, 32.0
    %v2193 = vmul.f32 %v2129, 32.0
    %v2194 = vmul.f32 %v2130, 32.0
    %v2195 = vmul.f32 %v2131, 32.0
    %v2196 = vmul.f32 %v2132, 32.0
    %v2197 = vmul.f32 %v2133, 32.0
    %v2198 = vmul.f32 %v2134, 32.0
    %v2199 = vmul.f32 %v2135, 32.0
    %v2200 = vmul.f32 %v2136, 32.0
    %v2201 = vmul.f32 %v2137, 32.0
    %v2202 = vmul.f32 %v2138, 32.0
    %v2203 = vmul.f32 %v2139, 32.0
    %v2204 = vsub.f32 %v1886, %v2140
    %v2205 = vsub.f32 %v1889, %v2141
    %v2206 = vsub.f32 %v1892, %v2142
    %v2207 = vsub.f32 %v1895, %v2143
    %v2208 = vsub.f32 %v1898, %v2144
    %v2209 = vsub.f32 %v1901, %v2145
    %v2210 = vsub.f32 %v1904, %v2146
    %v2211 = vsub.f32 %v1907, %v2147
    %v2212 = vsub.f32 %v1910, %v2148
    %v2213 = vsub.f32 %v1913, %v2149
    %v2214 = vsub.f32 %v1916, %v2150
    %v2215 = vsub.f32 %v1919, %v2151
    %v2216 = vsub.f32 %v1922, %v2152
    %v2217 = vsub.f32 %v1925, %v2153
    %v2218 = vsub.f32 %v1928, %v2154
    %v2219 = vsub.f32 %v1931, %v2155
    %v2220 = vsub.f32 %v1934, %v2156
    %v2221 = vsub.f32 %v1937, %v2157
    %v2222 = vsub.f32 %v1940, %v2158
    %v2223 = vsub.f32 %v1943, %v2159
    %v2224 = vsub.f32 %v1946, %v2160
    %v2225 = vsub.f32 %v1949, %v2161
    %v2226 = vsub.f32 %v1952, %v2162
    %v2227 = vsub.f32 %v1955, %v2163
    %v2228 = vsub.f32 %v1958, %v2164
    %v2229 = vsub.f32 %v1961, %v2165
    %v2230 = vsub.f32 %v1964, %v2166
    %v2231 = vsub.f32 %v1967, %v2167
    %v2232 = vsub.f32 %v1970, %v2168
    %v2233 = vsub.f32 %v1973, %v2169
    %v2234 = vsub.f32 %v1976, %v2170
    %v2235 = vsub.f32 %v1979, %v2171
    %v2236 = vsub.f32 %v1982, %v2172
    %v2237 = vsub.f32 %v1985, %v2173
    %v2238 = vsub.f32 %v1988, %v2174
    %v2239 = vsub.f32 %v1991, %v2175
    %v2240 = vsub.f32 %v1994, %v2176
    %v2241 = vsub.f32 %v1997, %v2177
    %v2242 = vsub.f32 %v2000, %v2178
    %v2243 = vsub.f32 %v2003, %v2179
    %v2244 = vsub.f32 %v2006, %v2180
    %v2245 = vsub.f32 %v2009, %v2181
    %v2246 = vsub.f32 %v2012, %v2182
    %v2247 = vsub.f32 %v2015, %v2183
    %v2248 = vsub.f32 %v2018, %v2184
    %v2249 = vsub.f32 %v2021, %v2185
    %v2250 = vsub.f32 %v2024, %v2186
    %v2251 = vsub.f32 %v2027, %v2187
    %v2252 = vsub.f32 %v2030, %v2188
    %v2253 = vsub.f32 %v2033, %v2189
    %v2254 = vsub.f32 %v2036, %v2190
    %v2255 = vsub.f32 %v2039, %v2191
    %v2256 = vsub.f32 %v2042, %v2192
    %v2257 = vsub.f32 %v2045, %v2193
    %v2258 = vsub.f32 %v2048, %v2194
    %v2259 = vsub.f32 %v2051, %v2195
    %v2260 = vsub.f32 %v2054, %v2196
    %v2261 = vsub.f32 %v2057, %v2197
    %v2262 = vsub.f32 %v2060, %v2198
    %v2263 = vsub.f32 %v2063, %v2199
    %v2264 = vsub.f32 %v2066, %v2200
    %v2265 = vsub.f32 %v2069, %v2201
    %v2266 = vsub.f32 %v2072, %v2202
    %v2267 = vsub.f32 %v2075, %v2203
    %v2268 = vmul.f32 %v1757, 0.9
    %v2269 = vmul.f32 %v1759, 0.9
    %v2270 = vmul.f32 %v1761, 0.9
    %v2271 = vmul.f32 %v1763, 0.9
    %v2272 = vmul.f32 %v1765, 0.9
    %v2273 = vmul.f32 %v1767, 0.9
    %v2274 = vmul.f32 %v1769, 0.9
    %v2275 = vmul.f32 %v1771, 0.9
    %v2276 = vmul.f32 %v1773, 0.9
    %v2277 = vmul.f32 %v1775, 0.9
    %v2278 = vmul.f32 %v1777, 0.9
    %v2279 = vmul.f32 %v1779, 0.9
    %v2280 = vmul.f32 %v1781, 0.9
    %v2281 = vmul.f32 %v1783, 0.9
    %v2282 = vmul.f32 %v1785, 0.9
    %v2283 = vmul.f32 %v1787, 0.9
    %v2284 = vmul.f32 %v1789, 0.9
    %v2285 = vmul.f32 %v1791, 0.9
    %v2286 = vmul.f32 %v1793, 0.9
    %v2287 = vmul.f32 %v1795, 0.9
    %v2288 = vmul.f32 %v1797, 0.9
    %v2289 = vmul.f32 %v1799, 0.9
    %v2290 = vmul.f32 %v1801, 0.9
    %v2291 = vmul.f32 %v1803, 0.9
    %v2292 = vmul.f32 %v1805, 0.9
    %v2293 = vmul.f32 %v1807, 0.9
    %v2294 = vmul.f32 %v1809, 0.9
    %v2295 = vmul.f32 %v1811, 0.9
    %v2296 = vmul.f32 %v1813, 0.9
    %v2297 = vmul.f32 %v1815, 0.9
    %v2298 = vmul.f32 %v1817, 0.9
    %v2299 = vmul.f32 %v1819, 0.9
    %v2300 = vmul.f32 %v1821, 0.9
    %v2301 = vmul.f32 %v1823, 0.9
    %v2302 = vmul.f32 %v1825, 0.9
    %v2303 = vmul.f32 %v1827, 0.9
    %v2304 = vmul.f32 %v1829, 0.9
    %v2305 = vmul.f32 %v1831, 0.9
    %v2306 = vmul.f32 %v1833, 0.9
    %v2307 = vmul.f32 %v1835, 0.9
    %v2308 = vmul.f32 %v1837, 0.9
    %v2309 = vmul.f32 %v1839, 0.9
    %v2310 = vmul.f32 %v1841, 0.9
    %v2311 = vmul.f32 %v1843, 0.9
    %v2312 = vmul.f32 %v1845, 0.9
    %v2313 = vmul.f32 %v1847, 0.9
    %v2314 = vmul.f32 %v1849, 0.9
    %v2315 = vmul.f32 %v1851, 0.9
    %v2316 = vmul.f32 %v1853, 0.9
    %v2317 = vmul.f32 %v1855, 0.9
    %v2318 = vmul.f32 %v1857, 0.9
    %v2319 = vmul.f32 %v1859, 0.9
    %v2320 = vmul.f32 %v1861, 0.9
    %v2321 = vmul.f32 %v1863, 0.9
    %v2322 = vmul.f32 %v1865, 0.9
    %v2323 = vmul.f32 %v1867, 0.9
    %v2324 = vmul.f32 %v1869, 0.9
    %v2325 = vmul.f32 %v1871, 0.9
    %v2326 = vmul.f32 %v1873, 0.9
    %v2327 = vmul.f32 %v1875, 0.9
    %v2328 = vmul.f32 %v1877, 0.9
    %v2329 = vmul.f32 %v1879, 0.9
    %v2330 = vmul.f32 %v1881, 0.9
    %v2331 = vmul.f32 %v1883, 0.9
    %v2332 = vadd.f32 %v2268, 0.003125
    %v2333 = vadd.f32 %v2269, 0.003125
    %v2334 = vadd.f32 %v2270, 0.003125
    %v2335 = vadd.f32 %v2271, 0.003125
    %v2336 = vadd.f32 %v2272, 0.003125
    %v2337 = vadd.f32 %v2273, 0.003125
    %v2338 = vadd.f32 %v2274, 0.003125
    %v2339 = vadd.f32 %v2275, 0.003125
    %v2340 = vadd.f32 %v2276, 0.003125
    %v2341 = vadd.f32 %v2277, 0.003125
    %v2342 = vadd.f32 %v2278, 0.003125
    %v2343 = vadd.f32 %v2279, 0.003125
    %v2344 = vadd.f32 %v2280, 0.003125
    %v2345 = vadd.f32 %v2281, 0.003125
    %v2346 = vadd.f32 %v2282, 0.003125
    %v2347 = vadd.f32 %v2283, 0.003125
    %v2348 = vadd.f32 %v2284, 0.003125
    %v2349 = vadd.f32 %v2285, 0.003125
    %v2350 = vadd.f32 %v2286, 0.003125
    %v2351 = vadd.f32 %v2287, 0.003125
    %v2352 = vadd.f32 %v2288, 0.003125
    %v2353 = vadd.f32 %v2289, 0.003125
    %v2354 = vadd.f32 %v2290, 0.003125
    %v2355 = vadd.f32 %v2291, 0.003125
    %v2356 = vadd.f32 %v2292, 0.003125
    %v2357 = vadd.f32 %v2293, 0.003125
    %v2358 = vadd.f32 %v2294, 0.003125
    %v2359 = vadd.f32 %v2295, 0.003125
    %v2360 = vadd.f32 %v2296, 0.003125
    %v2361 = vadd.f32 %v2297, 0.003125
    %v2362 = vadd.f32 %v2298, 0.003125
    %v2363 = vadd.f32 %v2299, 0.003125
    %v2364 = vadd.f32 %v2300, 0.003125
    %v2365 = vadd.f32 %v2301, 0.003125
    %v2366 = vadd.f32 %v2302, 0.003125
    %v2367 = vadd.f32 %v2303, 0.003125
    %v2368 = vadd.f32 %v2304, 0.003125
    %v2369 = vadd.f32 %v2305, 0.003125
    %v2370 = vadd.f32 %v2306, 0.003125
    %v2371 = vadd.f32 %v2307, 0.003125
    %v2372 = vadd.f32 %v2308, 0.003125
    %v2373 = vadd.f32 %v2309, 0.003125
    %v2374 = vadd.f32 %v2310, 0.003125
    %v2375 = vadd.f32 %v2311, 0.003125
    %v2376 = vadd.f32 %v2312, 0.003125
    %v2377 = vadd.f32 %v2313, 0.003125
    %v2378 = vadd.f32 %v2314, 0.003125
    %v2379 = vadd.f32 %v2315, 0.003125
    %v2380 = vadd.f32 %v2316, 0.003125
    %v2381 = vadd.f32 %v2317, 0.003125
    %v2382 = vadd.f32 %v2318, 0.003125
    %v2383 = vadd.f32 %v2319, 0.003125
    %v2384 = vadd.f32 %v2320, 0.003125
    %v2385 = vadd.f32 %v2321, 0.003125
    %v2386 = vadd.f32 %v2322, 0.003125
    %v2387 = vadd.f32 %v2323, 0.003125
    %v2388 = vadd.f32 %v2324, 0.003125
    %v2389 = vadd.f32 %v2325, 0.003125
    %v2390 = vadd.f32 %v2326, 0.003125
    %v2391 = vadd.f32 %v2327, 0.003125
    %v2392 = vadd.f32 %v2328, 0.003125
    %v2393 = vadd.f32 %v2329, 0.003125
    %v2394 = vadd.f32 %v2330, 0.003125
    %v2395 = vadd.f32 %v2331, 0.003125
    %v2396 = vmul.f32 %v1692, -0.9
    %v2397 = vmul.f32 %v1693, -0.9
    %v2398 = vmul.f32 %v1694, -0.9
    %v2399 = vmul.f32 %v1695, -0.9
    %v2400 = vmul.f32 %v1696, -0.9
    %v2401 = vmul.f32 %v1697, -0.9
    %v2402 = vmul.f32 %v1698, -0.9
    %v2403 = vmul.f32 %v1699, -0.9
    %v2404 = vmul.f32 %v1700, -0.9
    %v2405 = vmul.f32 %v1701, -0.9
    %v2406 = vmul.f32 %v1702, -0.9
    %v2407 = vmul.f32 %v1703, -0.9
    %v2408 = vmul.f32 %v1704, -0.9
    %v2409 = vmul.f32 %v1705, -0.9
    %v2410 = vmul.f32 %v1706, -0.9
    %v2411 = vmul.f32 %v1707, -0.9
    %v2412 = vmul.f32 %v1708, -0.9
    %v2413 = vmul.f32 %v1709, -0.9
    %v2414 = vmul.f32 %v1710, -0.9
    %v2415 = vmul.f32 %v1711, -0.9
    %v2416 = vmul.f32 %v1712, -0.9
    %v2417 = vmul.f32 %v1713, -0.9
    %v2418 = vmul.f32 %v1714, -0.9
    %v2419 = vmul.f32 %v1715, -0.9
    %v2420 = vmul.f32 %v1716, -0.9
    %v2421 = vmul.f32 %v1717, -0.9
    %v2422 = vmul.f32 %v1718, -0.9
    %v2423 = vmul.f32 %v1719, -0.9
    %v2424 = vmul.f32 %v1720, -0.9
    %v2425 = vmul.f32 %v1721, -0.9
    %v2426 = vmul.f32 %v1722, -0.9
    %v2427 = vmul.f32 %v1723, -0.9
    %v2428 = vmul.f32 %v1724, -0.9
    %v2429 = vmul.f32 %v1725, -0.9
    %v2430 = vmul.f32 %v1726, -0.9
    %v2431 = vmul.f32 %v1727, -0.9
    %v2432 = vmul.f32 %v1728, -0.9
    %v2433 = vmul.f32 %v1729, -0.9
    %v2434 = vmul.f32 %v1730, -0.9
    %v2435 = vmul.f32 %v1731, -0.9
    %v2436 = vmul.f32 %v1732, -0.9
    %v2437 = vmul.f32 %v1733, -0.9
    %v2438 = vmul.f32 %v1734, -0.9
    %v2439 = vmul.f32 %v1735, -0.9
    %v2440 = vmul.f32 %v1736, -0.9
    %v2441 = vmul.f32 %v1737, -0.9
    %v2442 = vmul.f32 %v1738, -0.9
    %v2443 = vmul.f32 %v1739, -0.9
    %v2444 = vmul.f32 %v1740, -0.9
    %v2445 = vmul.f32 %v1741, -0.9
    %v2446 = vmul.f32 %v1742, -0.9
    %v2447 = vmul.f32 %v1743, -0.9
    %v2448 = vmul.f32 %v1744, -0.9
    %v2449 = vmul.f32 %v1745, -0.9
    %v2450 = vmul.f32 %v1746, -0.9
    %v2451 = vmul.f32 %v1747, -0.9
    %v2452 = vmul.f32 %v1748, -0.9
    %v2453 = vmul.f32 %v1749, -0.9
    %v2454 = vmul.f32 %v1750, -0.9
    %v2455 = vmul.f32 %v1751, -0.9
    %v2456 = vmul.f32 %v1752, -0.9
    %v2457 = vmul.f32 %v1753, -0.9
    %v2458 = vmul.f32 %v1754, -0.9
    %v2459 = vmul.f32 %v1755, -0.9
    %v2460 = vmul.f32 %v2204, 0.003125
    %v2461 = vmul.f32 %v2205, 0.003125
    %v2462 = vmul.f32 %v2206, 0.003125
    %v2463 = vmul.f32 %v2207, 0.003125
    %v2464 = vmul.f32 %v2208, 0.003125
    %v2465 = vmul.f32 %v2209, 0.003125
    %v2466 = vmul.f32 %v2210, 0.003125
    %v2467 = vmul.f32 %v2211, 0.003125
    %v2468 = vmul.f32 %v2212, 0.003125
    %v2469 = vmul.f32 %v2213, 0.003125
    %v2470 = vmul.f32 %v2214, 0.003125
    %v2471 = vmul.f32 %v2215, 0.003125
    %v2472 = vmul.f32 %v2216, 0.003125
    %v2473 = vmul.f32 %v2217, 0.003125
    %v2474 = vmul.f32 %v2218, 0.003125
    %v2475 = vmul.f32 %v2219, 0.003125
    %v2476 = vmul.f32 %v2220, 0.003125
    %v2477 = vmul.f32 %v2221, 0.003125
    %v2478 = vmul.f32 %v2222, 0.003125
    %v2479 = vmul.f32 %v2223, 0.003125
    %v2480 = vmul.f32 %v2224, 0.003125
    %v2481 = vmul.f32 %v2225, 0.003125
    %v2482 = vmul.f32 %v2226, 0.003125
    %v2483 = vmul.f32 %v2227, 0.003125
    %v2484 = vmul.f32 %v2228, 0.003125
    %v2485 = vmul.f32 %v2229, 0.003125
    %v2486 = vmul.f32 %v2230, 0.003125
    %v2487 = vmul.f32 %v2231, 0.003125
    %v2488 = vmul.f32 %v2232, 0.003125
    %v2489 = vmul.f32 %v2233, 0.003125
    %v2490 = vmul.f32 %v2234, 0.003125
    %v2491 = vmul.f32 %v2235, 0.003125
    %v2492 = vmul.f32 %v2236, 0.003125
    %v2493 = vmul.f32 %v2237, 0.003125
    %v2494 = vmul.f32 %v2238, 0.003125
    %v2495 = vmul.f32 %v2239, 0.003125
    %v2496 = vmul.f32 %v2240, 0.003125
    %v2497 = vmul.f32 %v2241, 0.003125
    %v2498 = vmul.f32 %v2242, 0.003125
    %v2499 = vmul.f32 %v2243, 0.003125
    %v2500 = vmul.f32 %v2244, 0.003125
    %v2501 = vmul.f32 %v2245, 0.003125
    %v2502 = vmul.f32 %v2246, 0.003125
    %v2503 = vmul.f32 %v2247, 0.003125
    %v2504 = vmul.f32 %v2248, 0.003125
    %v2505 = vmul.f32 %v2249, 0.003125
    %v2506 = vmul.f32 %v2250, 0.003125
    %v2507 = vmul.f32 %v2251, 0.003125
    %v2508 = vmul.f32 %v2252, 0.003125
    %v2509 = vmul.f32 %v2253, 0.003125
    %v2510 = vmul.f32 %v2254, 0.003125
    %v2511 = vmul.f32 %v2255, 0.003125
    %v2512 = vmul.f32 %v2256, 0.003125
    %v2513 = vmul.f32 %v2257, 0.003125
    %v2514 = vmul.f32 %v2258, 0.003125
    %v2515 = vmul.f32 %v2259, 0.003125
    %v2516 = vmul.f32 %v2260, 0.003125
    %v2517 = vmul.f32 %v2261, 0.003125
    %v2518 = vmul.f32 %v2262, 0.003125
    %v2519 = vmul.f32 %v2263, 0.003125
    %v2520 = vmul.f32 %v2264, 0.003125
    %v2521 = vmul.f32 %v2265, 0.003125
    %v2522 = vmul.f32 %v2266, 0.003125
    %v2523 = vmul.f32 %v2267, 0.003125
    %v2524 = vsub.f32 %v2396, %v2460
    %v2525 = vsub.f32 %v2397, %v2461
    %v2526 = vsub.f32 %v2398, %v2462
    %v2527 = vsub.f32 %v2399, %v2463
    %v2528 = vsub.f32 %v2400, %v2464
    %v2529 = vsub.f32 %v2401, %v2465
    %v2530 = vsub.f32 %v2402, %v2466
    %v2531 = vsub.f32 %v2403, %v2467
    %v2532 = vsub.f32 %v2404, %v2468
    %v2533 = vsub.f32 %v2405, %v2469
    %v2534 = vsub.f32 %v2406, %v2470
    %v2535 = vsub.f32 %v2407, %v2471
    %v2536 = vsub.f32 %v2408, %v2472
    %v2537 = vsub.f32 %v2409, %v2473
    %v2538 = vsub.f32 %v2410, %v2474
    %v2539 = vsub.f32 %v2411, %v2475
    %v2540 = vsub.f32 %v2412, %v2476
    %v2541 = vsub.f32 %v2413, %v2477
    %v2542 = vsub.f32 %v2414, %v2478
    %v2543 = vsub.f32 %v2415, %v2479
    %v2544 = vsub.f32 %v2416, %v2480
    %v2545 = vsub.f32 %v2417, %v2481
    %v2546 = vsub.f32 %v2418, %v2482
    %v2547 = vsub.f32 %v2419, %v2483
    %v2548 = vsub.f32 %v2420, %v2484
    %v2549 = vsub.f32 %v2421, %v2485
    %v2550 = vsub.f32 %v2422, %v2486
    %v2551 = vsub.f32 %v2423, %v2487
    %v2552 = vsub.f32 %v2424, %v2488
    %v2553 = vsub.f32 %v2425, %v2489
    %v2554 = vsub.f32 %v2426, %v2490
    %v2555 = vsub.f32 %v2427, %v2491
    %v2556 = vsub.f32 %v2428, %v2492
    %v2557 = vsub.f32 %v2429, %v2493
    %v2558 = vsub.f32 %v2430, %v2494
    %v2559 = vsub.f32 %v2431, %v2495
    %v2560 = vsub.f32 %v2432, %v2496
    %v2561 = vsub.f32 %v2433, %v2497
    %v2562 = vsub.f32 %v2434, %v2498
    %v2563 = vsub.f32 %v2435, %v2499
    %v2564 = vsub.f32 %v2436, %v2500
    %v2565 = vsub.f32 %v2437, %v2501
    %v2566 = vsub.f32 %v2438, %v2502
    %v2567 = vsub.f32 %v2439, %v2503
    %v2568 = vsub.f32 %v2440, %v2504
    %v2569 = vsub.f32 %v2441, %v2505
    %v2570 = vsub.f32 %v2442, %v2506
    %v2571 = vsub.f32 %v2443, %v2507
    %v2572 = vsub.f32 %v2444, %v2508
    %v2573 = vsub.f32 %v2445, %v2509
    %v2574 = vsub.f32 %v2446, %v2510
    %v2575 = vsub.f32 %v2447, %v2511
    %v2576 = vsub.f32 %v2448, %v2512
    %v2577 = vsub.f32 %v2449, %v2513
    %v2578 = vsub.f32 %v2450, %v2514
    %v2579 = vsub.f32 %v2451, %v2515
    %v2580 = vsub.f32 %v2452, %v2516
    %v2581 = vsub.f32 %v2453, %v2517
    %v2582 = vsub.f32 %v2454, %v2518
    %v2583 = vsub.f32 %v2455, %v2519
    %v2584 = vsub.f32 %v2456, %v2520
    %v2585 = vsub.f32 %v2457, %v2521
    %v2586 = vsub.f32 %v2458, %v2522
    %v2587 = vsub.f32 %v2459, %v2523
    %v2588 = vsub.f32 1.0, %v2332
    %v2589 = vsub.f32 1.0, %v2333
    %v2590 = vsub.f32 1.0, %v2334
    %v2591 = vsub.f32 1.0, %v2335
    %v2592 = vsub.f32 1.0, %v2336
    %v2593 = vsub.f32 1.0, %v2337
    %v2594 = vsub.f32 1.0, %v2338
    %v2595 = vsub.f32 1.0, %v2339
    %v2596 = vsub.f32 1.0, %v2340
    %v2597 = vsub.f32 1.0, %v2341
    %v2598 = vsub.f32 1.0, %v2342
    %v2599 = vsub.f32 1.0, %v2343
    %v2600 = vsub.f32 1.0, %v2344
    %v2601 = vsub.f32 1.0, %v2345
    %v2602 = vsub.f32 1.0, %v2346
    %v2603 = vsub.f32 1.0, %v2347
    %v2604 = vsub.f32 1.0, %v2348
    %v2605 = vsub.f32 1.0, %v2349
    %v2606 = vsub.f32 1.0, %v2350
    %v2607 = vsub.f32 1.0, %v2351
    %v2608 = vsub.f32 1.0, %v2352
    %v2609 = vsub.f32 1.0, %v2353
    %v2610 = vsub.f32 1.0, %v2354
    %v2611 = vsub.f32 1.0, %v2355
    %v2612 = vsub.f32 1.0, %v2356
    %v2613 = vsub.f32 1.0, %v2357
    %v2614 = vsub.f32 1.0, %v2358
    %v2615 = vsub.f32 1.0, %v2359
    %v2616 = vsub.f32 1.0, %v2360
    %v2617 = vsub.f32 1.0, %v2361
    %v2618 = vsub.f32 1.0, %v2362
    %v2619 = vsub.f32 1.0, %v2363
    %v2620 = vsub.f32 1.0, %v2364
    %v2621 = vsub.f32 1.0, %v2365
    %v2622 = vsub.f32 1.0, %v2366
    %v2623 = vsub.f32 1.0, %v2367
    %v2624 = vsub.f32 1.0, %v2368
    %v2625 = vsub.f32 1.0, %v2369
    %v2626 = vsub.f32 1.0, %v2370
    %v2627 = vsub.f32 1.0, %v2371
    %v2628 = vsub.f32 1.0, %v2372
    %v2629 = vsub.f32 1.0, %v2373
    %v2630 = vsub.f32 1.0, %v2374
    %v2631 = vsub.f32 1.0, %v2375
    %v2632 = vsub.f32 1.0, %v2376
    %v2633 = vsub.f32 1.0, %v2377
    %v2634 = vsub.f32 1.0, %v2378
    %v2635 = vsub.f32 1.0, %v2379
    %v2636 = vsub.f32 1.0, %v2380
    %v2637 = vsub.f32 1.0, %v2381
    %v2638 = vsub.f32 1.0, %v2382
    %v2639 = vsub.f32 1.0, %v2383
    %v2640 = vsub.f32 1.0, %v2384
    %v2641 = vsub.f32 1.0, %v2385
    %v2642 = vsub.f32 1.0, %v2386
    %v2643 = vsub.f32 1.0, %v2387
    %v2644 = vsub.f32 1.0, %v2388
    %v2645 = vsub.f32 1.0, %v2389
    %v2646 = vsub.f32 1.0, %v2390
    %v2647 = vsub.f32 1.0, %v2391
    %v2648 = vsub.f32 1.0, %v2392
    %v2649 = vsub.f32 1.0, %v2393
    %v2650 = vsub.f32 1.0, %v2394
    %v2651 = vsub.f32 1.0, %v2395
    %v2652 = vmax.f32 %v2588, 0.0
    %v2653 = vmax.f32 %v2589, 0.0
    %v2654 = vmax.f32 %v2590, 0.0
    %v2655 = vmax.f32 %v2591, 0.0
    %v2656 = vmax.f32 %v2592, 0.0
    %v2657 = vmax.f32 %v2593, 0.0
    %v2658 = vmax.f32 %v2594, 0.0
    %v2659 = vmax.f32 %v2595, 0.0
    %v2660 = vmax.f32 %v2596, 0.0
    %v2661 = vmax.f32 %v2597, 0.0
    %v2662 = vmax.f32 %v2598, 0.0
    %v2663 = vmax.f32 %v2599, 0.0
    %v2664 = vmax.f32 %v2600, 0.0
    %v2665 = vmax.f32 %v2601, 0.0
    %v2666 = vmax.f32 %v2602, 0.0
    %v2667 = vmax.f32 %v2603, 0.0
    %v2668 = vmax.f32 %v2604, 0.0
    %v2669 = vmax.f32 %v2605, 0.0
    %v2670 = vmax.f32 %v2606, 0.0
    %v2671 = vmax.f32 %v2607, 0.0
    %v2672 = vmax.f32 %v2608, 0.0
    %v2673 = vmax.f32 %v2609, 0.0
    %v2674 = vmax.f32 %v2610, 0.0
    %v2675 = vmax.f32 %v2611, 0.0
    %v2676 = vmax.f32 %v2612, 0.0
    %v2677 = vmax.f32 %v2613, 0.0
    %v2678 = vmax.f32 %v2614, 0.0
    %v2679 = vmax.f32 %v2615, 0.0
    %v2680 = vmax.f32 %v2616, 0.0
    %v2681 = vmax.f32 %v2617, 0.0
    %v2682 = vmax.f32 %v2618, 0.0
    %v2683 = vmax.f32 %v2619, 0.0
    %v2684 = vmax.f32 %v2620, 0.0
    %v2685 = vmax.f32 %v2621, 0.0
    %v2686 = vmax.f32 %v2622, 0.0
    %v2687 = vmax.f32 %v2623, 0.0
    %v2688 = vmax.f32 %v2624, 0.0
    %v2689 = vmax.f32 %v2625, 0.0
    %v2690 = vmax.f32 %v2626, 0.0
    %v2691 = vmax.f32 %v2627, 0.0
    %v2692 = vmax.f32 %v2628, 0.0
    %v2693 = vmax.f32 %v2629, 0.0
    %v2694 = vmax.f32 %v2630, 0.0
    %v2695 = vmax.f32 %v2631, 0.0
    %v2696 = vmax.f32 %v2632, 0.0
    %v2697 = vmax.f32 %v2633, 0.0
    %v2698 = vmax.f32 %v2634, 0.0
    %v2699 = vmax.f32 %v2635, 0.0
    %v2700 = vmax.f32 %v2636, 0.0
    %v2701 = vmax.f32 %v2637, 0.0
    %v2702 = vmax.f32 %v2638, 0.0
    %v2703 = vmax.f32 %v2639, 0.0
    %v2704 = vmax.f32 %v2640, 0.0
    %v2705 = vmax.f32 %v2641, 0.0
    %v2706 = vmax.f32 %v2642, 0.0
    %v2707 = vmax.f32 %v2643, 0.0
    %v2708 = vmax.f32 %v2644, 0.0
    %v2709 = vmax.f32 %v2645, 0.0
    %v2710 = vmax.f32 %v2646, 0.0
    %v2711 = vmax.f32 %v2647, 0.0
    %v2712 = vmax.f32 %v2648, 0.0
    %v2713 = vmax.f32 %v2649, 0.0
    %v2714 = vmax.f32 %v2650, 0.0
    %v2715 = vmax.f32 %v2651, 0.0
    %v2716 = vmul.f32 %v2652, %v2652
    %v2717 = vmul.f32 %v2653, %v2653
    %v2718 = vmul.f32 %v2654, %v2654
    %v2719 = vmul.f32 %v2655, %v2655
    %v2720 = vmul.f32 %v2656, %v2656
    %v2721 = vmul.f32 %v2657, %v2657
    %v2722 = vmul.f32 %v2658, %v2658
    %v2723 = vmul.f32 %v2659, %v2659
    %v2724 = vmul.f32 %v2660, %v2660
    %v2725 = vmul.f32 %v2661, %v2661
    %v2726 = vmul.f32 %v2662, %v2662
    %v2727 = vmul.f32 %v2663, %v2663
    %v2728 = vmul.f32 %v2664, %v2664
    %v2729 = vmul.f32 %v2665, %v2665
    %v2730 = vmul.f32 %v2666, %v2666
    %v2731 = vmul.f32 %v2667, %v2667
    %v2732 = vmul.f32 %v2668, %v2668
    %v2733 = vmul.f32 %v2669, %v2669
    %v2734 = vmul.f32 %v2670, %v2670
    %v2735 = vmul.f32 %v2671, %v2671
    %v2736 = vmul.f32 %v2672, %v2672
    %v2737 = vmul.f32 %v2673, %v2673
    %v2738 = vmul.f32 %v2674, %v2674
    %v2739 = vmul.f32 %v2675, %v2675
    %v2740 = vmul.f32 %v2676, %v2676
    %v2741 = vmul.f32 %v2677, %v2677
    %v2742 = vmul.f32 %v2678, %v2678
    %v2743 = vmul.f32 %v2679, %v2679
    %v2744 = vmul.f32 %v2680, %v2680
    %v2745 = vmul.f32 %v2681, %v2681
    %v2746 = vmul.f32 %v2682, %v2682
    %v2747 = vmul.f32 %v2683, %v2683
    %v2748 = vmul.f32 %v2684, %v2684
    %v2749 = vmul.f32 %v2685, %v2685
    %v2750 = vmul.f32 %v2686, %v2686
    %v2751 = vmul.f32 %v2687, %v2687
    %v2752 = vmul.f32 %v2688, %v2688
    %v2753 = vmul.f32 %v2689, %v2689
    %v2754 = vmul.f32 %v2690, %v2690
    %v2755 = vmul.f32 %v2691, %v2691
    %v2756 = vmul.f32 %v2692, %v2692
    %v2757 = vmul.f32 %v2693, %v2693
    %v2758 = vmul.f32 %v2694, %v2694
    %v2759 = vmul.f32 %v2695, %v2695
    %v2760 = vmul.f32 %v2696, %v2696
    %v2761 = vmul.f32 %v2697, %v2697
    %v2762 = vmul.f32 %v2698, %v2698
    %v2763 = vmul.f32 %v2699, %v2699
    %v2764 = vmul.f32 %v2700, %v2700
    %v2765 = vmul.f32 %v2701, %v2701
    %v2766 = vmul.f32 %v2702, %v2702
    %v2767 = vmul.f32 %v2703, %v2703
    %v2768 = vmul.f32 %v2704, %v2704
    %v2769 = vmul.f32 %v2705, %v2705
    %v2770 = vmul.f32 %v2706, %v2706
    %v2771 = vmul.f32 %v2707, %v2707
    %v2772 = vmul.f32 %v2708, %v2708
    %v2773 = vmul.f32 %v2709, %v2709
    %v2774 = vmul.f32 %v2710, %v2710
    %v2775 = vmul.f32 %v2711, %v2711
    %v2776 = vmul.f32 %v2712, %v2712
    %v2777 = vmul.f32 %v2713, %v2713
    %v2778 = vmul.f32 %v2714, %v2714
    %v2779 = vmul.f32 %v2715, %v2715
    %v2780 = vmul.f32 %v2716, %v2524
    %v2781 = vmul.f32 %v2717, %v2525
    %v2782 = vmul.f32 %v2718, %v2526
    %v2783 = vmul.f32 %v2719, %v2527
    %v2784 = vmul.f32 %v2720, %v2528
    %v2785 = vmul.f32 %v2721, %v2529
    %v2786 = vmul.f32 %v2722, %v2530
    %v2787 = vmul.f32 %v2723, %v2531
    %v2788 = vmul.f32 %v2724, %v2532
    %v2789 = vmul.f32 %v2725, %v2533
    %v2790 = vmul.f32 %v2726, %v2534
    %v2791 = vmul.f32 %v2727, %v2535
    %v2792 = vmul.f32 %v2728, %v2536
    %v2793 = vmul.f32 %v2729, %v2537
    %v2794 = vmul.f32 %v2730, %v2538
    %v2795 = vmul.f32 %v2731, %v2539
    %v2796 = vmul.f32 %v2732, %v2540
    %v2797 = vmul.f32 %v2733, %v2541
    %v2798 = vmul.f32 %v2734, %v2542
    %v2799 = vmul.f32 %v2735, %v2543
    %v2800 = vmul.f32 %v2736, %v2544
    %v2801 = vmul.f32 %v2737, %v2545
    %v2802 = vmul.f32 %v2738, %v2546
    %v2803 = vmul.f32 %v2739, %v2547
    %v2804 = vmul.f32 %v2740, %v2548
    %v2805 = vmul.f32 %v2741, %v2549
    %v2806 = vmul.f32 %v2742, %v2550
    %v2807 = vmul.f32 %v2743, %v2551
    %v2808 = vmul.f32 %v2744, %v2552
    %v2809 = vmul.f32 %v2745, %v2553
    %v2810 = vmul.f32 %v2746, %v2554
    %v2811 = vmul.f32 %v2747, %v2555
    %v2812 = vmul.f32 %v2748, %v2556
    %v2813 = vmul.f32 %v2749, %v2557
    %v2814 = vmul.f32 %v2750, %v2558
    %v2815 = vmul.f32 %v2751, %v2559
    %v2816 = vmul.f32 %v2752, %v2560
    %v2817 = vmul.f32 %v2753, %v2561
    %v2818 = vmul.f32 %v2754, %v2562
    %v2819 = vmul.f32 %v2755, %v2563
    %v2820 = vmul.f32 %v2756, %v2564
    %v2821 = vmul.f32 %v2757, %v2565
    %v2822 = vmul.f32 %v2758, %v2566
    %v2823 = vmul.f32 %v2759, %v2567
    %v2824 = vmul.f32 %v2760, %v2568
    %v2825 = vmul.f32 %v2761, %v2569
    %v2826 = vmul.f32 %v2762, %v2570
    %v2827 = vmul.f32 %v2763, %v2571
    %v2828 = vmul.f32 %v2764, %v2572
    %v2829 = vmul.f32 %v2765, %v2573
    %v2830 = vmul.f32 %v2766, %v2574
    %v2831 = vmul.f32 %v2767, %v2575
    %v2832 = vmul.f32 %v2768, %v2576
    %v2833 = vmul.f32 %v2769, %v2577
    %v2834 = vmul.f32 %v2770, %v2578
    %v2835 = vmul.f32 %v2771, %v2579
    %v2836 = vmul.f32 %v2772, %v2580
    %v2837 = vmul.f32 %v2773, %v2581
    %v2838 = vmul.f32 %v2774, %v2582
    %v2839 = vmul.f32 %v2775, %v2583
    %v2840 = vmul.f32 %v2776, %v2584
    %v2841 = vmul.f32 %v2777, %v2585
    %v2842 = vmul.f32 %v2778, %v2586
    %v2843 = vmul.f32 %v2779, %v2587
    %v2845 = vlaneseq
    %v2846 = vshrl.u32 %v2845, 7
    %v2847 = vsub.s32 0, %v2846
    %v2848 = vrot.slane %v64, %v2847
    %v2850 = vsel %vm603, %v2848, 0.0
    %v2851 = vsel %vm604, %v2848, 0.0
    %v2852 = vsel %vm605, %v2848, 0.0
    %v2853 = vsel %vm606, %v2848, 0.0
    %v2854 = vsel %vm607, %v2848, 0.0
    %v2855 = vsel %vm608, %v2848, 0.0
    %v2856 = vsel %vm609, %v2848, 0.0
    %v2857 = vsel %vm610, %v2848, 0.0
    %v2858 = vsel %vm611, %v2848, 0.0
    %v2859 = vsel %vm612, %v2848, 0.0
    %v2860 = vsel %vm613, %v2848, 0.0
    %v2861 = vsel %vm614, %v2848, 0.0
    %v2862 = vsel %vm615, %v2848, 0.0
    %v2863 = vsel %vm616, %v2848, 0.0
    %v2864 = vsel %vm617, %v2848, 0.0
    %v2865 = vsel %vm618, %v2848, 0.0
    %v2866 = vsel %vm619, %v2848, 0.0
    %v2867 = vsel %vm620, %v2848, 0.0
    %v2868 = vsel %vm621, %v2848, 0.0
    %v2869 = vsel %vm622, %v2848, 0.0
    %v2870 = vsel %vm623, %v2848, 0.0
    %v2871 = vsel %vm624, %v2848, 0.0
    %v2872 = vsel %vm625, %v2848, 0.0
    %v2873 = vsel %vm626, %v2848, 0.0
    %v2874 = vsel %vm627, %v2848, 0.0
    %v2875 = vsel %vm628, %v2848, 0.0
    %v2876 = vsel %vm629, %v2848, 0.0
    %v2877 = vsel %vm630, %v2848, 0.0
    %v2878 = vsel %vm631, %v2848, 0.0
    %v2879 = vsel %vm632, %v2848, 0.0
    %v2880 = vsel %vm633, %v2848, 0.0
    %v2881 = vsel %vm634, %v2848, 0.0
    %v2882 = vsel %vm635, %v2848, 0.0
    %v2883 = vsel %vm636, %v2848, 0.0
    %v2884 = vsel %vm637, %v2848, 0.0
    %v2885 = vsel %vm638, %v2848, 0.0
    %v2886 = vsel %vm639, %v2848, 0.0
    %v2887 = vsel %vm640, %v2848, 0.0
    %v2888 = vsel %vm641, %v2848, 0.0
    %v2889 = vsel %vm642, %v2848, 0.0
    %v2890 = vsel %vm643, %v2848, 0.0
    %v2891 = vsel %vm644, %v2848, 0.0
    %v2892 = vsel %vm645, %v2848, 0.0
    %v2893 = vsel %vm646, %v2848, 0.0
    %v2894 = vsel %vm647, %v2848, 0.0
    %v2895 = vsel %vm648, %v2848, 0.0
    %v2896 = vsel %vm649, %v2848, 0.0
    %v2897 = vsel %vm650, %v2848, 0.0
    %v2898 = vsel %vm651, %v2848, 0.0
    %v2899 = vsel %vm652, %v2848, 0.0
    %v2900 = vsel %vm653, %v2848, 0.0
    %v2901 = vsel %vm654, %v2848, 0.0
    %v2902 = vsel %vm655, %v2848, 0.0
    %v2903 = vsel %vm656, %v2848, 0.0
    %v2904 = vsel %vm657, %v2848, 0.0
    %v2905 = vsel %vm658, %v2848, 0.0
    %v2906 = vsel %vm659, %v2848, 0.0
    %v2907 = vsel %vm660, %v2848, 0.0
    %v2908 = vsel %vm661, %v2848, 0.0
    %v2909 = vsel %vm662, %v2848, 0.0
    %v2910 = vsel %vm663, %v2848, 0.0
    %v2911 = vsel %vm664, %v2848, 0.0
    %v2912 = vsel %vm665, %v2848, 0.0
    %v2913 = vsel %vm666, %v2848, 0.0
    %v2914 = vsel %vm667, %v2850, 0.0
    %2915 = vadd.xlane.f32.xlu0 %v2914
    %v2916 = vpop.xlane.xlu0 %2915
    %v2917 = vsel %vm667, %v2851, 0.0
    %2918 = vadd.xlane.f32.xlu0 %v2917
    %v2919 = vpop.xlane.xlu0 %2918
    %v2920 = vsel %vm667, %v2852, 0.0
    %2921 = vadd.xlane.f32.xlu0 %v2920
    %v2922 = vpop.xlane.xlu0 %2921
    %v2923 = vsel %vm667, %v2853, 0.0
    %2924 = vadd.xlane.f32.xlu0 %v2923
    %v2925 = vpop.xlane.xlu0 %2924
    %v2926 = vsel %vm667, %v2854, 0.0
    %2927 = vadd.xlane.f32.xlu0 %v2926
    %v2928 = vpop.xlane.xlu0 %2927
    %v2929 = vsel %vm667, %v2855, 0.0
    %2930 = vadd.xlane.f32.xlu0 %v2929
    %v2931 = vpop.xlane.xlu0 %2930
    %v2932 = vsel %vm667, %v2856, 0.0
    %2933 = vadd.xlane.f32.xlu0 %v2932
    %v2934 = vpop.xlane.xlu0 %2933
    %v2935 = vsel %vm667, %v2857, 0.0
    %2936 = vadd.xlane.f32.xlu0 %v2935
    %v2937 = vpop.xlane.xlu0 %2936
    %v2938 = vsel %vm667, %v2858, 0.0
    %2939 = vadd.xlane.f32.xlu0 %v2938
    %v2940 = vpop.xlane.xlu0 %2939
    %v2941 = vsel %vm667, %v2859, 0.0
    %2942 = vadd.xlane.f32.xlu0 %v2941
    %v2943 = vpop.xlane.xlu0 %2942
    %v2944 = vsel %vm667, %v2860, 0.0
    %2945 = vadd.xlane.f32.xlu0 %v2944
    %v2946 = vpop.xlane.xlu0 %2945
    %v2947 = vsel %vm667, %v2861, 0.0
    %2948 = vadd.xlane.f32.xlu0 %v2947
    %v2949 = vpop.xlane.xlu0 %2948
    %v2950 = vsel %vm667, %v2862, 0.0
    %2951 = vadd.xlane.f32.xlu0 %v2950
    %v2952 = vpop.xlane.xlu0 %2951
    %v2953 = vsel %vm667, %v2863, 0.0
    %2954 = vadd.xlane.f32.xlu0 %v2953
    %v2955 = vpop.xlane.xlu0 %2954
    %v2956 = vsel %vm667, %v2864, 0.0
    %2957 = vadd.xlane.f32.xlu0 %v2956
    %v2958 = vpop.xlane.xlu0 %2957
    %v2959 = vsel %vm667, %v2865, 0.0
    %2960 = vadd.xlane.f32.xlu0 %v2959
    %v2961 = vpop.xlane.xlu0 %2960
    %v2962 = vsel %vm667, %v2866, 0.0
    %2963 = vadd.xlane.f32.xlu0 %v2962
    %v2964 = vpop.xlane.xlu0 %2963
    %v2965 = vsel %vm667, %v2867, 0.0
    %2966 = vadd.xlane.f32.xlu0 %v2965
    %v2967 = vpop.xlane.xlu0 %2966
    %v2968 = vsel %vm667, %v2868, 0.0
    %2969 = vadd.xlane.f32.xlu0 %v2968
    %v2970 = vpop.xlane.xlu0 %2969
    %v2971 = vsel %vm667, %v2869, 0.0
    %2972 = vadd.xlane.f32.xlu0 %v2971
    %v2973 = vpop.xlane.xlu0 %2972
    %v2974 = vsel %vm667, %v2870, 0.0
    %2975 = vadd.xlane.f32.xlu0 %v2974
    %v2976 = vpop.xlane.xlu0 %2975
    %v2977 = vsel %vm667, %v2871, 0.0
    %2978 = vadd.xlane.f32.xlu0 %v2977
    %v2979 = vpop.xlane.xlu0 %2978
    %v2980 = vsel %vm667, %v2872, 0.0
    %2981 = vadd.xlane.f32.xlu0 %v2980
    %v2982 = vpop.xlane.xlu0 %2981
    %v2983 = vsel %vm667, %v2873, 0.0
    %2984 = vadd.xlane.f32.xlu0 %v2983
    %v2985 = vpop.xlane.xlu0 %2984
    %v2986 = vsel %vm667, %v2874, 0.0
    %2987 = vadd.xlane.f32.xlu0 %v2986
    %v2988 = vpop.xlane.xlu0 %2987
    %v2989 = vsel %vm667, %v2875, 0.0
    %2990 = vadd.xlane.f32.xlu0 %v2989
    %v2991 = vpop.xlane.xlu0 %2990
    %v2992 = vsel %vm667, %v2876, 0.0
    %2993 = vadd.xlane.f32.xlu0 %v2992
    %v2994 = vpop.xlane.xlu0 %2993
    %v2995 = vsel %vm667, %v2877, 0.0
    %2996 = vadd.xlane.f32.xlu0 %v2995
    %v2997 = vpop.xlane.xlu0 %2996
    %v2998 = vsel %vm667, %v2878, 0.0
    %2999 = vadd.xlane.f32.xlu0 %v2998
    %v3000 = vpop.xlane.xlu0 %2999
    %v3001 = vsel %vm667, %v2879, 0.0
    %3002 = vadd.xlane.f32.xlu0 %v3001
    %v3003 = vpop.xlane.xlu0 %3002
    %v3004 = vsel %vm667, %v2880, 0.0
    %3005 = vadd.xlane.f32.xlu0 %v3004
    %v3006 = vpop.xlane.xlu0 %3005
    %v3007 = vsel %vm667, %v2881, 0.0
    %3008 = vadd.xlane.f32.xlu0 %v3007
    %v3009 = vpop.xlane.xlu0 %3008
    %v3010 = vsel %vm667, %v2882, 0.0
    %3011 = vadd.xlane.f32.xlu0 %v3010
    %v3012 = vpop.xlane.xlu0 %3011
    %v3013 = vsel %vm667, %v2883, 0.0
    %3014 = vadd.xlane.f32.xlu0 %v3013
    %v3015 = vpop.xlane.xlu0 %3014
    %v3016 = vsel %vm667, %v2884, 0.0
    %3017 = vadd.xlane.f32.xlu0 %v3016
    %v3018 = vpop.xlane.xlu0 %3017
    %v3019 = vsel %vm667, %v2885, 0.0
    %3020 = vadd.xlane.f32.xlu0 %v3019
    %v3021 = vpop.xlane.xlu0 %3020
    %v3022 = vsel %vm667, %v2886, 0.0
    %3023 = vadd.xlane.f32.xlu0 %v3022
    %v3024 = vpop.xlane.xlu0 %3023
    %v3025 = vsel %vm667, %v2887, 0.0
    %3026 = vadd.xlane.f32.xlu0 %v3025
    %v3027 = vpop.xlane.xlu0 %3026
    %v3028 = vsel %vm667, %v2888, 0.0
    %3029 = vadd.xlane.f32.xlu0 %v3028
    %v3030 = vpop.xlane.xlu0 %3029
    %v3031 = vsel %vm667, %v2889, 0.0
    %3032 = vadd.xlane.f32.xlu0 %v3031
    %v3033 = vpop.xlane.xlu0 %3032
    %v3034 = vsel %vm667, %v2890, 0.0
    %3035 = vadd.xlane.f32.xlu0 %v3034
    %v3036 = vpop.xlane.xlu0 %3035
    %v3037 = vsel %vm667, %v2891, 0.0
    %3038 = vadd.xlane.f32.xlu0 %v3037
    %v3039 = vpop.xlane.xlu0 %3038
    %v3040 = vsel %vm667, %v2892, 0.0
    %3041 = vadd.xlane.f32.xlu0 %v3040
    %v3042 = vpop.xlane.xlu0 %3041
    %v3043 = vsel %vm667, %v2893, 0.0
    %3044 = vadd.xlane.f32.xlu0 %v3043
    %v3045 = vpop.xlane.xlu0 %3044
    %v3046 = vsel %vm667, %v2894, 0.0
    %3047 = vadd.xlane.f32.xlu0 %v3046
    %v3048 = vpop.xlane.xlu0 %3047
    %v3049 = vsel %vm667, %v2895, 0.0
    %3050 = vadd.xlane.f32.xlu0 %v3049
    %v3051 = vpop.xlane.xlu0 %3050
    %v3052 = vsel %vm667, %v2896, 0.0
    %3053 = vadd.xlane.f32.xlu0 %v3052
    %v3054 = vpop.xlane.xlu0 %3053
    %v3055 = vsel %vm667, %v2897, 0.0
    %3056 = vadd.xlane.f32.xlu0 %v3055
    %v3057 = vpop.xlane.xlu0 %3056
    %v3058 = vsel %vm667, %v2898, 0.0
    %3059 = vadd.xlane.f32.xlu0 %v3058
    %v3060 = vpop.xlane.xlu0 %3059
    %v3061 = vsel %vm667, %v2899, 0.0
    %3062 = vadd.xlane.f32.xlu0 %v3061
    %v3063 = vpop.xlane.xlu0 %3062
    %v3064 = vsel %vm667, %v2900, 0.0
    %3065 = vadd.xlane.f32.xlu0 %v3064
    %v3066 = vpop.xlane.xlu0 %3065
    %v3067 = vsel %vm667, %v2901, 0.0
    %3068 = vadd.xlane.f32.xlu0 %v3067
    %v3069 = vpop.xlane.xlu0 %3068
    %v3070 = vsel %vm667, %v2902, 0.0
    %3071 = vadd.xlane.f32.xlu0 %v3070
    %v3072 = vpop.xlane.xlu0 %3071
    %v3073 = vsel %vm667, %v2903, 0.0
    %3074 = vadd.xlane.f32.xlu0 %v3073
    %v3075 = vpop.xlane.xlu0 %3074
    %v3076 = vsel %vm667, %v2904, 0.0
    %3077 = vadd.xlane.f32.xlu0 %v3076
    %v3078 = vpop.xlane.xlu0 %3077
    %v3079 = vsel %vm667, %v2905, 0.0
    %3080 = vadd.xlane.f32.xlu0 %v3079
    %v3081 = vpop.xlane.xlu0 %3080
    %v3082 = vsel %vm667, %v2906, 0.0
    %3083 = vadd.xlane.f32.xlu0 %v3082
    %v3084 = vpop.xlane.xlu0 %3083
    %v3085 = vsel %vm667, %v2907, 0.0
    %3086 = vadd.xlane.f32.xlu0 %v3085
    %v3087 = vpop.xlane.xlu0 %3086
    %v3088 = vsel %vm667, %v2908, 0.0
    %3089 = vadd.xlane.f32.xlu0 %v3088
    %v3090 = vpop.xlane.xlu0 %3089
    %v3091 = vsel %vm667, %v2909, 0.0
    %3092 = vadd.xlane.f32.xlu0 %v3091
    %v3093 = vpop.xlane.xlu0 %3092
    %v3094 = vsel %vm667, %v2910, 0.0
    %3095 = vadd.xlane.f32.xlu0 %v3094
    %v3096 = vpop.xlane.xlu0 %3095
    %v3097 = vsel %vm667, %v2911, 0.0
    %3098 = vadd.xlane.f32.xlu0 %v3097
    %v3099 = vpop.xlane.xlu0 %3098
    %v3100 = vsel %vm667, %v2912, 0.0
    %3101 = vadd.xlane.f32.xlu0 %v3100
    %v3102 = vpop.xlane.xlu0 %3101
    %v3103 = vsel %vm667, %v2913, 0.0
    %3104 = vadd.xlane.f32.xlu0 %v3103
    %v3105 = vpop.xlane.xlu0 %3104
    %v3106 = vmul.f32 %v2780, %v2916
    %v3107 = vmul.f32 %v2781, %v2919
    %v3108 = vmul.f32 %v2782, %v2922
    %v3109 = vmul.f32 %v2783, %v2925
    %v3110 = vmul.f32 %v2784, %v2928
    %v3111 = vmul.f32 %v2785, %v2931
    %v3112 = vmul.f32 %v2786, %v2934
    %v3113 = vmul.f32 %v2787, %v2937
    %v3114 = vmul.f32 %v2788, %v2940
    %v3115 = vmul.f32 %v2789, %v2943
    %v3116 = vmul.f32 %v2790, %v2946
    %v3117 = vmul.f32 %v2791, %v2949
    %v3118 = vmul.f32 %v2792, %v2952
    %v3119 = vmul.f32 %v2793, %v2955
    %v3120 = vmul.f32 %v2794, %v2958
    %v3121 = vmul.f32 %v2795, %v2961
    %v3122 = vmul.f32 %v2796, %v2964
    %v3123 = vmul.f32 %v2797, %v2967
    %v3124 = vmul.f32 %v2798, %v2970
    %v3125 = vmul.f32 %v2799, %v2973
    %v3126 = vmul.f32 %v2800, %v2976
    %v3127 = vmul.f32 %v2801, %v2979
    %v3128 = vmul.f32 %v2802, %v2982
    %v3129 = vmul.f32 %v2803, %v2985
    %v3130 = vmul.f32 %v2804, %v2988
    %v3131 = vmul.f32 %v2805, %v2991
    %v3132 = vmul.f32 %v2806, %v2994
    %v3133 = vmul.f32 %v2807, %v2997
    %v3134 = vmul.f32 %v2808, %v3000
    %v3135 = vmul.f32 %v2809, %v3003
    %v3136 = vmul.f32 %v2810, %v3006
    %v3137 = vmul.f32 %v2811, %v3009
    %v3138 = vmul.f32 %v2812, %v3012
    %v3139 = vmul.f32 %v2813, %v3015
    %v3140 = vmul.f32 %v2814, %v3018
    %v3141 = vmul.f32 %v2815, %v3021
    %v3142 = vmul.f32 %v2816, %v3024
    %v3143 = vmul.f32 %v2817, %v3027
    %v3144 = vmul.f32 %v2818, %v3030
    %v3145 = vmul.f32 %v2819, %v3033
    %v3146 = vmul.f32 %v2820, %v3036
    %v3147 = vmul.f32 %v2821, %v3039
    %v3148 = vmul.f32 %v2822, %v3042
    %v3149 = vmul.f32 %v2823, %v3045
    %v3150 = vmul.f32 %v2824, %v3048
    %v3151 = vmul.f32 %v2825, %v3051
    %v3152 = vmul.f32 %v2826, %v3054
    %v3153 = vmul.f32 %v2827, %v3057
    %v3154 = vmul.f32 %v2828, %v3060
    %v3155 = vmul.f32 %v2829, %v3063
    %v3156 = vmul.f32 %v2830, %v3066
    %v3157 = vmul.f32 %v2831, %v3069
    %v3158 = vmul.f32 %v2832, %v3072
    %v3159 = vmul.f32 %v2833, %v3075
    %v3160 = vmul.f32 %v2834, %v3078
    %v3161 = vmul.f32 %v2835, %v3081
    %v3162 = vmul.f32 %v2836, %v3084
    %v3163 = vmul.f32 %v2837, %v3087
    %v3164 = vmul.f32 %v2838, %v3090
    %v3165 = vmul.f32 %v2839, %v3093
    %v3166 = vmul.f32 %v2840, %v3096
    %v3167 = vmul.f32 %v2841, %v3099
    %v3168 = vmul.f32 %v2842, %v3102
    %v3169 = vmul.f32 %v2843, %v3105
    %vm3170 = vcmp.ne.f32.partialorder %v168, -100.0
    %vm3171 = vcmp.ne.f32.partialorder %v169, -100.0
    %vm3172 = vcmp.ne.f32.partialorder %v170, -100.0
    %vm3173 = vcmp.ne.f32.partialorder %v171, -100.0
    %vm3174 = vcmp.ne.f32.partialorder %v172, -100.0
    %vm3175 = vcmp.ne.f32.partialorder %v173, -100.0
    %vm3176 = vcmp.ne.f32.partialorder %v174, -100.0
    %vm3177 = vcmp.ne.f32.partialorder %v175, -100.0
    %vm3178 = vcmp.ne.f32.partialorder %v176, -100.0
    %vm3179 = vcmp.ne.f32.partialorder %v177, -100.0
    %vm3180 = vcmp.ne.f32.partialorder %v178, -100.0
    %vm3181 = vcmp.ne.f32.partialorder %v179, -100.0
    %vm3182 = vcmp.ne.f32.partialorder %v180, -100.0
    %vm3183 = vcmp.ne.f32.partialorder %v181, -100.0
    %vm3184 = vcmp.ne.f32.partialorder %v182, -100.0
    %vm3185 = vcmp.ne.f32.partialorder %v183, -100.0
    %vm3186 = vcmp.ne.f32.partialorder %v200, -100.0
    %vm3187 = vcmp.ne.f32.partialorder %v201, -100.0
    %vm3188 = vcmp.ne.f32.partialorder %v202, -100.0
    %vm3189 = vcmp.ne.f32.partialorder %v203, -100.0
    %vm3190 = vcmp.ne.f32.partialorder %v204, -100.0
    %vm3191 = vcmp.ne.f32.partialorder %v205, -100.0
    %vm3192 = vcmp.ne.f32.partialorder %v206, -100.0
    %vm3193 = vcmp.ne.f32.partialorder %v207, -100.0
    %vm3194 = vcmp.ne.f32.partialorder %v208, -100.0
    %vm3195 = vcmp.ne.f32.partialorder %v209, -100.0
    %vm3196 = vcmp.ne.f32.partialorder %v210, -100.0
    %vm3197 = vcmp.ne.f32.partialorder %v211, -100.0
    %vm3198 = vcmp.ne.f32.partialorder %v212, -100.0
    %vm3199 = vcmp.ne.f32.partialorder %v213, -100.0
    %vm3200 = vcmp.ne.f32.partialorder %v214, -100.0
    %vm3201 = vcmp.ne.f32.partialorder %v215, -100.0
    %vm3202 = vcmp.ne.f32.partialorder %v232, -100.0
    %vm3203 = vcmp.ne.f32.partialorder %v233, -100.0
    %vm3204 = vcmp.ne.f32.partialorder %v234, -100.0
    %vm3205 = vcmp.ne.f32.partialorder %v235, -100.0
    %vm3206 = vcmp.ne.f32.partialorder %v236, -100.0
    %vm3207 = vcmp.ne.f32.partialorder %v237, -100.0
    %vm3208 = vcmp.ne.f32.partialorder %v238, -100.0
    %vm3209 = vcmp.ne.f32.partialorder %v239, -100.0
    %vm3210 = vcmp.ne.f32.partialorder %v240, -100.0
    %vm3211 = vcmp.ne.f32.partialorder %v241, -100.0
    %vm3212 = vcmp.ne.f32.partialorder %v242, -100.0
    %vm3213 = vcmp.ne.f32.partialorder %v243, -100.0
    %vm3214 = vcmp.ne.f32.partialorder %v244, -100.0
    %vm3215 = vcmp.ne.f32.partialorder %v245, -100.0
    %vm3216 = vcmp.ne.f32.partialorder %v246, -100.0
    %vm3217 = vcmp.ne.f32.partialorder %v247, -100.0
    %vm3218 = vcmp.ne.f32.partialorder %v264, -100.0
    %vm3219 = vcmp.ne.f32.partialorder %v265, -100.0
    %vm3220 = vcmp.ne.f32.partialorder %v266, -100.0
    %vm3221 = vcmp.ne.f32.partialorder %v267, -100.0
    %vm3222 = vcmp.ne.f32.partialorder %v268, -100.0
    %vm3223 = vcmp.ne.f32.partialorder %v269, -100.0
    %vm3224 = vcmp.ne.f32.partialorder %v270, -100.0
    %vm3225 = vcmp.ne.f32.partialorder %v271, -100.0
    %vm3226 = vcmp.ne.f32.partialorder %v272, -100.0
    %vm3227 = vcmp.ne.f32.partialorder %v273, -100.0
    %vm3228 = vcmp.ne.f32.partialorder %v274, -100.0
    %vm3229 = vcmp.ne.f32.partialorder %v275, -100.0
    %vm3230 = vcmp.ne.f32.partialorder %v276, -100.0
    %vm3231 = vcmp.ne.f32.partialorder %v277, -100.0
    %vm3232 = vcmp.ne.f32.partialorder %v278, -100.0
    %vm3233 = vcmp.ne.f32.partialorder %v279, -100.0
    %v3234 = vsel %vm3170, 1, 0
    %v3235 = vsel %vm3171, 1, 0
    %v3236 = vsel %vm3172, 1, 0
    %v3237 = vsel %vm3173, 1, 0
    %v3238 = vsel %vm3174, 1, 0
    %v3239 = vsel %vm3175, 1, 0
    %v3240 = vsel %vm3176, 1, 0
    %v3241 = vsel %vm3177, 1, 0
    %v3242 = vsel %vm3178, 1, 0
    %v3243 = vsel %vm3179, 1, 0
    %v3244 = vsel %vm3180, 1, 0
    %v3245 = vsel %vm3181, 1, 0
    %v3246 = vsel %vm3182, 1, 0
    %v3247 = vsel %vm3183, 1, 0
    %v3248 = vsel %vm3184, 1, 0
    %v3249 = vsel %vm3185, 1, 0
    %v3250 = vsel %vm3186, 1, 0
    %v3251 = vsel %vm3187, 1, 0
    %v3252 = vsel %vm3188, 1, 0
    %v3253 = vsel %vm3189, 1, 0
    %v3254 = vsel %vm3190, 1, 0
    %v3255 = vsel %vm3191, 1, 0
    %v3256 = vsel %vm3192, 1, 0
    %v3257 = vsel %vm3193, 1, 0
    %v3258 = vsel %vm3194, 1, 0
    %v3259 = vsel %vm3195, 1, 0
    %v3260 = vsel %vm3196, 1, 0
    %v3261 = vsel %vm3197, 1, 0
    %v3262 = vsel %vm3198, 1, 0
    %v3263 = vsel %vm3199, 1, 0
    %v3264 = vsel %vm3200, 1, 0
    %v3265 = vsel %vm3201, 1, 0
    %v3266 = vsel %vm3202, 1, 0
    %v3267 = vsel %vm3203, 1, 0
    %v3268 = vsel %vm3204, 1, 0
    %v3269 = vsel %vm3205, 1, 0
    %v3270 = vsel %vm3206, 1, 0
    %v3271 = vsel %vm3207, 1, 0
    %v3272 = vsel %vm3208, 1, 0
    %v3273 = vsel %vm3209, 1, 0
    %v3274 = vsel %vm3210, 1, 0
    %v3275 = vsel %vm3211, 1, 0
    %v3276 = vsel %vm3212, 1, 0
    %v3277 = vsel %vm3213, 1, 0
    %v3278 = vsel %vm3214, 1, 0
    %v3279 = vsel %vm3215, 1, 0
    %v3280 = vsel %vm3216, 1, 0
    %v3281 = vsel %vm3217, 1, 0
    %v3282 = vsel %vm3218, 1, 0
    %v3283 = vsel %vm3219, 1, 0
    %v3284 = vsel %vm3220, 1, 0
    %v3285 = vsel %vm3221, 1, 0
    %v3286 = vsel %vm3222, 1, 0
    %v3287 = vsel %vm3223, 1, 0
    %v3288 = vsel %vm3224, 1, 0
    %v3289 = vsel %vm3225, 1, 0
    %v3290 = vsel %vm3226, 1, 0
    %v3291 = vsel %vm3227, 1, 0
    %v3292 = vsel %vm3228, 1, 0
    %v3293 = vsel %vm3229, 1, 0
    %v3294 = vsel %vm3230, 1, 0
    %v3295 = vsel %vm3231, 1, 0
    %v3296 = vsel %vm3232, 1, 0
    %v3297 = vsel %vm3233, 1, 0
    %v3298 = vcvt.s32.f32 %v3234
    %v3299 = vcvt.s32.f32 %v3235
    %v3300 = vcvt.s32.f32 %v3236
    %v3301 = vcvt.s32.f32 %v3237
    %v3302 = vcvt.s32.f32 %v3238
    %v3303 = vcvt.s32.f32 %v3239
    %v3304 = vcvt.s32.f32 %v3240
    %v3305 = vcvt.s32.f32 %v3241
    %v3306 = vcvt.s32.f32 %v3242
    %v3307 = vcvt.s32.f32 %v3243
    %v3308 = vcvt.s32.f32 %v3244
    %v3309 = vcvt.s32.f32 %v3245
    %v3310 = vcvt.s32.f32 %v3246
    %v3311 = vcvt.s32.f32 %v3247
    %v3312 = vcvt.s32.f32 %v3248
    %v3313 = vcvt.s32.f32 %v3249
    %v3314 = vcvt.s32.f32 %v3250
    %v3315 = vcvt.s32.f32 %v3251
    %v3316 = vcvt.s32.f32 %v3252
    %v3317 = vcvt.s32.f32 %v3253
    %v3318 = vcvt.s32.f32 %v3254
    %v3319 = vcvt.s32.f32 %v3255
    %v3320 = vcvt.s32.f32 %v3256
    %v3321 = vcvt.s32.f32 %v3257
    %v3322 = vcvt.s32.f32 %v3258
    %v3323 = vcvt.s32.f32 %v3259
    %v3324 = vcvt.s32.f32 %v3260
    %v3325 = vcvt.s32.f32 %v3261
    %v3326 = vcvt.s32.f32 %v3262
    %v3327 = vcvt.s32.f32 %v3263
    %v3328 = vcvt.s32.f32 %v3264
    %v3329 = vcvt.s32.f32 %v3265
    %v3330 = vcvt.s32.f32 %v3266
    %v3331 = vcvt.s32.f32 %v3267
    %v3332 = vcvt.s32.f32 %v3268
    %v3333 = vcvt.s32.f32 %v3269
    %v3334 = vcvt.s32.f32 %v3270
    %v3335 = vcvt.s32.f32 %v3271
    %v3336 = vcvt.s32.f32 %v3272
    %v3337 = vcvt.s32.f32 %v3273
    %v3338 = vcvt.s32.f32 %v3274
    %v3339 = vcvt.s32.f32 %v3275
    %v3340 = vcvt.s32.f32 %v3276
    %v3341 = vcvt.s32.f32 %v3277
    %v3342 = vcvt.s32.f32 %v3278
    %v3343 = vcvt.s32.f32 %v3279
    %v3344 = vcvt.s32.f32 %v3280
    %v3345 = vcvt.s32.f32 %v3281
    %v3346 = vcvt.s32.f32 %v3282
    %v3347 = vcvt.s32.f32 %v3283
    %v3348 = vcvt.s32.f32 %v3284
    %v3349 = vcvt.s32.f32 %v3285
    %v3350 = vcvt.s32.f32 %v3286
    %v3351 = vcvt.s32.f32 %v3287
    %v3352 = vcvt.s32.f32 %v3288
    %v3353 = vcvt.s32.f32 %v3289
    %v3354 = vcvt.s32.f32 %v3290
    %v3355 = vcvt.s32.f32 %v3291
    %v3356 = vcvt.s32.f32 %v3292
    %v3357 = vcvt.s32.f32 %v3293
    %v3358 = vcvt.s32.f32 %v3294
    %v3359 = vcvt.s32.f32 %v3295
    %v3360 = vcvt.s32.f32 %v3296
    %v3361 = vcvt.s32.f32 %v3297
    %v3362 = vmul.f32 %v3106, %v3298
    %v3363 = vmul.f32 %v3107, %v3299
    %v3364 = vmul.f32 %v3108, %v3300
    %v3365 = vmul.f32 %v3109, %v3301
    %v3366 = vmul.f32 %v3110, %v3302
    %v3367 = vmul.f32 %v3111, %v3303
    %v3368 = vmul.f32 %v3112, %v3304
    %v3369 = vmul.f32 %v3113, %v3305
    %v3370 = vmul.f32 %v3114, %v3306
    %v3371 = vmul.f32 %v3115, %v3307
    %v3372 = vmul.f32 %v3116, %v3308
    %v3373 = vmul.f32 %v3117, %v3309
    %v3374 = vmul.f32 %v3118, %v3310
    %v3375 = vmul.f32 %v3119, %v3311
    %v3376 = vmul.f32 %v3120, %v3312
    %v3377 = vmul.f32 %v3121, %v3313
    %v3378 = vmul.f32 %v3122, %v3314
    %v3379 = vmul.f32 %v3123, %v3315
    %v3380 = vmul.f32 %v3124, %v3316
    %v3381 = vmul.f32 %v3125, %v3317
    %v3382 = vmul.f32 %v3126, %v3318
    %v3383 = vmul.f32 %v3127, %v3319
    %v3384 = vmul.f32 %v3128, %v3320
    %v3385 = vmul.f32 %v3129, %v3321
    %v3386 = vmul.f32 %v3130, %v3322
    %v3387 = vmul.f32 %v3131, %v3323
    %v3388 = vmul.f32 %v3132, %v3324
    %v3389 = vmul.f32 %v3133, %v3325
    %v3390 = vmul.f32 %v3134, %v3326
    %v3391 = vmul.f32 %v3135, %v3327
    %v3392 = vmul.f32 %v3136, %v3328
    %v3393 = vmul.f32 %v3137, %v3329
    %v3394 = vmul.f32 %v3138, %v3330
    %v3395 = vmul.f32 %v3139, %v3331
    %v3396 = vmul.f32 %v3140, %v3332
    %v3397 = vmul.f32 %v3141, %v3333
    %v3398 = vmul.f32 %v3142, %v3334
    %v3399 = vmul.f32 %v3143, %v3335
    %v3400 = vmul.f32 %v3144, %v3336
    %v3401 = vmul.f32 %v3145, %v3337
    %v3402 = vmul.f32 %v3146, %v3338
    %v3403 = vmul.f32 %v3147, %v3339
    %v3404 = vmul.f32 %v3148, %v3340
    %v3405 = vmul.f32 %v3149, %v3341
    %v3406 = vmul.f32 %v3150, %v3342
    %v3407 = vmul.f32 %v3151, %v3343
    %v3408 = vmul.f32 %v3152, %v3344
    %v3409 = vmul.f32 %v3153, %v3345
    %v3410 = vmul.f32 %v3154, %v3346
    %v3411 = vmul.f32 %v3155, %v3347
    %v3412 = vmul.f32 %v3156, %v3348
    %v3413 = vmul.f32 %v3157, %v3349
    %v3414 = vmul.f32 %v3158, %v3350
    %v3415 = vmul.f32 %v3159, %v3351
    %v3416 = vmul.f32 %v3160, %v3352
    %v3417 = vmul.f32 %v3161, %v3353
    %v3418 = vmul.f32 %v3162, %v3354
    %v3419 = vmul.f32 %v3163, %v3355
    %v3420 = vmul.f32 %v3164, %v3356
    %v3421 = vmul.f32 %v3165, %v3357
    %v3422 = vmul.f32 %v3166, %v3358
    %v3423 = vmul.f32 %v3167, %v3359
    %v3424 = vmul.f32 %v3168, %v3360
    %v3425 = vmul.f32 %v3169, %v3361
    %vm3426 = vcmask 7168
    %v3427 = vsel %vm3426, %v3362, 0.0
    %v3428 = vsel %vm3426, %v3363, 0.0
    %v3429 = vadd.f32 %v3427, %v3428
    %v3430 = vsel %vm3426, %v3364, 0.0
    %v3431 = vadd.f32 %v3429, %v3430
    %v3432 = vsel %vm3426, %v3365, 0.0
    %v3433 = vadd.f32 %v3431, %v3432
    %v3434 = vsel %vm3426, %v3366, 0.0
    %v3435 = vadd.f32 %v3433, %v3434
    %v3436 = vsel %vm3426, %v3367, 0.0
    %v3437 = vadd.f32 %v3435, %v3436
    %v3438 = vsel %vm3426, %v3368, 0.0
    %v3439 = vadd.f32 %v3437, %v3438
    %v3440 = vsel %vm3426, %v3369, 0.0
    %v3441 = vadd.f32 %v3439, %v3440
    %v3442 = vsel %vm3426, %v3370, 0.0
    %v3443 = vadd.f32 %v3441, %v3442
    %v3444 = vsel %vm3426, %v3371, 0.0
    %v3445 = vadd.f32 %v3443, %v3444
    %v3446 = vsel %vm3426, %v3372, 0.0
    %v3447 = vadd.f32 %v3445, %v3446
    %v3448 = vsel %vm3426, %v3373, 0.0
    %v3449 = vadd.f32 %v3447, %v3448
    %v3450 = vsel %vm3426, %v3374, 0.0
    %v3451 = vadd.f32 %v3449, %v3450
    %v3452 = vsel %vm3426, %v3375, 0.0
    %v3453 = vadd.f32 %v3451, %v3452
    %v3454 = vsel %vm3426, %v3376, 0.0
    %v3455 = vadd.f32 %v3453, %v3454
    %v3456 = vsel %vm3426, %v3377, 0.0
    %v3457 = vadd.f32 %v3455, %v3456
    %v3458 = vsel %vm3426, %v3378, 0.0
    %v3459 = vadd.f32 %v3457, %v3458
    %v3460 = vsel %vm3426, %v3379, 0.0
    %v3461 = vadd.f32 %v3459, %v3460
    %v3462 = vsel %vm3426, %v3380, 0.0
    %v3463 = vadd.f32 %v3461, %v3462
    %v3464 = vsel %vm3426, %v3381, 0.0
    %v3465 = vadd.f32 %v3463, %v3464
    %v3466 = vsel %vm3426, %v3382, 0.0
    %v3467 = vadd.f32 %v3465, %v3466
    %v3468 = vsel %vm3426, %v3383, 0.0
    %v3469 = vadd.f32 %v3467, %v3468
    %v3470 = vsel %vm3426, %v3384, 0.0
    %v3471 = vadd.f32 %v3469, %v3470
    %v3472 = vsel %vm3426, %v3385, 0.0
    %v3473 = vadd.f32 %v3471, %v3472
    %v3474 = vsel %vm3426, %v3386, 0.0
    %v3475 = vadd.f32 %v3473, %v3474
    %v3476 = vsel %vm3426, %v3387, 0.0
    %v3477 = vadd.f32 %v3475, %v3476
    %v3478 = vsel %vm3426, %v3388, 0.0
    %v3479 = vadd.f32 %v3477, %v3478
    %v3480 = vsel %vm3426, %v3389, 0.0
    %v3481 = vadd.f32 %v3479, %v3480
    %v3482 = vsel %vm3426, %v3390, 0.0
    %v3483 = vadd.f32 %v3481, %v3482
    %v3484 = vsel %vm3426, %v3391, 0.0
    %v3485 = vadd.f32 %v3483, %v3484
    %v3486 = vsel %vm3426, %v3392, 0.0
    %v3487 = vadd.f32 %v3485, %v3486
    %v3488 = vsel %vm3426, %v3393, 0.0
    %v3489 = vadd.f32 %v3487, %v3488
    %v3490 = vsel %vm3426, %v3394, 0.0
    %v3491 = vadd.f32 %v3489, %v3490
    %v3492 = vsel %vm3426, %v3395, 0.0
    %v3493 = vadd.f32 %v3491, %v3492
    %v3494 = vsel %vm3426, %v3396, 0.0
    %v3495 = vadd.f32 %v3493, %v3494
    %v3496 = vsel %vm3426, %v3397, 0.0
    %v3497 = vadd.f32 %v3495, %v3496
    %v3498 = vsel %vm3426, %v3398, 0.0
    %v3499 = vadd.f32 %v3497, %v3498
    %v3500 = vsel %vm3426, %v3399, 0.0
    %v3501 = vadd.f32 %v3499, %v3500
    %v3502 = vsel %vm3426, %v3400, 0.0
    %v3503 = vadd.f32 %v3501, %v3502
    %v3504 = vsel %vm3426, %v3401, 0.0
    %v3505 = vadd.f32 %v3503, %v3504
    %v3506 = vsel %vm3426, %v3402, 0.0
    %v3507 = vadd.f32 %v3505, %v3506
    %v3508 = vsel %vm3426, %v3403, 0.0
    %v3509 = vadd.f32 %v3507, %v3508
    %v3510 = vsel %vm3426, %v3404, 0.0
    %v3511 = vadd.f32 %v3509, %v3510
    %v3512 = vsel %vm3426, %v3405, 0.0
    %v3513 = vadd.f32 %v3511, %v3512
    %v3514 = vsel %vm3426, %v3406, 0.0
    %v3515 = vadd.f32 %v3513, %v3514
    %v3516 = vsel %vm3426, %v3407, 0.0
    %v3517 = vadd.f32 %v3515, %v3516
    %v3518 = vsel %vm3426, %v3408, 0.0
    %v3519 = vadd.f32 %v3517, %v3518
    %v3520 = vsel %vm3426, %v3409, 0.0
    %v3521 = vadd.f32 %v3519, %v3520
    %v3522 = vsel %vm3426, %v3410, 0.0
    %v3523 = vadd.f32 %v3521, %v3522
    %v3524 = vsel %vm3426, %v3411, 0.0
    %v3525 = vadd.f32 %v3523, %v3524
    %v3526 = vsel %vm3426, %v3412, 0.0
    %v3527 = vadd.f32 %v3525, %v3526
    %v3528 = vsel %vm3426, %v3413, 0.0
    %v3529 = vadd.f32 %v3527, %v3528
    %v3530 = vsel %vm3426, %v3414, 0.0
    %v3531 = vadd.f32 %v3529, %v3530
    %v3532 = vsel %vm3426, %v3415, 0.0
    %v3533 = vadd.f32 %v3531, %v3532
    %v3534 = vsel %vm3426, %v3416, 0.0
    %v3535 = vadd.f32 %v3533, %v3534
    %v3536 = vsel %vm3426, %v3417, 0.0
    %v3537 = vadd.f32 %v3535, %v3536
    %v3538 = vsel %vm3426, %v3418, 0.0
    %v3539 = vadd.f32 %v3537, %v3538
    %v3540 = vsel %vm3426, %v3419, 0.0
    %v3541 = vadd.f32 %v3539, %v3540
    %v3542 = vsel %vm3426, %v3420, 0.0
    %v3543 = vadd.f32 %v3541, %v3542
    %v3544 = vsel %vm3426, %v3421, 0.0
    %v3545 = vadd.f32 %v3543, %v3544
    %v3546 = vsel %vm3426, %v3422, 0.0
    %v3547 = vadd.f32 %v3545, %v3546
    %v3548 = vsel %vm3426, %v3423, 0.0
    %v3549 = vadd.f32 %v3547, %v3548
    %v3550 = vsel %vm3426, %v3424, 0.0
    %v3551 = vadd.f32 %v3549, %v3550
    %v3552 = vsel %vm3426, %v3425, 0.0
    %v3553 = vadd.f32 %v3551, %v3552
    %3554 = vadd.xlane.f32.xlu0 %v3553
    %v3555 = vpop.xlane.xlu0 %3554
    %v3556 = vrot.slane %v3555, 4
    %v3557 = vadd.f32 %v3555, %v3556
    %v3558 = vrot.slane %v3557, 2
    %v3559 = vadd.f32 %v3557, %v3558
    %v3560 = vrot.slane %v3559, 1
    %v3561 = vadd.f32 %v3559, %v3560
    %s3562 = vtos %v3561
    %s3563 = sadd.f32 %s3562, 0.0
    %v3564 = vsel %vm3426, %v3298, 0.0
    %v3565 = vsel %vm3426, %v3299, 0.0
    %v3566 = vadd.f32 %v3564, %v3565
    %v3567 = vsel %vm3426, %v3300, 0.0
    %v3568 = vadd.f32 %v3566, %v3567
    %v3569 = vsel %vm3426, %v3301, 0.0
    %v3570 = vadd.f32 %v3568, %v3569
    %v3571 = vsel %vm3426, %v3302, 0.0
    %v3572 = vadd.f32 %v3570, %v3571
    %v3573 = vsel %vm3426, %v3303, 0.0
    %v3574 = vadd.f32 %v3572, %v3573
    %v3575 = vsel %vm3426, %v3304, 0.0
    %v3576 = vadd.f32 %v3574, %v3575
    %v3577 = vsel %vm3426, %v3305, 0.0
    %v3578 = vadd.f32 %v3576, %v3577
    %v3579 = vsel %vm3426, %v3306, 0.0
    %v3580 = vadd.f32 %v3578, %v3579
    %v3581 = vsel %vm3426, %v3307, 0.0
    %v3582 = vadd.f32 %v3580, %v3581
    %v3583 = vsel %vm3426, %v3308, 0.0
    %v3584 = vadd.f32 %v3582, %v3583
    %v3585 = vsel %vm3426, %v3309, 0.0
    %v3586 = vadd.f32 %v3584, %v3585
    %v3587 = vsel %vm3426, %v3310, 0.0
    %v3588 = vadd.f32 %v3586, %v3587
    %v3589 = vsel %vm3426, %v3311, 0.0
    %v3590 = vadd.f32 %v3588, %v3589
    %v3591 = vsel %vm3426, %v3312, 0.0
    %v3592 = vadd.f32 %v3590, %v3591
    %v3593 = vsel %vm3426, %v3313, 0.0
    %v3594 = vadd.f32 %v3592, %v3593
    %v3595 = vsel %vm3426, %v3314, 0.0
    %v3596 = vadd.f32 %v3594, %v3595
    %v3597 = vsel %vm3426, %v3315, 0.0
    %v3598 = vadd.f32 %v3596, %v3597
    %v3599 = vsel %vm3426, %v3316, 0.0
    %v3600 = vadd.f32 %v3598, %v3599
    %v3601 = vsel %vm3426, %v3317, 0.0
    %v3602 = vadd.f32 %v3600, %v3601
    %v3603 = vsel %vm3426, %v3318, 0.0
    %v3604 = vadd.f32 %v3602, %v3603
    %v3605 = vsel %vm3426, %v3319, 0.0
    %v3606 = vadd.f32 %v3604, %v3605
    %v3607 = vsel %vm3426, %v3320, 0.0
    %v3608 = vadd.f32 %v3606, %v3607
    %v3609 = vsel %vm3426, %v3321, 0.0
    %v3610 = vadd.f32 %v3608, %v3609
    %v3611 = vsel %vm3426, %v3322, 0.0
    %v3612 = vadd.f32 %v3610, %v3611
    %v3613 = vsel %vm3426, %v3323, 0.0
    %v3614 = vadd.f32 %v3612, %v3613
    %v3615 = vsel %vm3426, %v3324, 0.0
    %v3616 = vadd.f32 %v3614, %v3615
    %v3617 = vsel %vm3426, %v3325, 0.0
    %v3618 = vadd.f32 %v3616, %v3617
    %v3619 = vsel %vm3426, %v3326, 0.0
    %v3620 = vadd.f32 %v3618, %v3619
    %v3621 = vsel %vm3426, %v3327, 0.0
    %v3622 = vadd.f32 %v3620, %v3621
    %v3623 = vsel %vm3426, %v3328, 0.0
    %v3624 = vadd.f32 %v3622, %v3623
    %v3625 = vsel %vm3426, %v3329, 0.0
    %v3626 = vadd.f32 %v3624, %v3625
    %v3627 = vsel %vm3426, %v3330, 0.0
    %v3628 = vadd.f32 %v3626, %v3627
    %v3629 = vsel %vm3426, %v3331, 0.0
    %v3630 = vadd.f32 %v3628, %v3629
    %v3631 = vsel %vm3426, %v3332, 0.0
    %v3632 = vadd.f32 %v3630, %v3631
    %v3633 = vsel %vm3426, %v3333, 0.0
    %v3634 = vadd.f32 %v3632, %v3633
    %v3635 = vsel %vm3426, %v3334, 0.0
    %v3636 = vadd.f32 %v3634, %v3635
    %v3637 = vsel %vm3426, %v3335, 0.0
    %v3638 = vadd.f32 %v3636, %v3637
    %v3639 = vsel %vm3426, %v3336, 0.0
    %v3640 = vadd.f32 %v3638, %v3639
    %v3641 = vsel %vm3426, %v3337, 0.0
    %v3642 = vadd.f32 %v3640, %v3641
    %v3643 = vsel %vm3426, %v3338, 0.0
    %v3644 = vadd.f32 %v3642, %v3643
    %v3645 = vsel %vm3426, %v3339, 0.0
    %v3646 = vadd.f32 %v3644, %v3645
    %v3647 = vsel %vm3426, %v3340, 0.0
    %v3648 = vadd.f32 %v3646, %v3647
    %v3649 = vsel %vm3426, %v3341, 0.0
    %v3650 = vadd.f32 %v3648, %v3649
    %v3651 = vsel %vm3426, %v3342, 0.0
    %v3652 = vadd.f32 %v3650, %v3651
    %v3653 = vsel %vm3426, %v3343, 0.0
    %v3654 = vadd.f32 %v3652, %v3653
    %v3655 = vsel %vm3426, %v3344, 0.0
    %v3656 = vadd.f32 %v3654, %v3655
    %v3657 = vsel %vm3426, %v3345, 0.0
    %v3658 = vadd.f32 %v3656, %v3657
    %v3659 = vsel %vm3426, %v3346, 0.0
    %v3660 = vadd.f32 %v3658, %v3659
    %v3661 = vsel %vm3426, %v3347, 0.0
    %v3662 = vadd.f32 %v3660, %v3661
    %v3663 = vsel %vm3426, %v3348, 0.0
    %v3664 = vadd.f32 %v3662, %v3663
    %v3665 = vsel %vm3426, %v3349, 0.0
    %v3666 = vadd.f32 %v3664, %v3665
    %v3667 = vsel %vm3426, %v3350, 0.0
    %v3668 = vadd.f32 %v3666, %v3667
    %v3669 = vsel %vm3426, %v3351, 0.0
    %v3670 = vadd.f32 %v3668, %v3669
    %v3671 = vsel %vm3426, %v3352, 0.0
    %v3672 = vadd.f32 %v3670, %v3671
    %v3673 = vsel %vm3426, %v3353, 0.0
    %v3674 = vadd.f32 %v3672, %v3673
    %v3675 = vsel %vm3426, %v3354, 0.0
    %v3676 = vadd.f32 %v3674, %v3675
    %v3677 = vsel %vm3426, %v3355, 0.0
    %v3678 = vadd.f32 %v3676, %v3677
    %v3679 = vsel %vm3426, %v3356, 0.0
    %v3680 = vadd.f32 %v3678, %v3679
    %v3681 = vsel %vm3426, %v3357, 0.0
    %v3682 = vadd.f32 %v3680, %v3681
    %v3683 = vsel %vm3426, %v3358, 0.0
    %v3684 = vadd.f32 %v3682, %v3683
    %v3685 = vsel %vm3426, %v3359, 0.0
    %v3686 = vadd.f32 %v3684, %v3685
    %v3687 = vsel %vm3426, %v3360, 0.0
    %v3688 = vadd.f32 %v3686, %v3687
    %v3689 = vsel %vm3426, %v3361, 0.0
    %v3690 = vadd.f32 %v3688, %v3689
    %3691 = vadd.xlane.f32.xlu0 %v3690
    %v3692 = vpop.xlane.xlu0 %3691
    %v3693 = vrot.slane %v3692, 4
    %v3694 = vadd.f32 %v3692, %v3693
    %v3695 = vrot.slane %v3694, 2
    %v3696 = vadd.f32 %v3694, %v3695
    %v3697 = vrot.slane %v3696, 1
    %v3698 = vadd.f32 %v3696, %v3697
    %s3699 = vtos %v3698
    %s3700 = sadd.f32 %s3699, 0.0
    %v3701 = vld [vmem:[#allocation2] sm:$0x1]
    %v3702 = vstv %s3563
    %v3703 = vadd.f32 %v3701, %v3702
    %vm3704 = vcmask 0
    %3705 = vst.msk [vmem:[#allocation2] sm:$0x1] %vm3704, %v3703
    %v3706 = vld [vmem:[#allocation4] sm:$0x1]
    %v3707 = vstv %s3700
    %v3708 = vadd.f32 %v3706, %v3707
    %3709 = vst.msk [vmem:[#allocation4] sm:$0x1] %vm3704, %v3708
    // Predicated region
    $region18: #{tpu_custom_call.1} parent=1 // pred_check
      _
    $region19: #{tpu_custom_call.1} parent=1 // pred_check_branch
      %3711 = sbr.rel (0) target = $region21
    $region20: #{tpu_custom_call.1} parent=1 // pred_region
      %s3713 = ssub.s32 16, 16
      %3714 = vsyncadd [#allocation3], %s3713
      %s3716 = sshll.u32 [#allocation2], 4
      %s3717 = int_to_ptr.vmem [resolvable:$true] %s3716
      %3719 = dma.vmem_to_hbm [thread:$0]  %s3717, 16, %s3, [#allocation3]
    $region21: #{tpu_custom_call.1} parent=1 // pred_fallthru
      _
    // Predicated region
    $region22: #{tpu_custom_call.1} parent=1 // pred_check
      _
    $region23: #{tpu_custom_call.1} parent=1 // pred_check_branch
      %3721 = sbr.rel (0) target = $region25
    $region24: #{tpu_custom_call.1} parent=1 // pred_region
      %s3723 = ssub.s32 16, 16
      %3724 = vsyncadd [#allocation5], %s3723
      %s3726 = sshll.u32 [#allocation4], 4
      %s3727 = int_to_ptr.vmem [resolvable:$true] %s3726
      %3729 = dma.vmem_to_hbm [thread:$0]  %s3727, 16, %s4, [#allocation5]
    $region25: #{tpu_custom_call.1} parent=1 // pred_fallthru
      _
    // Predicated region
    $region26: #{tpu_custom_call.1} parent=1 // pred_check
      _
    $region27: #{tpu_custom_call.1} parent=1 // pred_check_branch
      %3731 = sbr.rel (0) target = $region29
    $region28: #{tpu_custom_call.1} parent=1 // pred_region
      %3732 = dma.done [#allocation3], 16
    $region29: #{tpu_custom_call.1} parent=1 // pred_fallthru
      _
    // Predicated region
    $region30: #{tpu_custom_call.1} parent=1 // pred_check
      _
    $region31: #{tpu_custom_call.1} parent=1 // pred_check_branch
      %3734 = sbr.rel (0) target = $region33
    $region32: #{tpu_custom_call.1} parent=1 // pred_region
      %3735 = dma.done [#allocation5], 16
    $region33: #{tpu_custom_call.1} parent=1 // pred_fallthru
      _
    %3736 = vsyncpa [#allocation3], 1
    %3737 = vsyncpa [#allocation5], 1

</llo_original>
